<compile_context>
chip_gen: v6e
topology: v6e:2x2x1
jax: 0.10.0
libtpu: 0.0.40
codegen_flags: <defaults>
</compile_context>

<pallas_src>
import functools

import jax
import jax.numpy as jnp
from jax import lax
from jax.experimental import pallas as pl
from jax.experimental.pallas import tpu as pltpu


def block_kernel(x_ref, ln1w_ref, ln1b_ref, qkvw_ref, qkvb_ref,
                 projw_ref, projb_ref, ln2w_ref, ln2b_ref,
                 fc1w_ref, fc1b_ref, fc2w_ref, fc2b_ref,
                 o_ref, attn_buf,
                 *, num_heads, eps):
    bt, N, D = x_ref.shape
    H = num_heads
    dh = D // H
    scale = dh ** -0.5
    rows = bt * N

    # Residual stream kept in f32.
    x = x_ref[...].reshape(rows, D).astype(jnp.float32)

    def layernorm(v, w, b):
        mu = jnp.mean(v, axis=-1, keepdims=True)
        var = jnp.mean((v - mu) ** 2, axis=-1, keepdims=True)
        return (v - mu) * lax.rsqrt(var + eps) * w + b

    def gelu_exact(v):
        # nn.GELU default = exact (erf) form.
        return 0.5 * v * (1.0 + lax.erf(v * (2.0 ** -0.5)))

    # ---------------- attention branch ----------------
    xn = layernorm(x, ln1w_ref[0], ln1b_ref[0])
    qkv = jnp.dot(xn.astype(jnp.bfloat16), qkvw_ref[...],
                  preferred_element_type=jnp.float32) + qkvb_ref[0]   # (rows, 3D) f32

    # Full-width scale + casts once (full-lane VPU ops), then per-head slices.
    q_all = (qkv[:, 0 * D:1 * D] * scale).astype(jnp.bfloat16)        # (rows, D)
    k_all = qkv[:, 1 * D:2 * D].astype(jnp.bfloat16)                  # (rows, D)
    v_all = qkv[:, 2 * D:3 * D].astype(jnp.bfloat16)                  # (rows, D)

    # Static loop over heads; each head does batched (over bt) 3-D einsums.
    for h in range(H):
        sl = slice(h * dh, (h + 1) * dh)
        q_h = q_all[:, sl].reshape(bt, N, dh)
        k_h = k_all[:, sl].reshape(bt, N, dh)
        v_h = v_all[:, sl].reshape(bt, N, dh)

        s = jnp.einsum('bqd,bkd->bqk', q_h, k_h,
                       preferred_element_type=jnp.float32)            # (bt, N, N)
        s = s - jnp.max(s, axis=-1, keepdims=True)
        p = jnp.exp(s)
        denom = jnp.sum(p, axis=-1, keepdims=True)                    # (bt, N, 1)
        # Deferred softmax normalization: un-normalized p @ v, then scale the
        # (N, dh) output by an EUP approximate reciprocal of the row sums.
        o_h = jnp.einsum('bqk,bkd->bqd', p.astype(jnp.bfloat16), v_h,
                         preferred_element_type=jnp.float32)          # (bt, N, dh)
        o_h = o_h * pl.reciprocal(denom, approx=True)
        attn_buf[:, :, sl] = o_h.astype(jnp.bfloat16)                 # bf16 scratch

    attn = attn_buf[...].reshape(rows, D)                             # bf16
    attn = jnp.dot(attn, projw_ref[...],
                   preferred_element_type=jnp.float32) + projb_ref[0]
    # ls1 / drop_path1 are Identity (init_values=None, drop_path=0, eval mode)
    x = x + attn

    # ---------------- MLP branch ----------------
    xn2 = layernorm(x, ln2w_ref[0], ln2b_ref[0])
    h1 = jnp.dot(xn2.astype(jnp.bfloat16), fc1w_ref[...],
                 preferred_element_type=jnp.float32) + fc1b_ref[0]
    h1 = gelu_exact(h1)
    h2 = jnp.dot(h1.astype(jnp.bfloat16), fc2w_ref[...],
                 preferred_element_type=jnp.float32) + fc2b_ref[0]
    x = x + h2

    o_ref[...] = x.reshape(bt, N, D).astype(o_ref.dtype)


def _pick_block_batch(B, N, D, hidden, num_heads, budget_bytes=6 << 20):
    """Largest divisor of B whose per-step f32 activation slab fits a budget."""
    per_b = 4 * (N * (6 * D + hidden) + 2 * num_heads * N * N)
    cap = max(1, budget_bytes // max(per_b, 1))
    bt = 1
    for d in range(1, B + 1):
        if B % d == 0 and d <= cap:
            bt = d
    return bt


def vit_block(x, params, *, num_heads, eps=1e-5, block_b=None,
              vmem_limit_bytes=64 * 1024 * 1024):
    B, N, D = x.shape
    assert D % num_heads == 0, "embed dim must be divisible by num_heads"
    Hid = params["fc1_w"].shape[1]

    bt = _pick_block_batch(B, N, D, Hid, num_heads) if block_b is None else block_b
    assert B % bt == 0

    # Cast matmul weights to bf16: ~4x MXU throughput on v6e/v7x and half the
    # resident weight VMEM.  Biases / LN params stay f32 (accumulation is f32).
    qkv_w = params["qkv_w"].astype(jnp.bfloat16)
    proj_w = params["proj_w"].astype(jnp.bfloat16)
    fc1_w = params["fc1_w"].astype(jnp.bfloat16)
    fc2_w = params["fc2_w"].astype(jnp.bfloat16)

    def full2d(a):
        return pl.BlockSpec(a.shape, lambda b: (0, 0))   # grid-invariant block

    in_specs = [
        pl.BlockSpec((bt, N, D), lambda b: (b, 0, 0)),   # x: bt batch elems / step
        full2d(params["ln1_w"]), full2d(params["ln1_b"]),
        full2d(qkv_w), full2d(params["qkv_b"]),
        full2d(proj_w), full2d(params["proj_b"]),
        full2d(params["ln2_w"]), full2d(params["ln2_b"]),
        full2d(fc1_w), full2d(params["fc1_b"]),
        full2d(fc2_w), full2d(params["fc2_b"]),
    ]
    out_spec = pl.BlockSpec((bt, N, D), lambda b: (b, 0, 0))

    kern = functools.partial(block_kernel, num_heads=num_heads, eps=eps)
    return pl.pallas_call(
        kern,
        out_shape=jax.ShapeDtypeStruct((B, N, D), x.dtype),
        grid_spec=pltpu.PrefetchScalarGridSpec(
            num_scalar_prefetch=0,
            grid=(B // bt,),
            in_specs=in_specs,
            out_specs=out_spec,
            scratch_shapes=[pltpu.VMEM((bt, N, D), jnp.bfloat16)],  # head outputs
        ),
        compiler_params=pltpu.CompilerParams(
            dimension_semantics=("parallel",),       # batch steps are independent
            vmem_limit_bytes=vmem_limit_bytes,
        ),
    )(x, params["ln1_w"], params["ln1_b"], qkv_w, params["qkv_b"],
      proj_w, params["proj_b"], params["ln2_w"], params["ln2_b"],
      fc1_w, params["fc1_b"], fc2_w, params["fc2_b"])


def vit_block_ref(x, params, *, num_heads, eps=1e-5):
    """Pure-JAX f32 reference matching the PyTorch forward semantics."""
    def ln(v, w, b):
        mu = v.mean(-1, keepdims=True)
        var = ((v - mu) ** 2).mean(-1, keepdims=True)
        return (v - mu) / jnp.sqrt(var + eps) * w + b

    B, N, D = x.shape
    dh = D // num_heads
    xn = ln(x, params["ln1_w"][0], params["ln1_b"][0])
    qkv = xn @ params["qkv_w"] + params["qkv_b"][0]
    qkv = qkv.reshape(B, N, 3, num_heads, dh).transpose(2, 0, 3, 1, 4)
    q, k, v = qkv[0], qkv[1], qkv[2]
    s = (q * dh ** -0.5) @ jnp.swapaxes(k, -1, -2)
    p = jax.nn.softmax(s, axis=-1)
    o = (p @ v).transpose(0, 2, 1, 3).reshape(B, N, D)
    o = o @ params["proj_w"] + params["proj_b"][0]
    x = x + o
    xn2 = ln(x, params["ln2_w"][0], params["ln2_b"][0])
    h = jax.nn.gelu(xn2 @ params["fc1_w"] + params["fc1_b"][0], approximate=False)
    return x + (h @ params["fc2_w"] + params["fc2_b"][0])


def init_params(key, dim, hidden):
    ks = jax.random.split(key, 8)
    s = 0.02
    return {
        "ln1_w": jnp.ones((1, dim), jnp.float32),
        "ln1_b": jnp.zeros((1, dim), jnp.float32),
        "qkv_w": s * jax.random.normal(ks[0], (dim, 3 * dim), jnp.float32),
        "qkv_b": s * jax.random.normal(ks[1], (1, 3 * dim), jnp.float32),
        "proj_w": s * jax.random.normal(ks[2], (dim, dim), jnp.float32),
        "proj_b": s * jax.random.normal(ks[3], (1, dim), jnp.float32),
        "ln2_w": jnp.ones((1, dim), jnp.float32),
        "ln2_b": jnp.zeros((1, dim), jnp.float32),
        "fc1_w": s * jax.random.normal(ks[4], (dim, hidden), jnp.float32),
        "fc1_b": s * jax.random.normal(ks[5], (1, hidden), jnp.float32),
        "fc2_w": s * jax.random.normal(ks[6], (hidden, dim), jnp.float32),
        "fc2_b": s * jax.random.normal(ks[7], (1, dim), jnp.float32),
    }


if __name__ == "__main__":
    # Small but lane-friendly shapes: D, 3D, hidden are multiples of 128.
    B, N, D = 2, 16, 256
    num_heads = 4                 # dh = 64 (realistic ViT head dim)
    mlp_ratio = 4.0
    hidden = int(D * mlp_ratio)   # 1024

    key = jax.random.PRNGKey(0)
    kx, kp = jax.random.split(key)
    x = jax.random.normal(kx, (B, N, D), jnp.float32)
    params = init_params(kp, D, hidden)

    out = vit_block(x, params, num_heads=num_heads)
    out = jax.block_until_ready(out)

    ref = vit_block_ref(x, params, num_heads=num_heads)
    assert out.shape == (B, N, D)
    # bf16 MXU inputs + approx reciprocal => loosened tolerance vs f32 reference.
    assert jnp.allclose(out, ref, atol=2e-2, rtol=2e-2), "mismatch vs reference"
    print("KERNEL_OK")
</pallas_src>

<mosaic_0001>
module attributes {stable_mosaic.version = 11 : i64} {
  func.func @block_kernel(%arg0: i32, %arg1: memref<2x16x256xf32, #tpu.memory_space<vmem>>, %arg2: memref<1x256xf32, #tpu.memory_space<vmem>>, %arg3: memref<1x256xf32, #tpu.memory_space<vmem>>, %arg4: memref<256x768xbf16, #tpu.memory_space<vmem>>, %arg5: memref<1x768xf32, #tpu.memory_space<vmem>>, %arg6: memref<256x256xbf16, #tpu.memory_space<vmem>>, %arg7: memref<1x256xf32, #tpu.memory_space<vmem>>, %arg8: memref<1x256xf32, #tpu.memory_space<vmem>>, %arg9: memref<1x256xf32, #tpu.memory_space<vmem>>, %arg10: memref<256x1024xbf16, #tpu.memory_space<vmem>>, %arg11: memref<1x1024xf32, #tpu.memory_space<vmem>>, %arg12: memref<1024x256xbf16, #tpu.memory_space<vmem>>, %arg13: memref<1x256xf32, #tpu.memory_space<vmem>>, %arg14: memref<2x16x256xf32, #tpu.memory_space<vmem>>, %arg15: memref<2x16x256xbf16, #tpu.memory_space<vmem>>) attributes {dimension_semantics = [#tpu.dimension_semantics<parallel>], iteration_bounds = array<i64: 1>, scalar_prefetch = 0 : i64, scratch_operands = 1 : i64, tpu.core_type = #tpu.core_type<tc>, window_params = [{transform_indices = @transform_0, window_bounds = array<i64: 2, 16, 256>}, {pipeline_mode = #tpu.pipeline_mode<synchronous>, transform_indices = @transform_1, window_bounds = array<i64: 1, 256>}, {pipeline_mode = #tpu.pipeline_mode<synchronous>, transform_indices = @transform_2, window_bounds = array<i64: 1, 256>}, {pipeline_mode = #tpu.pipeline_mode<synchronous>, transform_indices = @transform_3, window_bounds = array<i64: 256, 768>}, {pipeline_mode = #tpu.pipeline_mode<synchronous>, transform_indices = @transform_4, window_bounds = array<i64: 1, 768>}, {pipeline_mode = #tpu.pipeline_mode<synchronous>, transform_indices = @transform_5, window_bounds = array<i64: 256, 256>}, {pipeline_mode = #tpu.pipeline_mode<synchronous>, transform_indices = @transform_6, window_bounds = array<i64: 1, 256>}, {pipeline_mode = #tpu.pipeline_mode<synchronous>, transform_indices = @transform_7, window_bounds = array<i64: 1, 256>}, {pipeline_mode = #tpu.pipeline_mode<synchronous>, transform_indices = @transform_8, window_bounds = array<i64: 1, 256>}, {pipeline_mode = #tpu.pipeline_mode<synchronous>, transform_indices = @transform_9, window_bounds = array<i64: 256, 1024>}, {pipeline_mode = #tpu.pipeline_mode<synchronous>, transform_indices = @transform_10, window_bounds = array<i64: 1, 1024>}, {pipeline_mode = #tpu.pipeline_mode<synchronous>, transform_indices = @transform_11, window_bounds = array<i64: 1024, 256>}, {pipeline_mode = #tpu.pipeline_mode<synchronous>, transform_indices = @transform_12, window_bounds = array<i64: 1, 256>}, {transform_indices = @transform_13, window_bounds = array<i64: 2, 16, 256>}]} {
    %c0 = arith.constant 0 : index
    %c0_0 = arith.constant 0 : index
    %c0_1 = arith.constant 0 : index
    %0 = vector.load %arg1[%c0, %c0_0, %c0_1] : memref<2x16x256xf32, #tpu.memory_space<vmem>>, vector<2x16x256xf32>
    %1 = vector.shape_cast %0 : vector<2x16x256xf32> to vector<32x256xf32>
    %c0_2 = arith.constant 0 : index
    %c0_3 = arith.constant 0 : index
    %2 = vector.load %arg2[%c0_2, %c0_3] : memref<1x256xf32, #tpu.memory_space<vmem>>, vector<1x256xf32>
    %3 = vector.shape_cast %2 : vector<1x256xf32> to vector<256xf32>
    %c0_4 = arith.constant 0 : index
    %c0_5 = arith.constant 0 : index
    %4 = vector.load %arg3[%c0_4, %c0_5] : memref<1x256xf32, #tpu.memory_space<vmem>>, vector<1x256xf32>
    %5 = vector.shape_cast %4 : vector<1x256xf32> to vector<256xf32>
    %cst = arith.constant dense<0.000000e+00> : vector<32xf32>
    %6 = vector.multi_reduction <add>, %1, %cst [1] : vector<32x256xf32> to vector<32xf32>
    %7 = vector.shape_cast %6 : vector<32xf32> to vector<32x1xf32>
    %cst_6 = arith.constant 2.560000e+02 : f32
    %8 = vector.broadcast %cst_6 : f32 to vector<32x1xf32>
    %9 = arith.divf %7, %8 : vector<32x1xf32>
    %10 = vector.broadcast %9 : vector<32x1xf32> to vector<32x256xf32>
    %11 = arith.subf %1, %10 : vector<32x256xf32>
    %12 = arith.mulf %11, %11 : vector<32x256xf32>
    %cst_7 = arith.constant dense<0.000000e+00> : vector<32xf32>
    %13 = vector.multi_reduction <add>, %12, %cst_7 [1] : vector<32x256xf32> to vector<32xf32>
    %14 = vector.shape_cast %13 : vector<32xf32> to vector<32x1xf32>
    %cst_8 = arith.constant 2.560000e+02 : f32
    %15 = vector.broadcast %cst_8 : f32 to vector<32x1xf32>
    %16 = arith.divf %14, %15 : vector<32x1xf32>
    %17 = vector.broadcast %9 : vector<32x1xf32> to vector<32x256xf32>
    %18 = arith.subf %1, %17 : vector<32x256xf32>
    %cst_9 = arith.constant 9.99999974E-6 : f32
    %19 = vector.broadcast %cst_9 : f32 to vector<32x1xf32>
    %20 = arith.addf %16, %19 : vector<32x1xf32>
    %21 = math.rsqrt %20 : vector<32x1xf32>
    %22 = vector.broadcast %21 : vector<32x1xf32> to vector<32x256xf32>
    %23 = arith.mulf %18, %22 : vector<32x256xf32>
    %24 = vector.shape_cast %3 : vector<256xf32> to vector<1x256xf32>
    %25 = vector.broadcast %24 : vector<1x256xf32> to vector<32x256xf32>
    %26 = arith.mulf %23, %25 : vector<32x256xf32>
    %27 = vector.shape_cast %5 : vector<256xf32> to vector<1x256xf32>
    %28 = vector.broadcast %27 : vector<1x256xf32> to vector<32x256xf32>
    %29 = arith.addf %26, %28 : vector<32x256xf32>
    %30 = arith.truncf %29 : vector<32x256xf32> to vector<32x256xbf16>
    %c0_10 = arith.constant 0 : index
    %c0_11 = arith.constant 0 : index
    %31 = vector.load %arg4[%c0_10, %c0_11] : memref<256x768xbf16, #tpu.memory_space<vmem>>, vector<256x768xbf16>
    %cst_12 = arith.constant dense<0.000000e+00> : vector<32x768xf32>
    %32 = tpu.matmul %30, %31, %cst_12 {dimension_numbers = #tpu.dot_dimension_numbers<[1], [0], [0], [1], [0, 0, 1, 1], [], []>} : vector<32x256xbf16>, vector<256x768xbf16>, vector<32x768xf32> -> vector<32x768xf32>
    %c0_13 = arith.constant 0 : index
    %c0_14 = arith.constant 0 : index
    %33 = vector.load %arg5[%c0_13, %c0_14] : memref<1x768xf32, #tpu.memory_space<vmem>>, vector<1x768xf32>
    %34 = vector.shape_cast %33 : vector<1x768xf32> to vector<768xf32>
    %35 = vector.shape_cast %34 : vector<768xf32> to vector<1x768xf32>
    %36 = vector.broadcast %35 : vector<1x768xf32> to vector<32x768xf32>
    %37 = arith.addf %32, %36 : vector<32x768xf32>
    %38 = vector.extract_strided_slice %37 {offsets = [0, 0], sizes = [32, 256], strides = [1, 1]} : vector<32x768xf32> to vector<32x256xf32>
    %cst_15 = arith.constant 1.250000e-01 : f32
    %39 = vector.broadcast %cst_15 : f32 to vector<32x256xf32>
    %40 = arith.mulf %38, %39 : vector<32x256xf32>
    %41 = arith.truncf %40 : vector<32x256xf32> to vector<32x256xbf16>
    %42 = vector.extract_strided_slice %37 {offsets = [0, 256], sizes = [32, 256], strides = [1, 1]} : vector<32x768xf32> to vector<32x256xf32>
    %43 = arith.truncf %42 : vector<32x256xf32> to vector<32x256xbf16>
    %44 = vector.extract_strided_slice %37 {offsets = [0, 512], sizes = [32, 256], strides = [1, 1]} : vector<32x768xf32> to vector<32x256xf32>
    %45 = arith.truncf %44 : vector<32x256xf32> to vector<32x256xbf16>
    %46 = vector.extract_strided_slice %41 {offsets = [0, 0], sizes = [32, 64], strides = [1, 1]} : vector<32x256xbf16> to vector<32x64xbf16>
    %47 = vector.shape_cast %46 : vector<32x64xbf16> to vector<2x16x64xbf16>
    %48 = vector.extract_strided_slice %43 {offsets = [0, 0], sizes = [32, 64], strides = [1, 1]} : vector<32x256xbf16> to vector<32x64xbf16>
    %49 = vector.shape_cast %48 : vector<32x64xbf16> to vector<2x16x64xbf16>
    %50 = vector.extract_strided_slice %45 {offsets = [0, 0], sizes = [32, 64], strides = [1, 1]} : vector<32x256xbf16> to vector<32x64xbf16>
    %51 = vector.shape_cast %50 : vector<32x64xbf16> to vector<2x16x64xbf16>
    "tpu.trace_start"() <{level = 10 : i32, message = "bqd,bkd->bqk"}> : () -> ()
    %cst_16 = arith.constant dense<0.000000e+00> : vector<2x16x16xf32>
    %52 = tpu.matmul %47, %49, %cst_16 {dimension_numbers = #tpu.dot_dimension_numbers<[2], [2], [1], [1], [0, 0, 0, 1, 1, 1], [0], [0]>} : vector<2x16x64xbf16>, vector<2x16x64xbf16>, vector<2x16x16xf32> -> vector<2x16x16xf32>
    "tpu.trace_stop"() : () -> ()
    %cst_17 = arith.constant dense<0xFF800000> : vector<2x16xf32>
    %53 = vector.multi_reduction <maximumf>, %52, %cst_17 [2] : vector<2x16x16xf32> to vector<2x16xf32>
    %54 = vector.shape_cast %53 : vector<2x16xf32> to vector<2x16x1xf32>
    %55 = vector.broadcast %54 : vector<2x16x1xf32> to vector<2x16x16xf32>
    %56 = arith.subf %52, %55 : vector<2x16x16xf32>
    %57 = math.exp %56 : vector<2x16x16xf32>
    %cst_18 = arith.constant dense<0.000000e+00> : vector<2x16xf32>
    %58 = vector.multi_reduction <add>, %57, %cst_18 [2] : vector<2x16x16xf32> to vector<2x16xf32>
    %59 = vector.shape_cast %58 : vector<2x16xf32> to vector<2x16x1xf32>
    %60 = arith.truncf %57 : vector<2x16x16xf32> to vector<2x16x16xbf16>
    "tpu.trace_start"() <{level = 10 : i32, message = "bqk,bkd->bqd"}> : () -> ()
    %cst_19 = arith.constant dense<0.000000e+00> : vector<2x16x64xf32>
    %61 = tpu.matmul %60, %51, %cst_19 {dimension_numbers = #tpu.dot_dimension_numbers<[2], [1], [1], [2], [0, 0, 0, 1, 1, 2], [0], [0]>} : vector<2x16x16xbf16>, vector<2x16x64xbf16>, vector<2x16x64xf32> -> vector<2x16x64xf32>
    "tpu.trace_stop"() : () -> ()
    %62 = tpu.reciprocal %59 {approx = true} : vector<2x16x1xf32> -> vector<2x16x1xf32>
    %63 = vector.broadcast %62 : vector<2x16x1xf32> to vector<2x16x64xf32>
    %64 = arith.mulf %61, %63 : vector<2x16x64xf32>
    %65 = arith.truncf %64 : vector<2x16x64xf32> to vector<2x16x64xbf16>
    %c0_20 = arith.constant 0 : index
    %c0_21 = arith.constant 0 : index
    %c0_22 = arith.constant 0 : index
    %66 = vector.load %arg15[%c0_20, %c0_21, %c0_22] : memref<2x16x256xbf16, #tpu.memory_space<vmem>>, vector<2x16x64xbf16>
    tpu.vector_store %arg15[%c0_20, %c0_21, %c0_22], %65 {strides = array<i32>} : memref<2x16x256xbf16, #tpu.memory_space<vmem>>, vector<2x16x64xbf16>,
    %67 = vector.extract_strided_slice %41 {offsets = [0, 64], sizes = [32, 64], strides = [1, 1]} : vector<32x256xbf16> to vector<32x64xbf16>
    %68 = vector.shape_cast %67 : vector<32x64xbf16> to vector<2x16x64xbf16>
    %69 = vector.extract_strided_slice %43 {offsets = [0, 64], sizes = [32, 64], strides = [1, 1]} : vector<32x256xbf16> to vector<32x64xbf16>
    %70 = vector.shape_cast %69 : vector<32x64xbf16> to vector<2x16x64xbf16>
    %71 = vector.extract_strided_slice %45 {offsets = [0, 64], sizes = [32, 64], strides = [1, 1]} : vector<32x256xbf16> to vector<32x64xbf16>
    %72 = vector.shape_cast %71 : vector<32x64xbf16> to vector<2x16x64xbf16>
    "tpu.trace_start"() <{level = 10 : i32, message = "bqd,bkd->bqk"}> : () -> ()
    %cst_23 = arith.constant dense<0.000000e+00> : vector<2x16x16xf32>
    %73 = tpu.matmul %68, %70, %cst_23 {dimension_numbers = #tpu.dot_dimension_numbers<[2], [2], [1], [1], [0, 0, 0, 1, 1, 1], [0], [0]>} : vector<2x16x64xbf16>, vector<2x16x64xbf16>, vector<2x16x16xf32> -> vector<2x16x16xf32>
    "tpu.trace_stop"() : () -> ()
    %cst_24 = arith.constant dense<0xFF800000> : vector<2x16xf32>
    %74 = vector.multi_reduction <maximumf>, %73, %cst_24 [2] : vector<2x16x16xf32> to vector<2x16xf32>
    %75 = vector.shape_cast %74 : vector<2x16xf32> to vector<2x16x1xf32>
    %76 = vector.broadcast %75 : vector<2x16x1xf32> to vector<2x16x16xf32>
    %77 = arith.subf %73, %76 : vector<2x16x16xf32>
    %78 = math.exp %77 : vector<2x16x16xf32>
    %cst_25 = arith.constant dense<0.000000e+00> : vector<2x16xf32>
    %79 = vector.multi_reduction <add>, %78, %cst_25 [2] : vector<2x16x16xf32> to vector<2x16xf32>
    %80 = vector.shape_cast %79 : vector<2x16xf32> to vector<2x16x1xf32>
    %81 = arith.truncf %78 : vector<2x16x16xf32> to vector<2x16x16xbf16>
    "tpu.trace_start"() <{level = 10 : i32, message = "bqk,bkd->bqd"}> : () -> ()
    %cst_26 = arith.constant dense<0.000000e+00> : vector<2x16x64xf32>
    %82 = tpu.matmul %81, %72, %cst_26 {dimension_numbers = #tpu.dot_dimension_numbers<[2], [1], [1], [2], [0, 0, 0, 1, 1, 2], [0], [0]>} : vector<2x16x16xbf16>, vector<2x16x64xbf16>, vector<2x16x64xf32> -> vector<2x16x64xf32>
    "tpu.trace_stop"() : () -> ()
    %83 = tpu.reciprocal %80 {approx = true} : vector<2x16x1xf32> -> vector<2x16x1xf32>
    %84 = vector.broadcast %83 : vector<2x16x1xf32> to vector<2x16x64xf32>
    %85 = arith.mulf %82, %84 : vector<2x16x64xf32>
    %86 = arith.truncf %85 : vector<2x16x64xf32> to vector<2x16x64xbf16>
    %c0_27 = arith.constant 0 : index
    %c0_28 = arith.constant 0 : index
    %c64 = arith.constant 64 : index
    %87 = vector.load %arg15[%c0_27, %c0_28, %c64] : memref<2x16x256xbf16, #tpu.memory_space<vmem>>, vector<2x16x64xbf16>
    tpu.vector_store %arg15[%c0_27, %c0_28, %c64], %86 {strides = array<i32>} : memref<2x16x256xbf16, #tpu.memory_space<vmem>>, vector<2x16x64xbf16>,
    %88 = vector.extract_strided_slice %41 {offsets = [0, 128], sizes = [32, 64], strides = [1, 1]} : vector<32x256xbf16> to vector<32x64xbf16>
    %89 = vector.shape_cast %88 : vector<32x64xbf16> to vector<2x16x64xbf16>
    %90 = vector.extract_strided_slice %43 {offsets = [0, 128], sizes = [32, 64], strides = [1, 1]} : vector<32x256xbf16> to vector<32x64xbf16>
    %91 = vector.shape_cast %90 : vector<32x64xbf16> to vector<2x16x64xbf16>
    %92 = vector.extract_strided_slice %45 {offsets = [0, 128], sizes = [32, 64], strides = [1, 1]} : vector<32x256xbf16> to vector<32x64xbf16>
    %93 = vector.shape_cast %92 : vector<32x64xbf16> to vector<2x16x64xbf16>
    "tpu.trace_start"() <{level = 10 : i32, message = "bqd,bkd->bqk"}> : () -> ()
    %cst_29 = arith.constant dense<0.000000e+00> : vector<2x16x16xf32>
    %94 = tpu.matmul %89, %91, %cst_29 {dimension_numbers = #tpu.dot_dimension_numbers<[2], [2], [1], [1], [0, 0, 0, 1, 1, 1], [0], [0]>} : vector<2x16x64xbf16>, vector<2x16x64xbf16>, vector<2x16x16xf32> -> vector<2x16x16xf32>
    "tpu.trace_stop"() : () -> ()
    %cst_30 = arith.constant dense<0xFF800000> : vector<2x16xf32>
    %95 = vector.multi_reduction <maximumf>, %94, %cst_30 [2] : vector<2x16x16xf32> to vector<2x16xf32>
    %96 = vector.shape_cast %95 : vector<2x16xf32> to vector<2x16x1xf32>
    %97 = vector.broadcast %96 : vector<2x16x1xf32> to vector<2x16x16xf32>
    %98 = arith.subf %94, %97 : vector<2x16x16xf32>
    %99 = math.exp %98 : vector<2x16x16xf32>
    %cst_31 = arith.constant dense<0.000000e+00> : vector<2x16xf32>
    %100 = vector.multi_reduction <add>, %99, %cst_31 [2] : vector<2x16x16xf32> to vector<2x16xf32>
    %101 = vector.shape_cast %100 : vector<2x16xf32> to vector<2x16x1xf32>
    %102 = arith.truncf %99 : vector<2x16x16xf32> to vector<2x16x16xbf16>
    "tpu.trace_start"() <{level = 10 : i32, message = "bqk,bkd->bqd"}> : () -> ()
    %cst_32 = arith.constant dense<0.000000e+00> : vector<2x16x64xf32>
    %103 = tpu.matmul %102, %93, %cst_32 {dimension_numbers = #tpu.dot_dimension_numbers<[2], [1], [1], [2], [0, 0, 0, 1, 1, 2], [0], [0]>} : vector<2x16x16xbf16>, vector<2x16x64xbf16>, vector<2x16x64xf32> -> vector<2x16x64xf32>
    "tpu.trace_stop"() : () -> ()
    %104 = tpu.reciprocal %101 {approx = true} : vector<2x16x1xf32> -> vector<2x16x1xf32>
    %105 = vector.broadcast %104 : vector<2x16x1xf32> to vector<2x16x64xf32>
    %106 = arith.mulf %103, %105 : vector<2x16x64xf32>
    %107 = arith.truncf %106 : vector<2x16x64xf32> to vector<2x16x64xbf16>
    %c0_33 = arith.constant 0 : index
    %c0_34 = arith.constant 0 : index
    %c128 = arith.constant 128 : index
    %108 = vector.load %arg15[%c0_33, %c0_34, %c128] : memref<2x16x256xbf16, #tpu.memory_space<vmem>>, vector<2x16x64xbf16>
    tpu.vector_store %arg15[%c0_33, %c0_34, %c128], %107 {strides = array<i32>} : memref<2x16x256xbf16, #tpu.memory_space<vmem>>, vector<2x16x64xbf16>,
    %109 = vector.extract_strided_slice %41 {offsets = [0, 192], sizes = [32, 64], strides = [1, 1]} : vector<32x256xbf16> to vector<32x64xbf16>
    %110 = vector.shape_cast %109 : vector<32x64xbf16> to vector<2x16x64xbf16>
    %111 = vector.extract_strided_slice %43 {offsets = [0, 192], sizes = [32, 64], strides = [1, 1]} : vector<32x256xbf16> to vector<32x64xbf16>
    %112 = vector.shape_cast %111 : vector<32x64xbf16> to vector<2x16x64xbf16>
    %113 = vector.extract_strided_slice %45 {offsets = [0, 192], sizes = [32, 64], strides = [1, 1]} : vector<32x256xbf16> to vector<32x64xbf16>
    %114 = vector.shape_cast %113 : vector<32x64xbf16> to vector<2x16x64xbf16>
    "tpu.trace_start"() <{level = 10 : i32, message = "bqd,bkd->bqk"}> : () -> ()
    %cst_35 = arith.constant dense<0.000000e+00> : vector<2x16x16xf32>
    %115 = tpu.matmul %110, %112, %cst_35 {dimension_numbers = #tpu.dot_dimension_numbers<[2], [2], [1], [1], [0, 0, 0, 1, 1, 1], [0], [0]>} : vector<2x16x64xbf16>, vector<2x16x64xbf16>, vector<2x16x16xf32> -> vector<2x16x16xf32>
    "tpu.trace_stop"() : () -> ()
    %cst_36 = arith.constant dense<0xFF800000> : vector<2x16xf32>
    %116 = vector.multi_reduction <maximumf>, %115, %cst_36 [2] : vector<2x16x16xf32> to vector<2x16xf32>
    %117 = vector.shape_cast %116 : vector<2x16xf32> to vector<2x16x1xf32>
    %118 = vector.broadcast %117 : vector<2x16x1xf32> to vector<2x16x16xf32>
    %119 = arith.subf %115, %118 : vector<2x16x16xf32>
    %120 = math.exp %119 : vector<2x16x16xf32>
    %cst_37 = arith.constant dense<0.000000e+00> : vector<2x16xf32>
    %121 = vector.multi_reduction <add>, %120, %cst_37 [2] : vector<2x16x16xf32> to vector<2x16xf32>
    %122 = vector.shape_cast %121 : vector<2x16xf32> to vector<2x16x1xf32>
    %123 = arith.truncf %120 : vector<2x16x16xf32> to vector<2x16x16xbf16>
    "tpu.trace_start"() <{level = 10 : i32, message = "bqk,bkd->bqd"}> : () -> ()
    %cst_38 = arith.constant dense<0.000000e+00> : vector<2x16x64xf32>
    %124 = tpu.matmul %123, %114, %cst_38 {dimension_numbers = #tpu.dot_dimension_numbers<[2], [1], [1], [2], [0, 0, 0, 1, 1, 2], [0], [0]>} : vector<2x16x16xbf16>, vector<2x16x64xbf16>, vector<2x16x64xf32> -> vector<2x16x64xf32>
    "tpu.trace_stop"() : () -> ()
    %125 = tpu.reciprocal %122 {approx = true} : vector<2x16x1xf32> -> vector<2x16x1xf32>
    %126 = vector.broadcast %125 : vector<2x16x1xf32> to vector<2x16x64xf32>
    %127 = arith.mulf %124, %126 : vector<2x16x64xf32>
    %128 = arith.truncf %127 : vector<2x16x64xf32> to vector<2x16x64xbf16>
    %c0_39 = arith.constant 0 : index
    %c0_40 = arith.constant 0 : index
    %c192 = arith.constant 192 : index
    %129 = vector.load %arg15[%c0_39, %c0_40, %c192] : memref<2x16x256xbf16, #tpu.memory_space<vmem>>, vector<2x16x64xbf16>
    tpu.vector_store %arg15[%c0_39, %c0_40, %c192], %128 {strides = array<i32>} : memref<2x16x256xbf16, #tpu.memory_space<vmem>>, vector<2x16x64xbf16>,
    %c0_41 = arith.constant 0 : index
    %c0_42 = arith.constant 0 : index
    %c0_43 = arith.constant 0 : index
    %130 = vector.load %arg15[%c0_41, %c0_42, %c0_43] : memref<2x16x256xbf16, #tpu.memory_space<vmem>>, vector<2x16x256xbf16>
    %131 = vector.shape_cast %130 : vector<2x16x256xbf16> to vector<32x256xbf16>
    %c0_44 = arith.constant 0 : index
    %c0_45 = arith.constant 0 : index
    %132 = vector.load %arg6[%c0_44, %c0_45] : memref<256x256xbf16, #tpu.memory_space<vmem>>, vector<256x256xbf16>
    %cst_46 = arith.constant dense<0.000000e+00> : vector<32x256xf32>
    %133 = tpu.matmul %131, %132, %cst_46 {dimension_numbers = #tpu.dot_dimension_numbers<[1], [0], [0], [1], [0, 0, 1, 1], [], []>} : vector<32x256xbf16>, vector<256x256xbf16>, vector<32x256xf32> -> vector<32x256xf32>
    %c0_47 = arith.constant 0 : index
    %c0_48 = arith.constant 0 : index
    %134 = vector.load %arg7[%c0_47, %c0_48] : memref<1x256xf32, #tpu.memory_space<vmem>>, vector<1x256xf32>
    %135 = vector.shape_cast %134 : vector<1x256xf32> to vector<256xf32>
    %136 = vector.shape_cast %135 : vector<256xf32> to vector<1x256xf32>
    %137 = vector.broadcast %136 : vector<1x256xf32> to vector<32x256xf32>
    %138 = arith.addf %133, %137 : vector<32x256xf32>
    %139 = arith.addf %1, %138 : vector<32x256xf32>
    %c0_49 = arith.constant 0 : index
    %c0_50 = arith.constant 0 : index
    %140 = vector.load %arg8[%c0_49, %c0_50] : memref<1x256xf32, #tpu.memory_space<vmem>>, vector<1x256xf32>
    %141 = vector.shape_cast %140 : vector<1x256xf32> to vector<256xf32>
    %c0_51 = arith.constant 0 : index
    %c0_52 = arith.constant 0 : index
    %142 = vector.load %arg9[%c0_51, %c0_52] : memref<1x256xf32, #tpu.memory_space<vmem>>, vector<1x256xf32>
    %143 = vector.shape_cast %142 : vector<1x256xf32> to vector<256xf32>
    %cst_53 = arith.constant dense<0.000000e+00> : vector<32xf32>
    %144 = vector.multi_reduction <add>, %139, %cst_53 [1] : vector<32x256xf32> to vector<32xf32>
    %145 = vector.shape_cast %144 : vector<32xf32> to vector<32x1xf32>
    %cst_54 = arith.constant 2.560000e+02 : f32
    %146 = vector.broadcast %cst_54 : f32 to vector<32x1xf32>
    %147 = arith.divf %145, %146 : vector<32x1xf32>
    %148 = vector.broadcast %147 : vector<32x1xf32> to vector<32x256xf32>
    %149 = arith.subf %139, %148 : vector<32x256xf32>
    %150 = arith.mulf %149, %149 : vector<32x256xf32>
    %cst_55 = arith.constant dense<0.000000e+00> : vector<32xf32>
    %151 = vector.multi_reduction <add>, %150, %cst_55 [1] : vector<32x256xf32> to vector<32xf32>
    %152 = vector.shape_cast %151 : vector<32xf32> to vector<32x1xf32>
    %cst_56 = arith.constant 2.560000e+02 : f32
    %153 = vector.broadcast %cst_56 : f32 to vector<32x1xf32>
    %154 = arith.divf %152, %153 : vector<32x1xf32>
    %155 = vector.broadcast %147 : vector<32x1xf32> to vector<32x256xf32>
    %156 = arith.subf %139, %155 : vector<32x256xf32>
    %cst_57 = arith.constant 9.99999974E-6 : f32
    %157 = vector.broadcast %cst_57 : f32 to vector<32x1xf32>
    %158 = arith.addf %154, %157 : vector<32x1xf32>
    %159 = math.rsqrt %158 : vector<32x1xf32>
    %160 = vector.broadcast %159 : vector<32x1xf32> to vector<32x256xf32>
    %161 = arith.mulf %156, %160 : vector<32x256xf32>
    %162 = vector.shape_cast %141 : vector<256xf32> to vector<1x256xf32>
    %163 = vector.broadcast %162 : vector<1x256xf32> to vector<32x256xf32>
    %164 = arith.mulf %161, %163 : vector<32x256xf32>
    %165 = vector.shape_cast %143 : vector<256xf32> to vector<1x256xf32>
    %166 = vector.broadcast %165 : vector<1x256xf32> to vector<32x256xf32>
    %167 = arith.addf %164, %166 : vector<32x256xf32>
    %168 = arith.truncf %167 : vector<32x256xf32> to vector<32x256xbf16>
    %c0_58 = arith.constant 0 : index
    %c0_59 = arith.constant 0 : index
    %169 = vector.load %arg10[%c0_58, %c0_59] : memref<256x1024xbf16, #tpu.memory_space<vmem>>, vector<256x1024xbf16>
    %cst_60 = arith.constant dense<0.000000e+00> : vector<32x1024xf32>
    %170 = tpu.matmul %168, %169, %cst_60 {dimension_numbers = #tpu.dot_dimension_numbers<[1], [0], [0], [1], [0, 0, 1, 1], [], []>} : vector<32x256xbf16>, vector<256x1024xbf16>, vector<32x1024xf32> -> vector<32x1024xf32>
    %c0_61 = arith.constant 0 : index
    %c0_62 = arith.constant 0 : index
    %171 = vector.load %arg11[%c0_61, %c0_62] : memref<1x1024xf32, #tpu.memory_space<vmem>>, vector<1x1024xf32>
    %172 = vector.shape_cast %171 : vector<1x1024xf32> to vector<1024xf32>
    %173 = vector.shape_cast %172 : vector<1024xf32> to vector<1x1024xf32>
    %174 = vector.broadcast %173 : vector<1x1024xf32> to vector<32x1024xf32>
    %175 = arith.addf %170, %174 : vector<32x1024xf32>
    %cst_63 = arith.constant 5.000000e-01 : f32
    %176 = vector.broadcast %cst_63 : f32 to vector<32x1024xf32>
    %177 = arith.mulf %176, %175 : vector<32x1024xf32>
    %cst_64 = arith.constant 0.707106769 : f32
    %178 = vector.broadcast %cst_64 : f32 to vector<32x1024xf32>
    %179 = arith.mulf %175, %178 : vector<32x1024xf32>
    %180 = math.erf %179 : vector<32x1024xf32>
    %cst_65 = arith.constant 1.000000e+00 : f32
    %181 = vector.broadcast %cst_65 : f32 to vector<32x1024xf32>
    %182 = arith.addf %181, %180 : vector<32x1024xf32>
    %183 = arith.mulf %177, %182 : vector<32x1024xf32>
    %184 = arith.truncf %183 : vector<32x1024xf32> to vector<32x1024xbf16>
    %c0_66 = arith.constant 0 : index
    %c0_67 = arith.constant 0 : index
    %185 = vector.load %arg12[%c0_66, %c0_67] : memref<1024x256xbf16, #tpu.memory_space<vmem>>, vector<1024x256xbf16>
    %cst_68 = arith.constant dense<0.000000e+00> : vector<32x256xf32>
    %186 = tpu.matmul %184, %185, %cst_68 {dimension_numbers = #tpu.dot_dimension_numbers<[1], [0], [0], [1], [0, 0, 1, 1], [], []>} : vector<32x1024xbf16>, vector<1024x256xbf16>, vector<32x256xf32> -> vector<32x256xf32>
    %c0_69 = arith.constant 0 : index
    %c0_70 = arith.constant 0 : index
    %187 = vector.load %arg13[%c0_69, %c0_70] : memref<1x256xf32, #tpu.memory_space<vmem>>, vector<1x256xf32>
    %188 = vector.shape_cast %187 : vector<1x256xf32> to vector<256xf32>
    %189 = vector.shape_cast %188 : vector<256xf32> to vector<1x256xf32>
    %190 = vector.broadcast %189 : vector<1x256xf32> to vector<32x256xf32>
    %191 = arith.addf %186, %190 : vector<32x256xf32>
    %192 = arith.addf %139, %191 : vector<32x256xf32>
    %193 = vector.shape_cast %192 : vector<32x256xf32> to vector<2x16x256xf32>
    %c0_71 = arith.constant 0 : index
    %c0_72 = arith.constant 0 : index
    %c0_73 = arith.constant 0 : index
    %194 = vector.load %arg14[%c0_71, %c0_72, %c0_73] : memref<2x16x256xf32, #tpu.memory_space<vmem>>, vector<2x16x256xf32>
    tpu.vector_store %arg14[%c0_71, %c0_72, %c0_73], %193 {strides = array<i32>} : memref<2x16x256xf32, #tpu.memory_space<vmem>>, vector<2x16x256xf32>,
    return
  }
  func.func @transform_0(%arg0: i32) -> (i32, i32, i32) {
    %c0_i32 = arith.constant 0 : i32
    %c0_i32_0 = arith.constant 0 : i32
    %c0_i32_1 = arith.constant 0 : i32
    return %arg0, %c0_i32, %c0_i32_0 : i32, i32, i32
  }
  func.func @transform_1(%arg0: i32) -> (i32, i32) {
    %c0_i32 = arith.constant 0 : i32
    %c0_i32_0 = arith.constant 0 : i32
    %c0_i32_1 = arith.constant 0 : i32
    return %c0_i32, %c0_i32_0 : i32, i32
  }
  func.func @transform_2(%arg0: i32) -> (i32, i32) {
    %c0_i32 = arith.constant 0 : i32
    %c0_i32_0 = arith.constant 0 : i32
    %c0_i32_1 = arith.constant 0 : i32
    return %c0_i32, %c0_i32_0 : i32, i32
  }
  func.func @transform_3(%arg0: i32) -> (i32, i32) {
    %c0_i32 = arith.constant 0 : i32
    %c0_i32_0 = arith.constant 0 : i32
    %c0_i32_1 = arith.constant 0 : i32
    return %c0_i32, %c0_i32_0 : i32, i32
  }
  func.func @transform_4(%arg0: i32) -> (i32, i32) {
    %c0_i32 = arith.constant 0 : i32
    %c0_i32_0 = arith.constant 0 : i32
    %c0_i32_1 = arith.constant 0 : i32
    return %c0_i32, %c0_i32_0 : i32, i32
  }
  func.func @transform_5(%arg0: i32) -> (i32, i32) {
    %c0_i32 = arith.constant 0 : i32
    %c0_i32_0 = arith.constant 0 : i32
    %c0_i32_1 = arith.constant 0 : i32
    return %c0_i32, %c0_i32_0 : i32, i32
  }
  func.func @transform_6(%arg0: i32) -> (i32, i32) {
    %c0_i32 = arith.constant 0 : i32
    %c0_i32_0 = arith.constant 0 : i32
    %c0_i32_1 = arith.constant 0 : i32
    return %c0_i32, %c0_i32_0 : i32, i32
  }
  func.func @transform_7(%arg0: i32) -> (i32, i32) {
    %c0_i32 = arith.constant 0 : i32
    %c0_i32_0 = arith.constant 0 : i32
    %c0_i32_1 = arith.constant 0 : i32
    return %c0_i32, %c0_i32_0 : i32, i32
  }
  func.func @transform_8(%arg0: i32) -> (i32, i32) {
    %c0_i32 = arith.constant 0 : i32
    %c0_i32_0 = arith.constant 0 : i32
    %c0_i32_1 = arith.constant 0 : i32
    return %c0_i32, %c0_i32_0 : i32, i32
  }
  func.func @transform_9(%arg0: i32) -> (i32, i32) {
    %c0_i32 = arith.constant 0 : i32
    %c0_i32_0 = arith.constant 0 : i32
    %c0_i32_1 = arith.constant 0 : i32
    return %c0_i32, %c0_i32_0 : i32, i32
  }
  func.func @transform_10(%arg0: i32) -> (i32, i32) {
    %c0_i32 = arith.constant 0 : i32
    %c0_i32_0 = arith.constant 0 : i32
    %c0_i32_1 = arith.constant 0 : i32
    return %c0_i32, %c0_i32_0 : i32, i32
  }
  func.func @transform_11(%arg0: i32) -> (i32, i32) {
    %c0_i32 = arith.constant 0 : i32
    %c0_i32_0 = arith.constant 0 : i32
    %c0_i32_1 = arith.constant 0 : i32
    return %c0_i32, %c0_i32_0 : i32, i32
  }
  func.func @transform_12(%arg0: i32) -> (i32, i32) {
    %c0_i32 = arith.constant 0 : i32
    %c0_i32_0 = arith.constant 0 : i32
    %c0_i32_1 = arith.constant 0 : i32
    return %c0_i32, %c0_i32_0 : i32, i32
  }
  func.func @transform_13(%arg0: i32) -> (i32, i32, i32) {
    %c0_i32 = arith.constant 0 : i32
    %c0_i32_0 = arith.constant 0 : i32
    %c0_i32_1 = arith.constant 0 : i32
    return %arg0, %c0_i32, %c0_i32_0 : i32, i32, i32
  }
}

</mosaic_0001>

<llo_original>
// kernel: tpu_custom_call.1
$region0: #{tpu_custom_call.1}
  #allocation0 [shape = 'u32[]', space=smem, size = 0x4, offset = 0x4, fixed_abs, tag = 'smem constant byte address 0x4 - core index']
  #allocation1 [shape = 'u32[144,128]{1,0:T(1,128)}', space=vmem, size = 0x12000, scoped, tag = 'internal scratch']
  #allocation2 [shape = 'bf16[2,16,256]{2,1,0:T(8,128)(2,1)}', space=vmem, size = 0x4000, scoped, tag = 'scratch operand']
  %s0 = inlined_call_operand.hbm [shape: f32[2,16,256], index: 0, kind: input, shape index: {}]
  %s1 = inlined_call_operand.hbm [shape: f32[1,256], index: 1, kind: input, shape index: {}]
  %s2 = inlined_call_operand.hbm [shape: f32[1,256], index: 2, kind: input, shape index: {}]
  %s3 = inlined_call_operand.hbm [shape: bf16[256,768], index: 3, kind: input, shape index: {}]
  %s4 = inlined_call_operand.vmem [shape: f32[1,768], index: 4, kind: input, shape index: {}]
  %s5 = inlined_call_operand.hbm [shape: bf16[256,256], index: 5, kind: input, shape index: {}]
  %s6 = inlined_call_operand.vmem [shape: f32[1,256], index: 6, kind: input, shape index: {}]
  %s7 = inlined_call_operand.hbm [shape: f32[1,256], index: 7, kind: input, shape index: {}]
  %s8 = inlined_call_operand.hbm [shape: f32[1,256], index: 8, kind: input, shape index: {}]
  %s9 = inlined_call_operand.hbm [shape: bf16[256,1024], index: 9, kind: input, shape index: {}]
  %s10 = inlined_call_operand.vmem [shape: f32[1,1024], index: 10, kind: input, shape index: {}]
  %s11 = inlined_call_operand.hbm [shape: bf16[1024,256], index: 11, kind: input, shape index: {}]
  %s12 = inlined_call_operand.vmem [shape: f32[1,256], index: 12, kind: input, shape index: {}]
  %s13 = inlined_call_operand.hbm [shape: f32[2,16,256], index: 13, kind: output, shape index: {}]
  %s14 = sld [smem:[#allocation0]]
  $region98: #{tpu_custom_call.1} parent=0
    _
  %s16 = ssub.s32 1, %s14
  %s17 = scalar_select 0, %s16, %s14
  $region1: #{tpu_custom_call.1} parent=0
    #allocation3 [shape = 'u8[32768]{0}', space=vmem, size = 0x8000, scoped, tag = 'input window, operand 0, single buffered']
    #allocation4 [shape = 's32[1]{0}', space=sflag, size = 0x4, scoped, tag = 'scoped memory for tpu_custom_call.1']
    #allocation5 [shape = 's32[1]{0}', space=sflag, size = 0x4, scoped, tag = 'scoped memory for tpu_custom_call.1']
    #allocation6 [shape = 'u8[1024]{0}', space=vmem, size = 0x400, scoped, tag = 'input window, operand 1, single buffered']
    #allocation7 [shape = 's32[1]{0}', space=sflag, size = 0x4, scoped, tag = 'scoped memory for tpu_custom_call.1']
    #allocation8 [shape = 'u8[1024]{0}', space=vmem, size = 0x400, scoped, tag = 'input window, operand 2, single buffered']
    #allocation9 [shape = 'u8[393216]{0}', space=vmem, size = 0x60000, scoped, tag = 'input window, operand 3, single buffered']
    #allocation10 [shape = 's32[1]{0}', space=sflag, size = 0x4, scoped, tag = 'scoped memory for tpu_custom_call.1']
    #allocation11 [shape = 'u8[131072]{0}', space=vmem, size = 0x20000, scoped, tag = 'input window, operand 5, single buffered']
    #allocation12 [shape = 'u8[1024]{0}', space=vmem, size = 0x400, scoped, tag = 'input window, operand 7, single buffered']
    #allocation13 [shape = 's32[1]{0}', space=sflag, size = 0x4, scoped, tag = 'scoped memory for tpu_custom_call.1']
    #allocation14 [shape = 'u8[1024]{0}', space=vmem, size = 0x400, scoped, tag = 'input window, operand 8, single buffered']
    #allocation15 [shape = 'u8[524288]{0}', space=vmem, size = 0x80000, scoped, tag = 'input window, operand 9, single buffered']
    #allocation16 [shape = 's32[1]{0}', space=sflag, size = 0x4, scoped, tag = 'scoped memory for tpu_custom_call.1']
    #allocation17 [shape = 'u8[524288]{0}', space=vmem, size = 0x80000, scoped, tag = 'input window, operand 11, single buffered']
    #allocation18 [shape = 'u8[32768]{0}', space=vmem, size = 0x8000, scoped, tag = 'output window, operand 0, single buffered']
    %18 = vsyncpa [#allocation4], 0
    %19 = vsyncpa [#allocation7], 0
    %20 = vsyncpa [#allocation10], 0
    %21 = vsyncpa [#allocation13], 0
    %22 = vsyncpa [#allocation16], 0
    %23 = vsyncpa [#allocation5], 0
    // Predicated region
    $region2: #{tpu_custom_call.1} parent=1 // pred_check
      _
    $region3: #{tpu_custom_call.1} parent=1 // pred_check_branch
      %25 = sbr.rel (0) target = $region5
    $region4: #{tpu_custom_call.1} parent=1 // pred_region
      %s27 = ssub.s32 1024, 1024
      %28 = vsyncadd [#allocation4], %s27
      %s29 = sshll.u32 [#allocation3], 4
      %s30 = int_to_ptr.vmem [resolvable:$true] %s29
      %35 = dma.hbm_to_vmem [thread:$0]  %s0, 1024, %s30, [#allocation4], 256, 256, 16
    $region5: #{tpu_custom_call.1} parent=1 // pred_fallthru
      _
    // Predicated region
    $region6: #{tpu_custom_call.1} parent=1 // pred_check
      _
    $region7: #{tpu_custom_call.1} parent=1 // pred_check_branch
      %37 = sbr.rel (0) target = $region9
    $region8: #{tpu_custom_call.1} parent=1 // pred_region
      %s39 = ssub.s32 32, 32
      %40 = vsyncadd [#allocation7], %s39
      %s42 = sshll.u32 [#allocation6], 4
      %s43 = int_to_ptr.vmem [resolvable:$true] %s42
      %45 = dma.hbm_to_vmem [thread:$0]  %s1, 32, %s43, [#allocation7]
    $region9: #{tpu_custom_call.1} parent=1 // pred_fallthru
      _
    // Predicated region
    $region10: #{tpu_custom_call.1} parent=1 // pred_check
      _
    $region11: #{tpu_custom_call.1} parent=1 // pred_check_branch
      %47 = sbr.rel (0) target = $region13
    $region12: #{tpu_custom_call.1} parent=1 // pred_region
      %s49 = ssub.s32 32, 32
      %50 = vsyncadd [#allocation7], %s49
      %s52 = sshll.u32 [#allocation8], 4
      %s53 = int_to_ptr.vmem [resolvable:$true] %s52
      %55 = dma.hbm_to_vmem [thread:$0]  %s2, 32, %s53, [#allocation7]
    $region13: #{tpu_custom_call.1} parent=1 // pred_fallthru
      _
    // Predicated region
    $region14: #{tpu_custom_call.1} parent=1 // pred_check
      _
    $region15: #{tpu_custom_call.1} parent=1 // pred_check_branch
      %57 = sbr.rel (0) target = $region17
    $region16: #{tpu_custom_call.1} parent=1 // pred_region
      %s59 = ssub.s32 12288, 12288
      %60 = vsyncadd [#allocation10], %s59
      %s61 = sshll.u32 [#allocation9], 4
      %s62 = int_to_ptr.vmem [resolvable:$true] %s61
      %67 = dma.hbm_to_vmem [thread:$0]  %s3, 12288, %s62, [#allocation10], 384, 384, 24
    $region17: #{tpu_custom_call.1} parent=1 // pred_fallthru
      _
    // Predicated region
    $region18: #{tpu_custom_call.1} parent=1 // pred_check
      _
    $region19: #{tpu_custom_call.1} parent=1 // pred_check_branch
      %69 = sbr.rel (0) target = $region21
    $region20: #{tpu_custom_call.1} parent=1 // pred_region
      _
    $region21: #{tpu_custom_call.1} parent=1 // pred_fallthru
      _
    // Predicated region
    $region22: #{tpu_custom_call.1} parent=1 // pred_check
      _
    $region23: #{tpu_custom_call.1} parent=1 // pred_check_branch
      %71 = sbr.rel (0) target = $region25
    $region24: #{tpu_custom_call.1} parent=1 // pred_region
      %s73 = ssub.s32 4096, 4096
      %74 = vsyncadd [#allocation10], %s73
      %s75 = sshll.u32 [#allocation11], 4
      %s76 = int_to_ptr.vmem [resolvable:$true] %s75
      %81 = dma.hbm_to_vmem [thread:$0]  %s5, 4096, %s76, [#allocation10], 128, 128, 8
    $region25: #{tpu_custom_call.1} parent=1 // pred_fallthru
      _
    // Predicated region
    $region26: #{tpu_custom_call.1} parent=1 // pred_check
      _
    $region27: #{tpu_custom_call.1} parent=1 // pred_check_branch
      %83 = sbr.rel (0) target = $region29
    $region28: #{tpu_custom_call.1} parent=1 // pred_region
      _
    $region29: #{tpu_custom_call.1} parent=1 // pred_fallthru
      _
    // Predicated region
    $region30: #{tpu_custom_call.1} parent=1 // pred_check
      _
    $region31: #{tpu_custom_call.1} parent=1 // pred_check_branch
      %85 = sbr.rel (0) target = $region33
    $region32: #{tpu_custom_call.1} parent=1 // pred_region
      %s87 = ssub.s32 32, 32
      %88 = vsyncadd [#allocation13], %s87
      %s90 = sshll.u32 [#allocation12], 4
      %s91 = int_to_ptr.vmem [resolvable:$true] %s90
      %93 = dma.hbm_to_vmem [thread:$0]  %s7, 32, %s91, [#allocation13]
    $region33: #{tpu_custom_call.1} parent=1 // pred_fallthru
      _
    // Predicated region
    $region34: #{tpu_custom_call.1} parent=1 // pred_check
      _
    $region35: #{tpu_custom_call.1} parent=1 // pred_check_branch
      %95 = sbr.rel (0) target = $region37
    $region36: #{tpu_custom_call.1} parent=1 // pred_region
      %s97 = ssub.s32 32, 32
      %98 = vsyncadd [#allocation13], %s97
      %s100 = sshll.u32 [#allocation14], 4
      %s101 = int_to_ptr.vmem [resolvable:$true] %s100
      %103 = dma.hbm_to_vmem [thread:$0]  %s8, 32, %s101, [#allocation13]
    $region37: #{tpu_custom_call.1} parent=1 // pred_fallthru
      _
    // Predicated region
    $region38: #{tpu_custom_call.1} parent=1 // pred_check
      _
    $region39: #{tpu_custom_call.1} parent=1 // pred_check_branch
      %105 = sbr.rel (0) target = $region41
    $region40: #{tpu_custom_call.1} parent=1 // pred_region
      %s107 = ssub.s32 16384, 16384
      %108 = vsyncadd [#allocation16], %s107
      %s109 = sshll.u32 [#allocation15], 4
      %s110 = int_to_ptr.vmem [resolvable:$true] %s109
      %115 = dma.hbm_to_vmem [thread:$0]  %s9, 16384, %s110, [#allocation16], 512, 512, 32
    $region41: #{tpu_custom_call.1} parent=1 // pred_fallthru
      _
    // Predicated region
    $region42: #{tpu_custom_call.1} parent=1 // pred_check
      _
    $region43: #{tpu_custom_call.1} parent=1 // pred_check_branch
      %117 = sbr.rel (0) target = $region45
    $region44: #{tpu_custom_call.1} parent=1 // pred_region
      _
    $region45: #{tpu_custom_call.1} parent=1 // pred_fallthru
      _
    // Predicated region
    $region46: #{tpu_custom_call.1} parent=1 // pred_check
      _
    $region47: #{tpu_custom_call.1} parent=1 // pred_check_branch
      %119 = sbr.rel (0) target = $region49
    $region48: #{tpu_custom_call.1} parent=1 // pred_region
      %s121 = ssub.s32 16384, 16384
      %122 = vsyncadd [#allocation16], %s121
      %s123 = sshll.u32 [#allocation17], 4
      %s124 = int_to_ptr.vmem [resolvable:$true] %s123
      %129 = dma.hbm_to_vmem [thread:$0]  %s11, 16384, %s124, [#allocation16], 128, 128, 8
    $region49: #{tpu_custom_call.1} parent=1 // pred_fallthru
      _
    // Predicated region
    $region50: #{tpu_custom_call.1} parent=1 // pred_check
      _
    $region51: #{tpu_custom_call.1} parent=1 // pred_check_branch
      %131 = sbr.rel (0) target = $region53
    $region52: #{tpu_custom_call.1} parent=1 // pred_region
      _
    $region53: #{tpu_custom_call.1} parent=1 // pred_fallthru
      _
    // Predicated region
    $region54: #{tpu_custom_call.1} parent=1 // pred_check
      _
    $region55: #{tpu_custom_call.1} parent=1 // pred_check_branch
      %133 = sbr.rel (0) target = $region57
    $region56: #{tpu_custom_call.1} parent=1 // pred_region
      %134 = dma.done [#allocation4], 1024
    $region57: #{tpu_custom_call.1} parent=1 // pred_fallthru
      _
    // Predicated region
    $region58: #{tpu_custom_call.1} parent=1 // pred_check
      _
    $region59: #{tpu_custom_call.1} parent=1 // pred_check_branch
      %136 = sbr.rel (0) target = $region61
    $region60: #{tpu_custom_call.1} parent=1 // pred_region
      %137 = dma.done [#allocation7], 32
    $region61: #{tpu_custom_call.1} parent=1 // pred_fallthru
      _
    // Predicated region
    $region62: #{tpu_custom_call.1} parent=1 // pred_check
      _
    $region63: #{tpu_custom_call.1} parent=1 // pred_check_branch
      %139 = sbr.rel (0) target = $region65
    $region64: #{tpu_custom_call.1} parent=1 // pred_region
      %140 = dma.done [#allocation7], 32
    $region65: #{tpu_custom_call.1} parent=1 // pred_fallthru
      _
    // Predicated region
    $region66: #{tpu_custom_call.1} parent=1 // pred_check
      _
    $region67: #{tpu_custom_call.1} parent=1 // pred_check_branch
      %142 = sbr.rel (0) target = $region69
    $region68: #{tpu_custom_call.1} parent=1 // pred_region
      %143 = dma.done [#allocation10], 12288
    $region69: #{tpu_custom_call.1} parent=1 // pred_fallthru
      _
    // Predicated region
    $region70: #{tpu_custom_call.1} parent=1 // pred_check
      _
    $region71: #{tpu_custom_call.1} parent=1 // pred_check_branch
      %145 = sbr.rel (0) target = $region73
    $region72: #{tpu_custom_call.1} parent=1 // pred_region
      %146 = dma.done [#allocation10], 4096
    $region73: #{tpu_custom_call.1} parent=1 // pred_fallthru
      _
    // Predicated region
    $region74: #{tpu_custom_call.1} parent=1 // pred_check
      _
    $region75: #{tpu_custom_call.1} parent=1 // pred_check_branch
      %148 = sbr.rel (0) target = $region77
    $region76: #{tpu_custom_call.1} parent=1 // pred_region
      %149 = dma.done [#allocation13], 32
    $region77: #{tpu_custom_call.1} parent=1 // pred_fallthru
      _
    // Predicated region
    $region78: #{tpu_custom_call.1} parent=1 // pred_check
      _
    $region79: #{tpu_custom_call.1} parent=1 // pred_check_branch
      %151 = sbr.rel (0) target = $region81
    $region80: #{tpu_custom_call.1} parent=1 // pred_region
      %152 = dma.done [#allocation13], 32
    $region81: #{tpu_custom_call.1} parent=1 // pred_fallthru
      _
    // Predicated region
    $region82: #{tpu_custom_call.1} parent=1 // pred_check
      _
    $region83: #{tpu_custom_call.1} parent=1 // pred_check_branch
      %154 = sbr.rel (0) target = $region85
    $region84: #{tpu_custom_call.1} parent=1 // pred_region
      %155 = dma.done [#allocation16], 16384
    $region85: #{tpu_custom_call.1} parent=1 // pred_fallthru
      _
    // Predicated region
    $region86: #{tpu_custom_call.1} parent=1 // pred_check
      _
    $region87: #{tpu_custom_call.1} parent=1 // pred_check_branch
      %157 = sbr.rel (0) target = $region89
    $region88: #{tpu_custom_call.1} parent=1 // pred_region
      %158 = dma.done [#allocation16], 16384
    $region89: #{tpu_custom_call.1} parent=1 // pred_fallthru
      _
    %v160 = vld [vmem:[#allocation3] sm:$0xff]
    %v161 = vld [vmem:[#allocation3 + $0x8] sm:$0xff]
    %v162 = vld [vmem:[#allocation3 + $0x10] sm:$0xff]
    %v163 = vld [vmem:[#allocation3 + $0x18] sm:$0xff]
    %v164 = vld [vmem:[#allocation3 + $0x20] sm:$0xff]
    %v165 = vld [vmem:[#allocation3 + $0x28] sm:$0xff]
    %v166 = vld [vmem:[#allocation3 + $0x30] sm:$0xff]
    %v167 = vld [vmem:[#allocation3 + $0x38] sm:$0xff]
    %v168 = vld [vmem:[#allocation6] sm:$0x3]
    %v169 = vld [vmem:[#allocation8] sm:$0x3]
    %v170 = vadd.f32 %v160, %v161
    %171 = vadd.xlane.f32.xlu0 %v170
    %v172 = vpop.xlane.xlu0 %171
    %v173 = vadd.f32 %v162, %v163
    %174 = vadd.xlane.f32.xlu0 %v173
    %v175 = vpop.xlane.xlu0 %174
    %v176 = vadd.f32 %v164, %v165
    %177 = vadd.xlane.f32.xlu0 %v176
    %v178 = vpop.xlane.xlu0 %177
    %v179 = vadd.f32 %v166, %v167
    %180 = vadd.xlane.f32.xlu0 %v179
    %v181 = vpop.xlane.xlu0 %180
    %v182 = vrcp.pop 256.0
    %v183 = vmul.f32 %v172, %v182
    %v184 = vmul.f32 %v175, %v182
    %v185 = vmul.f32 %v178, %v182
    %v186 = vmul.f32 %v181, %v182
    %v187 = vsub.f32 %v160, %v183
    %v188 = vsub.f32 %v161, %v183
    %v189 = vsub.f32 %v162, %v184
    %v190 = vsub.f32 %v163, %v184
    %v191 = vsub.f32 %v164, %v185
    %v192 = vsub.f32 %v165, %v185
    %v193 = vsub.f32 %v166, %v186
    %v194 = vsub.f32 %v167, %v186
    %v195 = vmul.f32 %v187, %v187
    %v196 = vmul.f32 %v188, %v188
    %v197 = vmul.f32 %v189, %v189
    %v198 = vmul.f32 %v190, %v190
    %v199 = vmul.f32 %v191, %v191
    %v200 = vmul.f32 %v192, %v192
    %v201 = vmul.f32 %v193, %v193
    %v202 = vmul.f32 %v194, %v194
    %v203 = vadd.f32 %v195, %v196
    %204 = vadd.xlane.f32.xlu0 %v203
    %v205 = vpop.xlane.xlu0 %204
    %v206 = vadd.f32 %v197, %v198
    %207 = vadd.xlane.f32.xlu0 %v206
    %v208 = vpop.xlane.xlu0 %207
    %v209 = vadd.f32 %v199, %v200
    %210 = vadd.xlane.f32.xlu0 %v209
    %v211 = vpop.xlane.xlu0 %210
    %v212 = vadd.f32 %v201, %v202
    %213 = vadd.xlane.f32.xlu0 %v212
    %v214 = vpop.xlane.xlu0 %213
    %v215 = vmul.f32 %v205, %v182
    %v216 = vmul.f32 %v208, %v182
    %v217 = vmul.f32 %v211, %v182
    %v218 = vmul.f32 %v214, %v182
    %v219 = vadd.f32 %v215, 1e-05
    %v220 = vadd.f32 %v216, 1e-05
    %v221 = vadd.f32 %v217, 1e-05
    %v222 = vadd.f32 %v218, 1e-05
    %v223 = vrsqrt.pop %v219
    %v224 = vrsqrt.pop %v220
    %v225 = vrsqrt.pop %v221
    %v226 = vrsqrt.pop %v222
    %v227 = vmul.f32 %v187, %v223
    %v228 = vmul.f32 %v188, %v223
    %v229 = vmul.f32 %v189, %v224
    %v230 = vmul.f32 %v190, %v224
    %v231 = vmul.f32 %v191, %v225
    %v232 = vmul.f32 %v192, %v225
    %v233 = vmul.f32 %v193, %v226
    %v234 = vmul.f32 %v194, %v226
    %v236 = vlaneseq
    %v237 = vshrl.u32 %v236, 7
    %v238 = vsub.s32 0, %v237
    %v239 = vrot.slane %v168, %v238
    %v240 = vlaneseq
    %v241 = vshrl.u32 %v240, 7
    %v242 = vsub.s32 1, %v241
    %v243 = vrot.slane %v168, %v242
    %v246 = vmul.f32 %v227, %v239
    %v247 = vmul.f32 %v228, %v243
    %v248 = vmul.f32 %v229, %v239
    %v249 = vmul.f32 %v230, %v243
    %v250 = vmul.f32 %v231, %v239
    %v251 = vmul.f32 %v232, %v243
    %v252 = vmul.f32 %v233, %v239
    %v253 = vmul.f32 %v234, %v243
    %v255 = vlaneseq
    %v256 = vshrl.u32 %v255, 7
    %v257 = vsub.s32 0, %v256
    %v258 = vrot.slane %v169, %v257
    %v259 = vlaneseq
    %v260 = vshrl.u32 %v259, 7
    %v261 = vsub.s32 1, %v260
    %v262 = vrot.slane %v169, %v261
    %v265 = vadd.f32 %v246, %v258
    %v266 = vadd.f32 %v247, %v262
    %v267 = vadd.f32 %v248, %v258
    %v268 = vadd.f32 %v249, %v262
    %v269 = vadd.f32 %v250, %v258
    %v270 = vadd.f32 %v251, %v262
    %v271 = vadd.f32 %v252, %v258
    %v272 = vadd.f32 %v253, %v262
    %v273 = vpack.c.bf16 %v267, %v265
    %v274 = vpack.c.bf16 %v268, %v266
    %v275 = vpack.c.bf16 %v271, %v269
    %v276 = vpack.c.bf16 %v272, %v270
    %v277 = vld [vmem:[#allocation9] sm:$0xff]
    %v278 = vld [vmem:[#allocation9 + $0x8] sm:$0xff]
    %v279 = vld [vmem:[#allocation9 + $0x10] sm:$0xff]
    %v280 = vld [vmem:[#allocation9 + $0x18] sm:$0xff]
    %v281 = vld [vmem:[#allocation9 + $0x20] sm:$0xff]
    %v282 = vld [vmem:[#allocation9 + $0x28] sm:$0xff]
    %v283 = vld [vmem:[#allocation9 + $0x30] sm:$0xff]
    %v284 = vld [vmem:[#allocation9 + $0x38] sm:$0xff]
    %v285 = vld [vmem:[#allocation9 + $0x40] sm:$0xff]
    %v286 = vld [vmem:[#allocation9 + $0x48] sm:$0xff]
    %v287 = vld [vmem:[#allocation9 + $0x50] sm:$0xff]
    %v288 = vld [vmem:[#allocation9 + $0x58] sm:$0xff]
    %v289 = vld [vmem:[#allocation9 + $0x60] sm:$0xff]
    %v290 = vld [vmem:[#allocation9 + $0x68] sm:$0xff]
    %v291 = vld [vmem:[#allocation9 + $0x70] sm:$0xff]
    %v292 = vld [vmem:[#allocation9 + $0x78] sm:$0xff]
    %v293 = vld [vmem:[#allocation9 + $0x80] sm:$0xff]
    %v294 = vld [vmem:[#allocation9 + $0x88] sm:$0xff]
    %v295 = vld [vmem:[#allocation9 + $0x90] sm:$0xff]
    %v296 = vld [vmem:[#allocation9 + $0x98] sm:$0xff]
    %v297 = vld [vmem:[#allocation9 + $0xa0] sm:$0xff]
    %v298 = vld [vmem:[#allocation9 + $0xa8] sm:$0xff]
    %v299 = vld [vmem:[#allocation9 + $0xb0] sm:$0xff]
    %v300 = vld [vmem:[#allocation9 + $0xb8] sm:$0xff]
    %v301 = vld [vmem:[#allocation9 + $0xc0] sm:$0xff]
    %v302 = vld [vmem:[#allocation9 + $0xc8] sm:$0xff]
    %v303 = vld [vmem:[#allocation9 + $0xd0] sm:$0xff]
    %v304 = vld [vmem:[#allocation9 + $0xd8] sm:$0xff]
    %v305 = vld [vmem:[#allocation9 + $0xe0] sm:$0xff]
    %v306 = vld [vmem:[#allocation9 + $0xe8] sm:$0xff]
    %v307 = vld [vmem:[#allocation9 + $0xf0] sm:$0xff]
    %v308 = vld [vmem:[#allocation9 + $0xf8] sm:$0xff]
    %v309 = vld [vmem:[#allocation9 + $0x100] sm:$0xff]
    %v310 = vld [vmem:[#allocation9 + $0x108] sm:$0xff]
    %v311 = vld [vmem:[#allocation9 + $0x110] sm:$0xff]
    %v312 = vld [vmem:[#allocation9 + $0x118] sm:$0xff]
    %v313 = vld [vmem:[#allocation9 + $0x120] sm:$0xff]
    %v314 = vld [vmem:[#allocation9 + $0x128] sm:$0xff]
    %v315 = vld [vmem:[#allocation9 + $0x130] sm:$0xff]
    %v316 = vld [vmem:[#allocation9 + $0x138] sm:$0xff]
    %v317 = vld [vmem:[#allocation9 + $0x140] sm:$0xff]
    %v318 = vld [vmem:[#allocation9 + $0x148] sm:$0xff]
    %v319 = vld [vmem:[#allocation9 + $0x150] sm:$0xff]
    %v320 = vld [vmem:[#allocation9 + $0x158] sm:$0xff]
    %v321 = vld [vmem:[#allocation9 + $0x160] sm:$0xff]
    %v322 = vld [vmem:[#allocation9 + $0x168] sm:$0xff]
    %v323 = vld [vmem:[#allocation9 + $0x170] sm:$0xff]
    %v324 = vld [vmem:[#allocation9 + $0x178] sm:$0xff]
    %v325 = vld [vmem:[#allocation9 + $0x180] sm:$0xff]
    %v326 = vld [vmem:[#allocation9 + $0x188] sm:$0xff]
    %v327 = vld [vmem:[#allocation9 + $0x190] sm:$0xff]
    %v328 = vld [vmem:[#allocation9 + $0x198] sm:$0xff]
    %v329 = vld [vmem:[#allocation9 + $0x1a0] sm:$0xff]
    %v330 = vld [vmem:[#allocation9 + $0x1a8] sm:$0xff]
    %v331 = vld [vmem:[#allocation9 + $0x1b0] sm:$0xff]
    %v332 = vld [vmem:[#allocation9 + $0x1b8] sm:$0xff]
    %v333 = vld [vmem:[#allocation9 + $0x1c0] sm:$0xff]
    %v334 = vld [vmem:[#allocation9 + $0x1c8] sm:$0xff]
    %v335 = vld [vmem:[#allocation9 + $0x1d0] sm:$0xff]
    %v336 = vld [vmem:[#allocation9 + $0x1d8] sm:$0xff]
    %v337 = vld [vmem:[#allocation9 + $0x1e0] sm:$0xff]
    %v338 = vld [vmem:[#allocation9 + $0x1e8] sm:$0xff]
    %v339 = vld [vmem:[#allocation9 + $0x1f0] sm:$0xff]
    %v340 = vld [vmem:[#allocation9 + $0x1f8] sm:$0xff]
    %v341 = vld [vmem:[#allocation9 + $0x200] sm:$0xff]
    %v342 = vld [vmem:[#allocation9 + $0x208] sm:$0xff]
    %v343 = vld [vmem:[#allocation9 + $0x210] sm:$0xff]
    %v344 = vld [vmem:[#allocation9 + $0x218] sm:$0xff]
    %v345 = vld [vmem:[#allocation9 + $0x220] sm:$0xff]
    %v346 = vld [vmem:[#allocation9 + $0x228] sm:$0xff]
    %v347 = vld [vmem:[#allocation9 + $0x230] sm:$0xff]
    %v348 = vld [vmem:[#allocation9 + $0x238] sm:$0xff]
    %v349 = vld [vmem:[#allocation9 + $0x240] sm:$0xff]
    %v350 = vld [vmem:[#allocation9 + $0x248] sm:$0xff]
    %v351 = vld [vmem:[#allocation9 + $0x250] sm:$0xff]
    %v352 = vld [vmem:[#allocation9 + $0x258] sm:$0xff]
    %v353 = vld [vmem:[#allocation9 + $0x260] sm:$0xff]
    %v354 = vld [vmem:[#allocation9 + $0x268] sm:$0xff]
    %v355 = vld [vmem:[#allocation9 + $0x270] sm:$0xff]
    %v356 = vld [vmem:[#allocation9 + $0x278] sm:$0xff]
    %v357 = vld [vmem:[#allocation9 + $0x280] sm:$0xff]
    %v358 = vld [vmem:[#allocation9 + $0x288] sm:$0xff]
    %v359 = vld [vmem:[#allocation9 + $0x290] sm:$0xff]
    %v360 = vld [vmem:[#allocation9 + $0x298] sm:$0xff]
    %v361 = vld [vmem:[#allocation9 + $0x2a0] sm:$0xff]
    %v362 = vld [vmem:[#allocation9 + $0x2a8] sm:$0xff]
    %v363 = vld [vmem:[#allocation9 + $0x2b0] sm:$0xff]
    %v364 = vld [vmem:[#allocation9 + $0x2b8] sm:$0xff]
    %v365 = vld [vmem:[#allocation9 + $0x2c0] sm:$0xff]
    %v366 = vld [vmem:[#allocation9 + $0x2c8] sm:$0xff]
    %v367 = vld [vmem:[#allocation9 + $0x2d0] sm:$0xff]
    %v368 = vld [vmem:[#allocation9 + $0x2d8] sm:$0xff]
    %v369 = vld [vmem:[#allocation9 + $0x2e0] sm:$0xff]
    %v370 = vld [vmem:[#allocation9 + $0x2e8] sm:$0xff]
    %v371 = vld [vmem:[#allocation9 + $0x2f0] sm:$0xff]
    %v372 = vld [vmem:[#allocation9 + $0x2f8] sm:$0xff]
    %v373 = vld [vmem:[%s4] sm:$0x3f]
    %v375 = vlaneseq
    %v376 = vshrl.u32 %v375, 7
    %v377 = vsub.s32 0, %v376
    %v378 = vrot.slane %v373, %v377
    %v379 = vlaneseq
    %v380 = vshrl.u32 %v379, 7
    %v381 = vsub.s32 1, %v380
    %v382 = vrot.slane %v373, %v381
    %v383 = vlaneseq
    %v384 = vshrl.u32 %v383, 7
    %v385 = vsub.s32 2, %v384
    %v386 = vrot.slane %v373, %v385
    %v387 = vlaneseq
    %v388 = vshrl.u32 %v387, 7
    %v389 = vsub.s32 3, %v388
    %v390 = vrot.slane %v373, %v389
    %v391 = vlaneseq
    %v392 = vshrl.u32 %v391, 7
    %v393 = vsub.s32 4, %v392
    %v394 = vrot.slane %v373, %v393
    %v395 = vlaneseq
    %v396 = vshrl.u32 %v395, 7
    %v397 = vsub.s32 5, %v396
    %v398 = vrot.slane %v373, %v397
    %v501 = vunpack.c.l.b16 %v277
    %v502 = vunpack.c.h.b16 %v277
    %v503 = vunpack.c.l.b16 %v278
    %v504 = vunpack.c.h.b16 %v278
    %v505 = vunpack.c.l.b16 %v279
    %v506 = vunpack.c.h.b16 %v279
    %v507 = vunpack.c.l.b16 %v280
    %v508 = vunpack.c.h.b16 %v280
    %v509 = vunpack.c.l.b16 %v281
    %v510 = vunpack.c.h.b16 %v281
    %v511 = vunpack.c.l.b16 %v282
    %v512 = vunpack.c.h.b16 %v282
    %v513 = vunpack.c.l.b16 %v283
    %v514 = vunpack.c.h.b16 %v283
    %v515 = vunpack.c.l.b16 %v284
    %v516 = vunpack.c.h.b16 %v284
    %v517 = vunpack.c.l.b16 %v285
    %v518 = vunpack.c.h.b16 %v285
    %v519 = vunpack.c.l.b16 %v286
    %v520 = vunpack.c.h.b16 %v286
    %v521 = vunpack.c.l.b16 %v287
    %v522 = vunpack.c.h.b16 %v287
    %v523 = vunpack.c.l.b16 %v288
    %v524 = vunpack.c.h.b16 %v288
    %v525 = vunpack.c.l.b16 %v289
    %v526 = vunpack.c.h.b16 %v289
    %v527 = vunpack.c.l.b16 %v290
    %v528 = vunpack.c.h.b16 %v290
    %v529 = vunpack.c.l.b16 %v291
    %v530 = vunpack.c.h.b16 %v291
    %v531 = vunpack.c.l.b16 %v292
    %v532 = vunpack.c.h.b16 %v292
    %v533 = vunpack.c.l.b16 %v293
    %v534 = vunpack.c.h.b16 %v293
    %v535 = vunpack.c.l.b16 %v294
    %v536 = vunpack.c.h.b16 %v294
    %v537 = vunpack.c.l.b16 %v295
    %v538 = vunpack.c.h.b16 %v295
    %v539 = vunpack.c.l.b16 %v296
    %v540 = vunpack.c.h.b16 %v296
    %v541 = vunpack.c.l.b16 %v297
    %v542 = vunpack.c.h.b16 %v297
    %v543 = vunpack.c.l.b16 %v298
    %v544 = vunpack.c.h.b16 %v298
    %v545 = vunpack.c.l.b16 %v299
    %v546 = vunpack.c.h.b16 %v299
    %v547 = vunpack.c.l.b16 %v300
    %v548 = vunpack.c.h.b16 %v300
    %v549 = vunpack.c.l.b16 %v301
    %v550 = vunpack.c.h.b16 %v301
    %v551 = vunpack.c.l.b16 %v302
    %v552 = vunpack.c.h.b16 %v302
    %v553 = vunpack.c.l.b16 %v303
    %v554 = vunpack.c.h.b16 %v303
    %v555 = vunpack.c.l.b16 %v304
    %v556 = vunpack.c.h.b16 %v304
    %v557 = vunpack.c.l.b16 %v305
    %v558 = vunpack.c.h.b16 %v305
    %v559 = vunpack.c.l.b16 %v306
    %v560 = vunpack.c.h.b16 %v306
    %v561 = vunpack.c.l.b16 %v307
    %v562 = vunpack.c.h.b16 %v307
    %v563 = vunpack.c.l.b16 %v308
    %v564 = vunpack.c.h.b16 %v308
    %v565 = vunpack.c.l.b16 %v309
    %v566 = vunpack.c.h.b16 %v309
    %v567 = vunpack.c.l.b16 %v310
    %v568 = vunpack.c.h.b16 %v310
    %v569 = vunpack.c.l.b16 %v311
    %v570 = vunpack.c.h.b16 %v311
    %v571 = vunpack.c.l.b16 %v312
    %v572 = vunpack.c.h.b16 %v312
    %v573 = vunpack.c.l.b16 %v313
    %v574 = vunpack.c.h.b16 %v313
    %v575 = vunpack.c.l.b16 %v314
    %v576 = vunpack.c.h.b16 %v314
    %v577 = vunpack.c.l.b16 %v315
    %v578 = vunpack.c.h.b16 %v315
    %v579 = vunpack.c.l.b16 %v316
    %v580 = vunpack.c.h.b16 %v316
    %v581 = vunpack.c.l.b16 %v317
    %v582 = vunpack.c.h.b16 %v317
    %v583 = vunpack.c.l.b16 %v318
    %v584 = vunpack.c.h.b16 %v318
    %v585 = vunpack.c.l.b16 %v319
    %v586 = vunpack.c.h.b16 %v319
    %v587 = vunpack.c.l.b16 %v320
    %v588 = vunpack.c.h.b16 %v320
    %v589 = vunpack.c.l.b16 %v321
    %v590 = vunpack.c.h.b16 %v321
    %v591 = vunpack.c.l.b16 %v322
    %v592 = vunpack.c.h.b16 %v322
    %v593 = vunpack.c.l.b16 %v323
    %v594 = vunpack.c.h.b16 %v323
    %v595 = vunpack.c.l.b16 %v324
    %v596 = vunpack.c.h.b16 %v324
    %v597 = vunpack.c.l.b16 %v325
    %v598 = vunpack.c.h.b16 %v325
    %v599 = vunpack.c.l.b16 %v326
    %v600 = vunpack.c.h.b16 %v326
    %v601 = vunpack.c.l.b16 %v327
    %v602 = vunpack.c.h.b16 %v327
    %v603 = vunpack.c.l.b16 %v328
    %v604 = vunpack.c.h.b16 %v328
    %v605 = vunpack.c.l.b16 %v329
    %v606 = vunpack.c.h.b16 %v329
    %v607 = vunpack.c.l.b16 %v330
    %v608 = vunpack.c.h.b16 %v330
    %v609 = vunpack.c.l.b16 %v331
    %v610 = vunpack.c.h.b16 %v331
    %v611 = vunpack.c.l.b16 %v332
    %v612 = vunpack.c.h.b16 %v332
    %v613 = vunpack.c.l.b16 %v333
    %v614 = vunpack.c.h.b16 %v333
    %v615 = vunpack.c.l.b16 %v334
    %v616 = vunpack.c.h.b16 %v334
    %v617 = vunpack.c.l.b16 %v335
    %v618 = vunpack.c.h.b16 %v335
    %v619 = vunpack.c.l.b16 %v336
    %v620 = vunpack.c.h.b16 %v336
    %v621 = vunpack.c.l.b16 %v337
    %v622 = vunpack.c.h.b16 %v337
    %v623 = vunpack.c.l.b16 %v338
    %v624 = vunpack.c.h.b16 %v338
    %v625 = vunpack.c.l.b16 %v339
    %v626 = vunpack.c.h.b16 %v339
    %v627 = vunpack.c.l.b16 %v340
    %v628 = vunpack.c.h.b16 %v340
    %v629 = vunpack.c.l.b16 %v341
    %v630 = vunpack.c.h.b16 %v341
    %v631 = vunpack.c.l.b16 %v342
    %v632 = vunpack.c.h.b16 %v342
    %v633 = vunpack.c.l.b16 %v343
    %v634 = vunpack.c.h.b16 %v343
    %v635 = vunpack.c.l.b16 %v344
    %v636 = vunpack.c.h.b16 %v344
    %v637 = vunpack.c.l.b16 %v345
    %v638 = vunpack.c.h.b16 %v345
    %v639 = vunpack.c.l.b16 %v346
    %v640 = vunpack.c.h.b16 %v346
    %v641 = vunpack.c.l.b16 %v347
    %v642 = vunpack.c.h.b16 %v347
    %v643 = vunpack.c.l.b16 %v348
    %v644 = vunpack.c.h.b16 %v348
    %v645 = vunpack.c.l.b16 %v349
    %v646 = vunpack.c.h.b16 %v349
    %v647 = vunpack.c.l.b16 %v350
    %v648 = vunpack.c.h.b16 %v350
    %v649 = vunpack.c.l.b16 %v351
    %v650 = vunpack.c.h.b16 %v351
    %v651 = vunpack.c.l.b16 %v352
    %v652 = vunpack.c.h.b16 %v352
    %v653 = vunpack.c.l.b16 %v353
    %v654 = vunpack.c.h.b16 %v353
    %v655 = vunpack.c.l.b16 %v354
    %v656 = vunpack.c.h.b16 %v354
    %v657 = vunpack.c.l.b16 %v355
    %v658 = vunpack.c.h.b16 %v355
    %v659 = vunpack.c.l.b16 %v356
    %v660 = vunpack.c.h.b16 %v356
    %v661 = vunpack.c.l.b16 %v357
    %v662 = vunpack.c.h.b16 %v357
    %v663 = vunpack.c.l.b16 %v358
    %v664 = vunpack.c.h.b16 %v358
    %v665 = vunpack.c.l.b16 %v359
    %v666 = vunpack.c.h.b16 %v359
    %v667 = vunpack.c.l.b16 %v360
    %v668 = vunpack.c.h.b16 %v360
    %v669 = vunpack.c.l.b16 %v361
    %v670 = vunpack.c.h.b16 %v361
    %v671 = vunpack.c.l.b16 %v362
    %v672 = vunpack.c.h.b16 %v362
    %v673 = vunpack.c.l.b16 %v363
    %v674 = vunpack.c.h.b16 %v363
    %v675 = vunpack.c.l.b16 %v364
    %v676 = vunpack.c.h.b16 %v364
    %v677 = vunpack.c.l.b16 %v365
    %v678 = vunpack.c.h.b16 %v365
    %v679 = vunpack.c.l.b16 %v366
    %v680 = vunpack.c.h.b16 %v366
    %v681 = vunpack.c.l.b16 %v367
    %v682 = vunpack.c.h.b16 %v367
    %v683 = vunpack.c.l.b16 %v368
    %v684 = vunpack.c.h.b16 %v368
    %v685 = vunpack.c.l.b16 %v369
    %v686 = vunpack.c.h.b16 %v369
    %v687 = vunpack.c.l.b16 %v370
    %v688 = vunpack.c.h.b16 %v370
    %v689 = vunpack.c.l.b16 %v371
    %v690 = vunpack.c.h.b16 %v371
    %v691 = vunpack.c.l.b16 %v372
    %v692 = vunpack.c.h.b16 %v372
    %v693 = vpack.c.b16 %v507, %v501
    %v694 = vpack.c.b16 %v508, %v502
    %v695 = vpack.c.b16 %v509, %v503
    %v696 = vpack.c.b16 %v510, %v504
    %v697 = vpack.c.b16 %v511, %v505
    %v698 = vpack.c.b16 %v512, %v506
    %v699 = vpack.c.b16 %v519, %v513
    %v700 = vpack.c.b16 %v520, %v514
    %v701 = vpack.c.b16 %v521, %v515
    %v702 = vpack.c.b16 %v522, %v516
    %v703 = vpack.c.b16 %v523, %v517
    %v704 = vpack.c.b16 %v524, %v518
    %v705 = vpack.c.b16 %v531, %v525
    %v706 = vpack.c.b16 %v532, %v526
    %v707 = vpack.c.b16 %v533, %v527
    %v708 = vpack.c.b16 %v534, %v528
    %v709 = vpack.c.b16 %v535, %v529
    %v710 = vpack.c.b16 %v536, %v530
    %v711 = vpack.c.b16 %v543, %v537
    %v712 = vpack.c.b16 %v544, %v538
    %v713 = vpack.c.b16 %v545, %v539
    %v714 = vpack.c.b16 %v546, %v540
    %v715 = vpack.c.b16 %v547, %v541
    %v716 = vpack.c.b16 %v548, %v542
    %v717 = vpack.c.b16 %v555, %v549
    %v718 = vpack.c.b16 %v556, %v550
    %v719 = vpack.c.b16 %v557, %v551
    %v720 = vpack.c.b16 %v558, %v552
    %v721 = vpack.c.b16 %v559, %v553
    %v722 = vpack.c.b16 %v560, %v554
    %v723 = vpack.c.b16 %v567, %v561
    %v724 = vpack.c.b16 %v568, %v562
    %v725 = vpack.c.b16 %v569, %v563
    %v726 = vpack.c.b16 %v570, %v564
    %v727 = vpack.c.b16 %v571, %v565
    %v728 = vpack.c.b16 %v572, %v566
    %v729 = vpack.c.b16 %v579, %v573
    %v730 = vpack.c.b16 %v580, %v574
    %v731 = vpack.c.b16 %v581, %v575
    %v732 = vpack.c.b16 %v582, %v576
    %v733 = vpack.c.b16 %v583, %v577
    %v734 = vpack.c.b16 %v584, %v578
    %v735 = vpack.c.b16 %v591, %v585
    %v736 = vpack.c.b16 %v592, %v586
    %v737 = vpack.c.b16 %v593, %v587
    %v738 = vpack.c.b16 %v594, %v588
    %v739 = vpack.c.b16 %v595, %v589
    %v740 = vpack.c.b16 %v596, %v590
    %v741 = vpack.c.b16 %v603, %v597
    %v742 = vpack.c.b16 %v604, %v598
    %v743 = vpack.c.b16 %v605, %v599
    %v744 = vpack.c.b16 %v606, %v600
    %v745 = vpack.c.b16 %v607, %v601
    %v746 = vpack.c.b16 %v608, %v602
    %v747 = vpack.c.b16 %v615, %v609
    %v748 = vpack.c.b16 %v616, %v610
    %v749 = vpack.c.b16 %v617, %v611
    %v750 = vpack.c.b16 %v618, %v612
    %v751 = vpack.c.b16 %v619, %v613
    %v752 = vpack.c.b16 %v620, %v614
    %v753 = vpack.c.b16 %v627, %v621
    %v754 = vpack.c.b16 %v628, %v622
    %v755 = vpack.c.b16 %v629, %v623
    %v756 = vpack.c.b16 %v630, %v624
    %v757 = vpack.c.b16 %v631, %v625
    %v758 = vpack.c.b16 %v632, %v626
    %v759 = vpack.c.b16 %v639, %v633
    %v760 = vpack.c.b16 %v640, %v634
    %v761 = vpack.c.b16 %v641, %v635
    %v762 = vpack.c.b16 %v642, %v636
    %v763 = vpack.c.b16 %v643, %v637
    %v764 = vpack.c.b16 %v644, %v638
    %v765 = vpack.c.b16 %v651, %v645
    %v766 = vpack.c.b16 %v652, %v646
    %v767 = vpack.c.b16 %v653, %v647
    %v768 = vpack.c.b16 %v654, %v648
    %v769 = vpack.c.b16 %v655, %v649
    %v770 = vpack.c.b16 %v656, %v650
    %v771 = vpack.c.b16 %v663, %v657
    %v772 = vpack.c.b16 %v664, %v658
    %v773 = vpack.c.b16 %v665, %v659
    %v774 = vpack.c.b16 %v666, %v660
    %v775 = vpack.c.b16 %v667, %v661
    %v776 = vpack.c.b16 %v668, %v662
    %v777 = vpack.c.b16 %v675, %v669
    %v778 = vpack.c.b16 %v676, %v670
    %v779 = vpack.c.b16 %v677, %v671
    %v780 = vpack.c.b16 %v678, %v672
    %v781 = vpack.c.b16 %v679, %v673
    %v782 = vpack.c.b16 %v680, %v674
    %v783 = vpack.c.b16 %v687, %v681
    %v784 = vpack.c.b16 %v688, %v682
    %v785 = vpack.c.b16 %v689, %v683
    %v786 = vpack.c.b16 %v690, %v684
    %v787 = vpack.c.b16 %v691, %v685
    %v788 = vpack.c.b16 %v692, %v686
    %885 = vmatprep.subr.bf16.mxu0 %v736
    %886 = vmatpush1.bf16.msra.mxu0 %v735
    %887 = vmatprep.subr.bf16.mxu0 %v730
    %888 = vmatpush1.bf16.msra.mxu0 %v729
    %889 = vmatprep.subr.bf16.mxu0 %v724
    %890 = vmatpush1.bf16.msra.mxu0 %v723
    %891 = vmatprep.subr.bf16.mxu0 %v718
    %892 = vmatpush1.bf16.msra.mxu0 %v717
    %893 = vmatprep.subr.bf16.mxu0 %v712
    %894 = vmatpush1.bf16.msra.mxu0 %v711
    %895 = vmatprep.subr.bf16.mxu0 %v706
    %896 = vmatpush1.bf16.msra.mxu0 %v705
    %897 = vmatprep.subr.bf16.mxu0 %v700
    %898 = vmatpush1.bf16.msra.mxu0 %v699
    %899 = vmatprep.subr.bf16.mxu0 %v694
    %900 = vmatpush1.bf16.msra.mxu0 %v693
    %901 = vmatprep.subr.bf16.mxu0 %v784
    %902 = vmatpush2.bf16.msra.mxu0 %v783
    %903 = vmatprep.subr.bf16.mxu0 %v778
    %904 = vmatpush2.bf16.msra.mxu0 %v777
    %905 = vmatprep.subr.bf16.mxu0 %v772
    %906 = vmatpush2.bf16.msra.mxu0 %v771
    %907 = vmatprep.subr.bf16.mxu0 %v766
    %908 = vmatpush2.bf16.msra.mxu0 %v765
    %909 = vmatprep.subr.bf16.mxu0 %v760
    %910 = vmatpush2.bf16.msra.mxu0 %v759
    %911 = vmatprep.subr.bf16.mxu0 %v754
    %912 = vmatpush2.bf16.msra.mxu0 %v753
    %913 = vmatprep.subr.bf16.mxu0 %v748
    %914 = vmatpush2.bf16.msra.mxu0 %v747
    %915 = vmatprep.subr.bf16.mxu0 %v742
    %916 = vmatpush2.bf16.msra.mxu0 %v741
    %917 = vmatprep.mubr.bf16.mxu0 %v274
    %918 = vmatmul.mubr.bf16.gmra.mxu0 %v273
    %v919 = vpop.f32.mrf.mxu0
    %v920 = vadd.f32 %v378, %v919
    %v921 = vpop.f32.mrf.mxu0
    %v922 = vadd.f32 %v382, %v921
    %v923 = vpop.f32.mrf.mxu0
    %v924 = vadd.f32 %v378, %v923
    %v925 = vpop.f32.mrf.mxu0
    %v926 = vadd.f32 %v382, %v925
    %927 = vmatprep.mubr.bf16.mxu0 %v276
    %928 = vmatmul.mubr.bf16.gmra.mxu0 %v275
    %v929 = vpop.f32.mrf.mxu0
    %v930 = vadd.f32 %v378, %v929
    %v931 = vpop.f32.mrf.mxu0
    %v932 = vadd.f32 %v382, %v931
    %v933 = vpop.f32.mrf.mxu0
    %v934 = vadd.f32 %v378, %v933
    %v935 = vpop.f32.mrf.mxu0
    %v936 = vadd.f32 %v382, %v935
    %937 = vdwg.mxu0
    %938 = vmatprep.subr.bf16.mxu0 %v738
    %939 = vmatpush1.bf16.msra.mxu0 %v737
    %940 = vmatprep.subr.bf16.mxu0 %v732
    %941 = vmatpush1.bf16.msra.mxu0 %v731
    %942 = vmatprep.subr.bf16.mxu0 %v726
    %943 = vmatpush1.bf16.msra.mxu0 %v725
    %944 = vmatprep.subr.bf16.mxu0 %v720
    %945 = vmatpush1.bf16.msra.mxu0 %v719
    %946 = vmatprep.subr.bf16.mxu0 %v714
    %947 = vmatpush1.bf16.msra.mxu0 %v713
    %948 = vmatprep.subr.bf16.mxu0 %v708
    %949 = vmatpush1.bf16.msra.mxu0 %v707
    %950 = vmatprep.subr.bf16.mxu0 %v702
    %951 = vmatpush1.bf16.msra.mxu0 %v701
    %952 = vmatprep.subr.bf16.mxu0 %v696
    %953 = vmatpush1.bf16.msra.mxu0 %v695
    %954 = vmatprep.subr.bf16.mxu0 %v786
    %955 = vmatpush2.bf16.msra.mxu0 %v785
    %956 = vmatprep.subr.bf16.mxu0 %v780
    %957 = vmatpush2.bf16.msra.mxu0 %v779
    %958 = vmatprep.subr.bf16.mxu0 %v774
    %959 = vmatpush2.bf16.msra.mxu0 %v773
    %960 = vmatprep.subr.bf16.mxu0 %v768
    %961 = vmatpush2.bf16.msra.mxu0 %v767
    %962 = vmatprep.subr.bf16.mxu0 %v762
    %963 = vmatpush2.bf16.msra.mxu0 %v761
    %964 = vmatprep.subr.bf16.mxu0 %v756
    %965 = vmatpush2.bf16.msra.mxu0 %v755
    %966 = vmatprep.subr.bf16.mxu0 %v750
    %967 = vmatpush2.bf16.msra.mxu0 %v749
    %968 = vmatprep.subr.bf16.mxu0 %v744
    %969 = vmatpush2.bf16.msra.mxu0 %v743
    %970 = vmatprep.mubr.bf16.mxu0 %v274
    %971 = vmatmul.mubr.bf16.gmra.mxu0 %v273
    %v972 = vpop.f32.mrf.mxu0
    %v973 = vadd.f32 %v386, %v972
    %v974 = vpop.f32.mrf.mxu0
    %v975 = vadd.f32 %v390, %v974
    %v976 = vpop.f32.mrf.mxu0
    %v977 = vadd.f32 %v386, %v976
    %v978 = vpop.f32.mrf.mxu0
    %v979 = vadd.f32 %v390, %v978
    %980 = vmatprep.mubr.bf16.mxu0 %v276
    %981 = vmatmul.mubr.bf16.gmra.mxu0 %v275
    %v982 = vpop.f32.mrf.mxu0
    %v983 = vadd.f32 %v386, %v982
    %v984 = vpop.f32.mrf.mxu0
    %v985 = vadd.f32 %v390, %v984
    %v986 = vpop.f32.mrf.mxu0
    %v987 = vadd.f32 %v386, %v986
    %v988 = vpop.f32.mrf.mxu0
    %v989 = vadd.f32 %v390, %v988
    %990 = vdwg.mxu0
    %991 = vmatprep.subr.bf16.mxu0 %v740
    %992 = vmatpush1.bf16.msra.mxu0 %v739
    %993 = vmatprep.subr.bf16.mxu0 %v734
    %994 = vmatpush1.bf16.msra.mxu0 %v733
    %995 = vmatprep.subr.bf16.mxu0 %v728
    %996 = vmatpush1.bf16.msra.mxu0 %v727
    %997 = vmatprep.subr.bf16.mxu0 %v722
    %998 = vmatpush1.bf16.msra.mxu0 %v721
    %999 = vmatprep.subr.bf16.mxu0 %v716
    %1000 = vmatpush1.bf16.msra.mxu0 %v715
    %1001 = vmatprep.subr.bf16.mxu0 %v710
    %1002 = vmatpush1.bf16.msra.mxu0 %v709
    %1003 = vmatprep.subr.bf16.mxu0 %v704
    %1004 = vmatpush1.bf16.msra.mxu0 %v703
    %1005 = vmatprep.subr.bf16.mxu0 %v698
    %1006 = vmatpush1.bf16.msra.mxu0 %v697
    %1007 = vmatprep.subr.bf16.mxu0 %v788
    %1008 = vmatpush2.bf16.msra.mxu0 %v787
    %1009 = vmatprep.subr.bf16.mxu0 %v782
    %1010 = vmatpush2.bf16.msra.mxu0 %v781
    %1011 = vmatprep.subr.bf16.mxu0 %v776
    %1012 = vmatpush2.bf16.msra.mxu0 %v775
    %1013 = vmatprep.subr.bf16.mxu0 %v770
    %1014 = vmatpush2.bf16.msra.mxu0 %v769
    %1015 = vmatprep.subr.bf16.mxu0 %v764
    %1016 = vmatpush2.bf16.msra.mxu0 %v763
    %1017 = vmatprep.subr.bf16.mxu0 %v758
    %1018 = vmatpush2.bf16.msra.mxu0 %v757
    %1019 = vmatprep.subr.bf16.mxu0 %v752
    %1020 = vmatpush2.bf16.msra.mxu0 %v751
    %1021 = vmatprep.subr.bf16.mxu0 %v746
    %1022 = vmatpush2.bf16.msra.mxu0 %v745
    %1023 = vmatprep.mubr.bf16.mxu0 %v274
    %1024 = vmatmul.mubr.bf16.gmra.mxu0 %v273
    %v1025 = vpop.f32.mrf.mxu0
    %v1026 = vadd.f32 %v394, %v1025
    %v1027 = vpop.f32.mrf.mxu0
    %v1028 = vadd.f32 %v398, %v1027
    %v1029 = vpop.f32.mrf.mxu0
    %v1030 = vadd.f32 %v394, %v1029
    %v1031 = vpop.f32.mrf.mxu0
    %v1032 = vadd.f32 %v398, %v1031
    %1033 = vmatprep.mubr.bf16.mxu0 %v276
    %1034 = vmatmul.mubr.bf16.gmra.mxu0 %v275
    %v1035 = vpop.f32.mrf.mxu0
    %v1036 = vadd.f32 %v394, %v1035
    %v1037 = vpop.f32.mrf.mxu0
    %v1038 = vadd.f32 %v398, %v1037
    %v1039 = vpop.f32.mrf.mxu0
    %v1040 = vadd.f32 %v394, %v1039
    %v1041 = vpop.f32.mrf.mxu0
    %v1042 = vadd.f32 %v398, %v1041
    %1043 = vdwg.mxu0
    %v1044 = vmul.f32 %v920, 0.125
    %v1045 = vmul.f32 %v922, 0.125
    %v1046 = vmul.f32 %v924, 0.125
    %v1047 = vmul.f32 %v926, 0.125
    %v1048 = vmul.f32 %v930, 0.125
    %v1049 = vmul.f32 %v932, 0.125
    %v1050 = vmul.f32 %v934, 0.125
    %v1051 = vmul.f32 %v936, 0.125
    %v1052 = vpack.c.bf16 %v1046, %v1044
    %v1053 = vpack.c.bf16 %v1047, %v1045
    %v1054 = vpack.c.bf16 %v1050, %v1048
    %v1055 = vpack.c.bf16 %v1051, %v1049
    %v1056 = vpack.c.bf16 %v977, %v973
    %v1057 = vpack.c.bf16 %v979, %v975
    %v1058 = vpack.c.bf16 %v987, %v983
    %v1059 = vpack.c.bf16 %v989, %v985
    %v1060 = vpack.c.bf16 %v1030, %v1026
    %v1061 = vpack.c.bf16 %v1032, %v1028
    %v1062 = vpack.c.bf16 %v1040, %v1036
    %v1063 = vpack.c.bf16 %v1042, %v1038
    %vm1064 = vcmask 523264
    %v1066 = vsel %vm1064, %v1052, 0
    %v1069 = vsel %vm1064, %v1056, 0
    %1071 = vmatprep.subr.bf16.mxu0 0
    %1072 = vmatpush1.bf16.xpose.msra.mxu0 0
    %1073 = vmatprep.subr.bf16.mxu0 0
    %1074 = vmatpush1.bf16.xpose.msra.mxu0 0
    %1075 = vmatprep.subr.bf16.mxu0 0
    %1076 = vmatpush1.bf16.xpose.msra.mxu0 0
    %1077 = vmatprep.subr.bf16.mxu0 0
    %1078 = vmatpush1.bf16.xpose.msra.mxu0 0
    %1079 = vmatprep.subr.bf16.mxu0 0
    %1080 = vmatpush1.bf16.xpose.msra.mxu0 0
    %1081 = vmatprep.subr.bf16.mxu0 0
    %1082 = vmatpush1.bf16.xpose.msra.mxu0 0
    %1083 = vmatprep.subr.bf16.mxu0 0
    %1084 = vmatpush1.bf16.xpose.msra.mxu0 0
    %1085 = vmatprep.subr.bf16.mxu0 0
    %1086 = vmatpush1.bf16.xpose.msra.mxu0 %v1069
    %1087 = vmatprep.subr.bf16.mxu0 0
    %1088 = vmatpush2.bf16.xpose.msra.mxu0 0
    %1089 = vmatprep.subr.bf16.mxu0 0
    %1090 = vmatpush2.bf16.xpose.msra.mxu0 0
    %1091 = vmatprep.subr.bf16.mxu0 0
    %1092 = vmatpush2.bf16.xpose.msra.mxu0 0
    %1093 = vmatprep.subr.bf16.mxu0 0
    %1094 = vmatpush2.bf16.xpose.msra.mxu0 0
    %1095 = vmatprep.subr.bf16.mxu0 0
    %1096 = vmatpush2.bf16.xpose.msra.mxu0 0
    %1097 = vmatprep.subr.bf16.mxu0 0
    %1098 = vmatpush2.bf16.xpose.msra.mxu0 0
    %1099 = vmatprep.subr.bf16.mxu0 0
    %1100 = vmatpush2.bf16.xpose.msra.mxu0 0
    %1101 = vmatprep.subr.bf16.mxu0 0
    %1102 = vmatpush2.bf16.xpose.msra.mxu0 0
    %1103 = vmatprep.mubr.bf16.mxu0 0
    %1104 = vmatmul.mubr.bf16.gmra.mxu0 %v1066
    %v1105 = vpop.f32.mrf.mxu0
    %v1106 = vadd.f32 0.0, %v1105
    %v1107 = vpop.f32.mrf.mxu0
    %v1108 = vpop.f32.mrf.mxu0
    %v1109 = vadd.f32 0.0, %v1108
    %v1110 = vpop.f32.mrf.mxu0
    %1111 = vdwg.mxu0
    %v1113 = vsel %vm1064, %v1054, 0
    %v1116 = vsel %vm1064, %v1058, 0
    %1118 = vmatprep.subr.bf16.mxu0 0
    %1119 = vmatpush1.bf16.xpose.msra.mxu0 0
    %1120 = vmatprep.subr.bf16.mxu0 0
    %1121 = vmatpush1.bf16.xpose.msra.mxu0 0
    %1122 = vmatprep.subr.bf16.mxu0 0
    %1123 = vmatpush1.bf16.xpose.msra.mxu0 0
    %1124 = vmatprep.subr.bf16.mxu0 0
    %1125 = vmatpush1.bf16.xpose.msra.mxu0 0
    %1126 = vmatprep.subr.bf16.mxu0 0
    %1127 = vmatpush1.bf16.xpose.msra.mxu0 0
    %1128 = vmatprep.subr.bf16.mxu0 0
    %1129 = vmatpush1.bf16.xpose.msra.mxu0 0
    %1130 = vmatprep.subr.bf16.mxu0 0
    %1131 = vmatpush1.bf16.xpose.msra.mxu0 0
    %1132 = vmatprep.subr.bf16.mxu0 0
    %1133 = vmatpush1.bf16.xpose.msra.mxu0 %v1116
    %1134 = vmatprep.subr.bf16.mxu0 0
    %1135 = vmatpush2.bf16.xpose.msra.mxu0 0
    %1136 = vmatprep.subr.bf16.mxu0 0
    %1137 = vmatpush2.bf16.xpose.msra.mxu0 0
    %1138 = vmatprep.subr.bf16.mxu0 0
    %1139 = vmatpush2.bf16.xpose.msra.mxu0 0
    %1140 = vmatprep.subr.bf16.mxu0 0
    %1141 = vmatpush2.bf16.xpose.msra.mxu0 0
    %1142 = vmatprep.subr.bf16.mxu0 0
    %1143 = vmatpush2.bf16.xpose.msra.mxu0 0
    %1144 = vmatprep.subr.bf16.mxu0 0
    %1145 = vmatpush2.bf16.xpose.msra.mxu0 0
    %1146 = vmatprep.subr.bf16.mxu0 0
    %1147 = vmatpush2.bf16.xpose.msra.mxu0 0
    %1148 = vmatprep.subr.bf16.mxu0 0
    %1149 = vmatpush2.bf16.xpose.msra.mxu0 0
    %1150 = vmatprep.mubr.bf16.mxu0 0
    %1151 = vmatmul.mubr.bf16.gmra.mxu0 %v1113
    %v1152 = vpop.f32.mrf.mxu0
    %v1153 = vadd.f32 0.0, %v1152
    %v1154 = vpop.f32.mrf.mxu0
    %v1155 = vpop.f32.mrf.mxu0
    %v1156 = vadd.f32 0.0, %v1155
    %v1157 = vpop.f32.mrf.mxu0
    %1158 = vdwg.mxu0
    %vm1159 = vcmask 130048
    %v1160 = vsel %vm1159, %v1106, -inf
    %1161 = vmax.xlane.f32.xlu0 %v1160
    %v1162 = vpop.xlane.xlu0 %1161
    %v1163 = vsel %vm1159, %v1109, -inf
    %1164 = vmax.xlane.f32.xlu0 %v1163
    %v1165 = vpop.xlane.xlu0 %1164
    %v1166 = vsel %vm1159, %v1153, -inf
    %1167 = vmax.xlane.f32.xlu0 %v1166
    %v1168 = vpop.xlane.xlu0 %1167
    %v1169 = vsel %vm1159, %v1156, -inf
    %1170 = vmax.xlane.f32.xlu0 %v1169
    %v1171 = vpop.xlane.xlu0 %1170
    %v1172 = vsub.f32 %v1106, %v1162
    %v1173 = vsub.f32 %v1109, %v1165
    %v1174 = vsub.f32 %v1153, %v1168
    %v1175 = vsub.f32 %v1156, %v1171
    %v1176 = vmul.f32 %v1172, 1.442695
    %v1177 = vpow.pop %v1176
    %v1178 = vmul.f32 %v1173, 1.442695
    %v1179 = vpow.pop %v1178
    %v1180 = vmul.f32 %v1174, 1.442695
    %v1181 = vpow.pop %v1180
    %v1182 = vmul.f32 %v1175, 1.442695
    %v1183 = vpow.pop %v1182
    %v1184 = vsel %vm1159, %v1177, 0.0
    %1185 = vadd.xlane.f32.xlu0 %v1184
    %v1186 = vpop.xlane.xlu0 %1185
    %v1187 = vsel %vm1159, %v1179, 0.0
    %1188 = vadd.xlane.f32.xlu0 %v1187
    %v1189 = vpop.xlane.xlu0 %1188
    %v1190 = vsel %vm1159, %v1181, 0.0
    %1191 = vadd.xlane.f32.xlu0 %v1190
    %v1192 = vpop.xlane.xlu0 %1191
    %v1193 = vsel %vm1159, %v1183, 0.0
    %1194 = vadd.xlane.f32.xlu0 %v1193
    %v1195 = vpop.xlane.xlu0 %1194
    %v1196 = vpack.c.bf16 %v1179, %v1177
    %v1197 = vpack.c.bf16 %v1183, %v1181
    %v1199 = vsel %vm1159, %v1196, 0
    %1201 = vmatprep.subr.bf16.mxu0 0
    %1202 = vmatpush1.bf16.msra.mxu0 0
    %1203 = vmatprep.subr.bf16.mxu0 0
    %1204 = vmatpush1.bf16.msra.mxu0 0
    %1205 = vmatprep.subr.bf16.mxu0 0
    %1206 = vmatpush1.bf16.msra.mxu0 0
    %1207 = vmatprep.subr.bf16.mxu0 0
    %1208 = vmatpush1.bf16.msra.mxu0 0
    %1209 = vmatprep.subr.bf16.mxu0 0
    %1210 = vmatpush1.bf16.msra.mxu0 0
    %1211 = vmatprep.subr.bf16.mxu0 0
    %1212 = vmatpush1.bf16.msra.mxu0 0
    %1213 = vmatprep.subr.bf16.mxu0 0
    %1214 = vmatpush1.bf16.msra.mxu0 0
    %1215 = vmatprep.subr.bf16.mxu0 0
    %1216 = vmatpush1.bf16.msra.mxu0 %v1060
    %1217 = vmatprep.subr.bf16.mxu0 0
    %1218 = vmatpush2.bf16.msra.mxu0 0
    %1219 = vmatprep.subr.bf16.mxu0 0
    %1220 = vmatpush2.bf16.msra.mxu0 0
    %1221 = vmatprep.subr.bf16.mxu0 0
    %1222 = vmatpush2.bf16.msra.mxu0 0
    %1223 = vmatprep.subr.bf16.mxu0 0
    %1224 = vmatpush2.bf16.msra.mxu0 0
    %1225 = vmatprep.subr.bf16.mxu0 0
    %1226 = vmatpush2.bf16.msra.mxu0 0
    %1227 = vmatprep.subr.bf16.mxu0 0
    %1228 = vmatpush2.bf16.msra.mxu0 0
    %1229 = vmatprep.subr.bf16.mxu0 0
    %1230 = vmatpush2.bf16.msra.mxu0 0
    %1231 = vmatprep.subr.bf16.mxu0 0
    %1232 = vmatpush2.bf16.msra.mxu0 0
    %1233 = vmatprep.mubr.bf16.mxu0 0
    %1234 = vmatmul.mubr.bf16.gmra.mxu0 %v1199
    %v1235 = vpop.f32.mrf.mxu0
    %v1236 = vadd.f32 0.0, %v1235
    %v1237 = vpop.f32.mrf.mxu0
    %v1238 = vpop.f32.mrf.mxu0
    %v1239 = vadd.f32 0.0, %v1238
    %v1240 = vpop.f32.mrf.mxu0
    %1241 = vdwg.mxu0
    %v1243 = vsel %vm1159, %v1197, 0
    %1245 = vmatprep.subr.bf16.mxu0 0
    %1246 = vmatpush1.bf16.msra.mxu0 0
    %1247 = vmatprep.subr.bf16.mxu0 0
    %1248 = vmatpush1.bf16.msra.mxu0 0
    %1249 = vmatprep.subr.bf16.mxu0 0
    %1250 = vmatpush1.bf16.msra.mxu0 0
    %1251 = vmatprep.subr.bf16.mxu0 0
    %1252 = vmatpush1.bf16.msra.mxu0 0
    %1253 = vmatprep.subr.bf16.mxu0 0
    %1254 = vmatpush1.bf16.msra.mxu0 0
    %1255 = vmatprep.subr.bf16.mxu0 0
    %1256 = vmatpush1.bf16.msra.mxu0 0
    %1257 = vmatprep.subr.bf16.mxu0 0
    %1258 = vmatpush1.bf16.msra.mxu0 0
    %1259 = vmatprep.subr.bf16.mxu0 0
    %1260 = vmatpush1.bf16.msra.mxu0 %v1062
    %1261 = vmatprep.subr.bf16.mxu0 0
    %1262 = vmatpush2.bf16.msra.mxu0 0
    %1263 = vmatprep.subr.bf16.mxu0 0
    %1264 = vmatpush2.bf16.msra.mxu0 0
    %1265 = vmatprep.subr.bf16.mxu0 0
    %1266 = vmatpush2.bf16.msra.mxu0 0
    %1267 = vmatprep.subr.bf16.mxu0 0
    %1268 = vmatpush2.bf16.msra.mxu0 0
    %1269 = vmatprep.subr.bf16.mxu0 0
    %1270 = vmatpush2.bf16.msra.mxu0 0
    %1271 = vmatprep.subr.bf16.mxu0 0
    %1272 = vmatpush2.bf16.msra.mxu0 0
    %1273 = vmatprep.subr.bf16.mxu0 0
    %1274 = vmatpush2.bf16.msra.mxu0 0
    %1275 = vmatprep.subr.bf16.mxu0 0
    %1276 = vmatpush2.bf16.msra.mxu0 0
    %1277 = vmatprep.mubr.bf16.mxu0 0
    %1278 = vmatmul.mubr.bf16.gmra.mxu0 %v1243
    %v1279 = vpop.f32.mrf.mxu0
    %v1280 = vadd.f32 0.0, %v1279
    %v1281 = vpop.f32.mrf.mxu0
    %v1282 = vpop.f32.mrf.mxu0
    %v1283 = vadd.f32 0.0, %v1282
    %v1284 = vpop.f32.mrf.mxu0
    %1285 = vdwg.mxu0
    %v1286 = vrcp.pop %v1186
    %v1287 = vrcp.pop %v1189
    %v1288 = vrcp.pop %v1192
    %v1289 = vrcp.pop %v1195
    %v1290 = vmul.f32 %v1236, %v1286
    %v1291 = vmul.f32 %v1239, %v1287
    %v1292 = vmul.f32 %v1280, %v1288
    %v1293 = vmul.f32 %v1283, %v1289
    %v1294 = vpack.c.bf16 %v1291, %v1290
    %v1295 = vpack.c.bf16 %v1293, %v1292
    %v1298 = vunpack.c.l.b16 %v1294
    %v1299 = vunpack.c.h.b16 %v1294
    %v1300 = vunpack.c.l.b16 %v1295
    %v1301 = vunpack.c.h.b16 %v1295
    %v1302 = vpack.c.b16 %v1298, %v1298
    %v1303 = vpack.c.b16 %v1299, %v1299
    %v1304 = vpack.c.b16 %v1300, %v1300
    %v1305 = vpack.c.b16 %v1301, %v1301
    %vm1310 = vcmask 519168
    %1311 = vst.msk [vmem:[#allocation2] sm:$0xf] %vm1310, %v1302
    %1312 = vst.msk [vmem:[#allocation2 + $0x8] sm:$0xf] %vm1310, %v1303
    %1313 = vst.msk [vmem:[#allocation2 + $0x10] sm:$0xf] %vm1310, %v1304
    %1314 = vst.msk [vmem:[#allocation2 + $0x18] sm:$0xf] %vm1310, %v1305
    %1316 = vrot.lane.b32.xlu0 %v1052, 64
    %v1317 = vpop.permute.xlu0 %1316
    %1319 = vrot.lane.b32.xlu0 %v1056, 64
    %v1320 = vpop.permute.xlu0 %1319
    %v1322 = vsel %vm1064, %v1317, 0
    %v1325 = vsel %vm1064, %v1320, 0
    %1327 = vmatprep.subr.bf16.mxu0 0
    %1328 = vmatpush1.bf16.xpose.msra.mxu0 0
    %1329 = vmatprep.subr.bf16.mxu0 0
    %1330 = vmatpush1.bf16.xpose.msra.mxu0 0
    %1331 = vmatprep.subr.bf16.mxu0 0
    %1332 = vmatpush1.bf16.xpose.msra.mxu0 0
    %1333 = vmatprep.subr.bf16.mxu0 0
    %1334 = vmatpush1.bf16.xpose.msra.mxu0 0
    %1335 = vmatprep.subr.bf16.mxu0 0
    %1336 = vmatpush1.bf16.xpose.msra.mxu0 0
    %1337 = vmatprep.subr.bf16.mxu0 0
    %1338 = vmatpush1.bf16.xpose.msra.mxu0 0
    %1339 = vmatprep.subr.bf16.mxu0 0
    %1340 = vmatpush1.bf16.xpose.msra.mxu0 0
    %1341 = vmatprep.subr.bf16.mxu0 0
    %1342 = vmatpush1.bf16.xpose.msra.mxu0 %v1325
    %1343 = vmatprep.subr.bf16.mxu0 0
    %1344 = vmatpush2.bf16.xpose.msra.mxu0 0
    %1345 = vmatprep.subr.bf16.mxu0 0
    %1346 = vmatpush2.bf16.xpose.msra.mxu0 0
    %1347 = vmatprep.subr.bf16.mxu0 0
    %1348 = vmatpush2.bf16.xpose.msra.mxu0 0
    %1349 = vmatprep.subr.bf16.mxu0 0
    %1350 = vmatpush2.bf16.xpose.msra.mxu0 0
    %1351 = vmatprep.subr.bf16.mxu0 0
    %1352 = vmatpush2.bf16.xpose.msra.mxu0 0
    %1353 = vmatprep.subr.bf16.mxu0 0
    %1354 = vmatpush2.bf16.xpose.msra.mxu0 0
    %1355 = vmatprep.subr.bf16.mxu0 0
    %1356 = vmatpush2.bf16.xpose.msra.mxu0 0
    %1357 = vmatprep.subr.bf16.mxu0 0
    %1358 = vmatpush2.bf16.xpose.msra.mxu0 0
    %1359 = vmatprep.mubr.bf16.mxu0 0
    %1360 = vmatmul.mubr.bf16.gmra.mxu0 %v1322
    %v1361 = vpop.f32.mrf.mxu0
    %v1362 = vadd.f32 0.0, %v1361
    %v1363 = vpop.f32.mrf.mxu0
    %v1364 = vpop.f32.mrf.mxu0
    %v1365 = vadd.f32 0.0, %v1364
    %v1366 = vpop.f32.mrf.mxu0
    %1367 = vdwg.mxu0
    %1369 = vrot.lane.b32.xlu0 %v1054, 64
    %v1370 = vpop.permute.xlu0 %1369
    %1372 = vrot.lane.b32.xlu0 %v1058, 64
    %v1373 = vpop.permute.xlu0 %1372
    %v1375 = vsel %vm1064, %v1370, 0
    %v1378 = vsel %vm1064, %v1373, 0
    %1380 = vmatprep.subr.bf16.mxu0 0
    %1381 = vmatpush1.bf16.xpose.msra.mxu0 0
    %1382 = vmatprep.subr.bf16.mxu0 0
    %1383 = vmatpush1.bf16.xpose.msra.mxu0 0
    %1384 = vmatprep.subr.bf16.mxu0 0
    %1385 = vmatpush1.bf16.xpose.msra.mxu0 0
    %1386 = vmatprep.subr.bf16.mxu0 0
    %1387 = vmatpush1.bf16.xpose.msra.mxu0 0
    %1388 = vmatprep.subr.bf16.mxu0 0
    %1389 = vmatpush1.bf16.xpose.msra.mxu0 0
    %1390 = vmatprep.subr.bf16.mxu0 0
    %1391 = vmatpush1.bf16.xpose.msra.mxu0 0
    %1392 = vmatprep.subr.bf16.mxu0 0
    %1393 = vmatpush1.bf16.xpose.msra.mxu0 0
    %1394 = vmatprep.subr.bf16.mxu0 0
    %1395 = vmatpush1.bf16.xpose.msra.mxu0 %v1378
    %1396 = vmatprep.subr.bf16.mxu0 0
    %1397 = vmatpush2.bf16.xpose.msra.mxu0 0
    %1398 = vmatprep.subr.bf16.mxu0 0
    %1399 = vmatpush2.bf16.xpose.msra.mxu0 0
    %1400 = vmatprep.subr.bf16.mxu0 0
    %1401 = vmatpush2.bf16.xpose.msra.mxu0 0
    %1402 = vmatprep.subr.bf16.mxu0 0
    %1403 = vmatpush2.bf16.xpose.msra.mxu0 0
    %1404 = vmatprep.subr.bf16.mxu0 0
    %1405 = vmatpush2.bf16.xpose.msra.mxu0 0
    %1406 = vmatprep.subr.bf16.mxu0 0
    %1407 = vmatpush2.bf16.xpose.msra.mxu0 0
    %1408 = vmatprep.subr.bf16.mxu0 0
    %1409 = vmatpush2.bf16.xpose.msra.mxu0 0
    %1410 = vmatprep.subr.bf16.mxu0 0
    %1411 = vmatpush2.bf16.xpose.msra.mxu0 0
    %1412 = vmatprep.mubr.bf16.mxu0 0
    %1413 = vmatmul.mubr.bf16.gmra.mxu0 %v1375
    %v1414 = vpop.f32.mrf.mxu0
    %v1415 = vadd.f32 0.0, %v1414
    %v1416 = vpop.f32.mrf.mxu0
    %v1417 = vpop.f32.mrf.mxu0
    %v1418 = vadd.f32 0.0, %v1417
    %v1419 = vpop.f32.mrf.mxu0
    %1420 = vdwg.mxu0
    %v1421 = vsel %vm1159, %v1362, -inf
    %1422 = vmax.xlane.f32.xlu0 %v1421
    %v1423 = vpop.xlane.xlu0 %1422
    %v1424 = vsel %vm1159, %v1365, -inf
    %1425 = vmax.xlane.f32.xlu0 %v1424
    %v1426 = vpop.xlane.xlu0 %1425
    %v1427 = vsel %vm1159, %v1415, -inf
    %1428 = vmax.xlane.f32.xlu0 %v1427
    %v1429 = vpop.xlane.xlu0 %1428
    %v1430 = vsel %vm1159, %v1418, -inf
    %1431 = vmax.xlane.f32.xlu0 %v1430
    %v1432 = vpop.xlane.xlu0 %1431
    %v1433 = vsub.f32 %v1362, %v1423
    %v1434 = vsub.f32 %v1365, %v1426
    %v1435 = vsub.f32 %v1415, %v1429
    %v1436 = vsub.f32 %v1418, %v1432
    %v1437 = vmul.f32 %v1433, 1.442695
    %v1438 = vpow.pop %v1437
    %v1439 = vmul.f32 %v1434, 1.442695
    %v1440 = vpow.pop %v1439
    %v1441 = vmul.f32 %v1435, 1.442695
    %v1442 = vpow.pop %v1441
    %v1443 = vmul.f32 %v1436, 1.442695
    %v1444 = vpow.pop %v1443
    %v1445 = vsel %vm1159, %v1438, 0.0
    %1446 = vadd.xlane.f32.xlu0 %v1445
    %v1447 = vpop.xlane.xlu0 %1446
    %v1448 = vsel %vm1159, %v1440, 0.0
    %1449 = vadd.xlane.f32.xlu0 %v1448
    %v1450 = vpop.xlane.xlu0 %1449
    %v1451 = vsel %vm1159, %v1442, 0.0
    %1452 = vadd.xlane.f32.xlu0 %v1451
    %v1453 = vpop.xlane.xlu0 %1452
    %v1454 = vsel %vm1159, %v1444, 0.0
    %1455 = vadd.xlane.f32.xlu0 %v1454
    %v1456 = vpop.xlane.xlu0 %1455
    %v1457 = vpack.c.bf16 %v1440, %v1438
    %v1458 = vpack.c.bf16 %v1444, %v1442
    %1460 = vrot.lane.b32.xlu0 %v1060, 64
    %v1461 = vpop.permute.xlu0 %1460
    %v1464 = vsel %vm1159, %v1457, 0
    %1466 = vmatprep.subr.bf16.mxu0 0
    %1467 = vmatpush1.bf16.msra.mxu0 0
    %1468 = vmatprep.subr.bf16.mxu0 0
    %1469 = vmatpush1.bf16.msra.mxu0 0
    %1470 = vmatprep.subr.bf16.mxu0 0
    %1471 = vmatpush1.bf16.msra.mxu0 0
    %1472 = vmatprep.subr.bf16.mxu0 0
    %1473 = vmatpush1.bf16.msra.mxu0 0
    %1474 = vmatprep.subr.bf16.mxu0 0
    %1475 = vmatpush1.bf16.msra.mxu0 0
    %1476 = vmatprep.subr.bf16.mxu0 0
    %1477 = vmatpush1.bf16.msra.mxu0 0
    %1478 = vmatprep.subr.bf16.mxu0 0
    %1479 = vmatpush1.bf16.msra.mxu0 0
    %1480 = vmatprep.subr.bf16.mxu0 0
    %1481 = vmatpush1.bf16.msra.mxu0 %v1461
    %1482 = vmatprep.subr.bf16.mxu0 0
    %1483 = vmatpush2.bf16.msra.mxu0 0
    %1484 = vmatprep.subr.bf16.mxu0 0
    %1485 = vmatpush2.bf16.msra.mxu0 0
    %1486 = vmatprep.subr.bf16.mxu0 0
    %1487 = vmatpush2.bf16.msra.mxu0 0
    %1488 = vmatprep.subr.bf16.mxu0 0
    %1489 = vmatpush2.bf16.msra.mxu0 0
    %1490 = vmatprep.subr.bf16.mxu0 0
    %1491 = vmatpush2.bf16.msra.mxu0 0
    %1492 = vmatprep.subr.bf16.mxu0 0
    %1493 = vmatpush2.bf16.msra.mxu0 0
    %1494 = vmatprep.subr.bf16.mxu0 0
    %1495 = vmatpush2.bf16.msra.mxu0 0
    %1496 = vmatprep.subr.bf16.mxu0 0
    %1497 = vmatpush2.bf16.msra.mxu0 0
    %1498 = vmatprep.mubr.bf16.mxu0 0
    %1499 = vmatmul.mubr.bf16.gmra.mxu0 %v1464
    %v1500 = vpop.f32.mrf.mxu0
    %v1501 = vadd.f32 0.0, %v1500
    %v1502 = vpop.f32.mrf.mxu0
    %v1503 = vpop.f32.mrf.mxu0
    %v1504 = vadd.f32 0.0, %v1503
    %v1505 = vpop.f32.mrf.mxu0
    %1506 = vdwg.mxu0
    %1508 = vrot.lane.b32.xlu0 %v1062, 64
    %v1509 = vpop.permute.xlu0 %1508
    %v1512 = vsel %vm1159, %v1458, 0
    %1514 = vmatprep.subr.bf16.mxu0 0
    %1515 = vmatpush1.bf16.msra.mxu0 0
    %1516 = vmatprep.subr.bf16.mxu0 0
    %1517 = vmatpush1.bf16.msra.mxu0 0
    %1518 = vmatprep.subr.bf16.mxu0 0
    %1519 = vmatpush1.bf16.msra.mxu0 0
    %1520 = vmatprep.subr.bf16.mxu0 0
    %1521 = vmatpush1.bf16.msra.mxu0 0
    %1522 = vmatprep.subr.bf16.mxu0 0
    %1523 = vmatpush1.bf16.msra.mxu0 0
    %1524 = vmatprep.subr.bf16.mxu0 0
    %1525 = vmatpush1.bf16.msra.mxu0 0
    %1526 = vmatprep.subr.bf16.mxu0 0
    %1527 = vmatpush1.bf16.msra.mxu0 0
    %1528 = vmatprep.subr.bf16.mxu0 0
    %1529 = vmatpush1.bf16.msra.mxu0 %v1509
    %1530 = vmatprep.subr.bf16.mxu0 0
    %1531 = vmatpush2.bf16.msra.mxu0 0
    %1532 = vmatprep.subr.bf16.mxu0 0
    %1533 = vmatpush2.bf16.msra.mxu0 0
    %1534 = vmatprep.subr.bf16.mxu0 0
    %1535 = vmatpush2.bf16.msra.mxu0 0
    %1536 = vmatprep.subr.bf16.mxu0 0
    %1537 = vmatpush2.bf16.msra.mxu0 0
    %1538 = vmatprep.subr.bf16.mxu0 0
    %1539 = vmatpush2.bf16.msra.mxu0 0
    %1540 = vmatprep.subr.bf16.mxu0 0
    %1541 = vmatpush2.bf16.msra.mxu0 0
    %1542 = vmatprep.subr.bf16.mxu0 0
    %1543 = vmatpush2.bf16.msra.mxu0 0
    %1544 = vmatprep.subr.bf16.mxu0 0
    %1545 = vmatpush2.bf16.msra.mxu0 0
    %1546 = vmatprep.mubr.bf16.mxu0 0
    %1547 = vmatmul.mubr.bf16.gmra.mxu0 %v1512
    %v1548 = vpop.f32.mrf.mxu0
    %v1549 = vadd.f32 0.0, %v1548
    %v1550 = vpop.f32.mrf.mxu0
    %v1551 = vpop.f32.mrf.mxu0
    %v1552 = vadd.f32 0.0, %v1551
    %v1553 = vpop.f32.mrf.mxu0
    %1554 = vdwg.mxu0
    %v1555 = vrcp.pop %v1447
    %v1556 = vrcp.pop %v1450
    %v1557 = vrcp.pop %v1453
    %v1558 = vrcp.pop %v1456
    %v1559 = vmul.f32 %v1501, %v1555
    %v1560 = vmul.f32 %v1504, %v1556
    %v1561 = vmul.f32 %v1549, %v1557
    %v1562 = vmul.f32 %v1552, %v1558
    %v1563 = vpack.c.bf16 %v1560, %v1559
    %v1564 = vpack.c.bf16 %v1562, %v1561
    %v1567 = vunpack.c.l.b16 %v1563
    %v1568 = vunpack.c.h.b16 %v1563
    %v1569 = vunpack.c.l.b16 %v1564
    %v1570 = vunpack.c.h.b16 %v1564
    %v1571 = vpack.c.b16 %v1567, %v1567
    %v1572 = vpack.c.b16 %v1568, %v1568
    %v1573 = vpack.c.b16 %v1569, %v1569
    %v1574 = vpack.c.b16 %v1570, %v1570
    %1575 = vrot.lane.b32.xlu0 %v1571, 64
    %v1576 = vpop.permute.xlu0 %1575
    %1577 = vrot.lane.b32.xlu0 %v1572, 64
    %v1578 = vpop.permute.xlu0 %1577
    %1579 = vrot.lane.b32.xlu0 %v1573, 64
    %v1580 = vpop.permute.xlu0 %1579
    %1581 = vrot.lane.b32.xlu0 %v1574, 64
    %v1582 = vpop.permute.xlu0 %1581
    %vm1587 = vcmask 1043968
    %1588 = vst.msk [vmem:[#allocation2] sm:$0xf] %vm1587, %v1576
    %1589 = vst.msk [vmem:[#allocation2 + $0x8] sm:$0xf] %vm1587, %v1578
    %1590 = vst.msk [vmem:[#allocation2 + $0x10] sm:$0xf] %vm1587, %v1580
    %1591 = vst.msk [vmem:[#allocation2 + $0x18] sm:$0xf] %vm1587, %v1582
    %v1593 = vsel %vm1064, %v1053, 0
    %v1596 = vsel %vm1064, %v1057, 0
    %1598 = vmatprep.subr.bf16.mxu0 0
    %1599 = vmatpush1.bf16.xpose.msra.mxu0 0
    %1600 = vmatprep.subr.bf16.mxu0 0
    %1601 = vmatpush1.bf16.xpose.msra.mxu0 0
    %1602 = vmatprep.subr.bf16.mxu0 0
    %1603 = vmatpush1.bf16.xpose.msra.mxu0 0
    %1604 = vmatprep.subr.bf16.mxu0 0
    %1605 = vmatpush1.bf16.xpose.msra.mxu0 0
    %1606 = vmatprep.subr.bf16.mxu0 0
    %1607 = vmatpush1.bf16.xpose.msra.mxu0 0
    %1608 = vmatprep.subr.bf16.mxu0 0
    %1609 = vmatpush1.bf16.xpose.msra.mxu0 0
    %1610 = vmatprep.subr.bf16.mxu0 0
    %1611 = vmatpush1.bf16.xpose.msra.mxu0 0
    %1612 = vmatprep.subr.bf16.mxu0 0
    %1613 = vmatpush1.bf16.xpose.msra.mxu0 %v1596
    %1614 = vmatprep.subr.bf16.mxu0 0
    %1615 = vmatpush2.bf16.xpose.msra.mxu0 0
    %1616 = vmatprep.subr.bf16.mxu0 0
    %1617 = vmatpush2.bf16.xpose.msra.mxu0 0
    %1618 = vmatprep.subr.bf16.mxu0 0
    %1619 = vmatpush2.bf16.xpose.msra.mxu0 0
    %1620 = vmatprep.subr.bf16.mxu0 0
    %1621 = vmatpush2.bf16.xpose.msra.mxu0 0
    %1622 = vmatprep.subr.bf16.mxu0 0
    %1623 = vmatpush2.bf16.xpose.msra.mxu0 0
    %1624 = vmatprep.subr.bf16.mxu0 0
    %1625 = vmatpush2.bf16.xpose.msra.mxu0 0
    %1626 = vmatprep.subr.bf16.mxu0 0
    %1627 = vmatpush2.bf16.xpose.msra.mxu0 0
    %1628 = vmatprep.subr.bf16.mxu0 0
    %1629 = vmatpush2.bf16.xpose.msra.mxu0 0
    %1630 = vmatprep.mubr.bf16.mxu0 0
    %1631 = vmatmul.mubr.bf16.gmra.mxu0 %v1593
    %v1632 = vpop.f32.mrf.mxu0
    %v1633 = vadd.f32 0.0, %v1632
    %v1634 = vpop.f32.mrf.mxu0
    %v1635 = vpop.f32.mrf.mxu0
    %v1636 = vadd.f32 0.0, %v1635
    %v1637 = vpop.f32.mrf.mxu0
    %1638 = vdwg.mxu0
    %v1640 = vsel %vm1064, %v1055, 0
    %v1643 = vsel %vm1064, %v1059, 0
    %1645 = vmatprep.subr.bf16.mxu0 0
    %1646 = vmatpush1.bf16.xpose.msra.mxu0 0
    %1647 = vmatprep.subr.bf16.mxu0 0
    %1648 = vmatpush1.bf16.xpose.msra.mxu0 0
    %1649 = vmatprep.subr.bf16.mxu0 0
    %1650 = vmatpush1.bf16.xpose.msra.mxu0 0
    %1651 = vmatprep.subr.bf16.mxu0 0
    %1652 = vmatpush1.bf16.xpose.msra.mxu0 0
    %1653 = vmatprep.subr.bf16.mxu0 0
    %1654 = vmatpush1.bf16.xpose.msra.mxu0 0
    %1655 = vmatprep.subr.bf16.mxu0 0
    %1656 = vmatpush1.bf16.xpose.msra.mxu0 0
    %1657 = vmatprep.subr.bf16.mxu0 0
    %1658 = vmatpush1.bf16.xpose.msra.mxu0 0
    %1659 = vmatprep.subr.bf16.mxu0 0
    %1660 = vmatpush1.bf16.xpose.msra.mxu0 %v1643
    %1661 = vmatprep.subr.bf16.mxu0 0
    %1662 = vmatpush2.bf16.xpose.msra.mxu0 0
    %1663 = vmatprep.subr.bf16.mxu0 0
    %1664 = vmatpush2.bf16.xpose.msra.mxu0 0
    %1665 = vmatprep.subr.bf16.mxu0 0
    %1666 = vmatpush2.bf16.xpose.msra.mxu0 0
    %1667 = vmatprep.subr.bf16.mxu0 0
    %1668 = vmatpush2.bf16.xpose.msra.mxu0 0
    %1669 = vmatprep.subr.bf16.mxu0 0
    %1670 = vmatpush2.bf16.xpose.msra.mxu0 0
    %1671 = vmatprep.subr.bf16.mxu0 0
    %1672 = vmatpush2.bf16.xpose.msra.mxu0 0
    %1673 = vmatprep.subr.bf16.mxu0 0
    %1674 = vmatpush2.bf16.xpose.msra.mxu0 0
    %1675 = vmatprep.subr.bf16.mxu0 0
    %1676 = vmatpush2.bf16.xpose.msra.mxu0 0
    %1677 = vmatprep.mubr.bf16.mxu0 0
    %1678 = vmatmul.mubr.bf16.gmra.mxu0 %v1640
    %v1679 = vpop.f32.mrf.mxu0
    %v1680 = vadd.f32 0.0, %v1679
    %v1681 = vpop.f32.mrf.mxu0
    %v1682 = vpop.f32.mrf.mxu0
    %v1683 = vadd.f32 0.0, %v1682
    %v1684 = vpop.f32.mrf.mxu0
    %1685 = vdwg.mxu0
    %v1686 = vsel %vm1159, %v1633, -inf
    %1687 = vmax.xlane.f32.xlu0 %v1686
    %v1688 = vpop.xlane.xlu0 %1687
    %v1689 = vsel %vm1159, %v1636, -inf
    %1690 = vmax.xlane.f32.xlu0 %v1689
    %v1691 = vpop.xlane.xlu0 %1690
    %v1692 = vsel %vm1159, %v1680, -inf
    %1693 = vmax.xlane.f32.xlu0 %v1692
    %v1694 = vpop.xlane.xlu0 %1693
    %v1695 = vsel %vm1159, %v1683, -inf
    %1696 = vmax.xlane.f32.xlu0 %v1695
    %v1697 = vpop.xlane.xlu0 %1696
    %v1698 = vsub.f32 %v1633, %v1688
    %v1699 = vsub.f32 %v1636, %v1691
    %v1700 = vsub.f32 %v1680, %v1694
    %v1701 = vsub.f32 %v1683, %v1697
    %v1702 = vmul.f32 %v1698, 1.442695
    %v1703 = vpow.pop %v1702
    %v1704 = vmul.f32 %v1699, 1.442695
    %v1705 = vpow.pop %v1704
    %v1706 = vmul.f32 %v1700, 1.442695
    %v1707 = vpow.pop %v1706
    %v1708 = vmul.f32 %v1701, 1.442695
    %v1709 = vpow.pop %v1708
    %v1710 = vsel %vm1159, %v1703, 0.0
    %1711 = vadd.xlane.f32.xlu0 %v1710
    %v1712 = vpop.xlane.xlu0 %1711
    %v1713 = vsel %vm1159, %v1705, 0.0
    %1714 = vadd.xlane.f32.xlu0 %v1713
    %v1715 = vpop.xlane.xlu0 %1714
    %v1716 = vsel %vm1159, %v1707, 0.0
    %1717 = vadd.xlane.f32.xlu0 %v1716
    %v1718 = vpop.xlane.xlu0 %1717
    %v1719 = vsel %vm1159, %v1709, 0.0
    %1720 = vadd.xlane.f32.xlu0 %v1719
    %v1721 = vpop.xlane.xlu0 %1720
    %v1722 = vpack.c.bf16 %v1705, %v1703
    %v1723 = vpack.c.bf16 %v1709, %v1707
    %v1725 = vsel %vm1159, %v1722, 0
    %1727 = vmatprep.subr.bf16.mxu0 0
    %1728 = vmatpush1.bf16.msra.mxu0 0
    %1729 = vmatprep.subr.bf16.mxu0 0
    %1730 = vmatpush1.bf16.msra.mxu0 0
    %1731 = vmatprep.subr.bf16.mxu0 0
    %1732 = vmatpush1.bf16.msra.mxu0 0
    %1733 = vmatprep.subr.bf16.mxu0 0
    %1734 = vmatpush1.bf16.msra.mxu0 0
    %1735 = vmatprep.subr.bf16.mxu0 0
    %1736 = vmatpush1.bf16.msra.mxu0 0
    %1737 = vmatprep.subr.bf16.mxu0 0
    %1738 = vmatpush1.bf16.msra.mxu0 0
    %1739 = vmatprep.subr.bf16.mxu0 0
    %1740 = vmatpush1.bf16.msra.mxu0 0
    %1741 = vmatprep.subr.bf16.mxu0 0
    %1742 = vmatpush1.bf16.msra.mxu0 %v1061
    %1743 = vmatprep.subr.bf16.mxu0 0
    %1744 = vmatpush2.bf16.msra.mxu0 0
    %1745 = vmatprep.subr.bf16.mxu0 0
    %1746 = vmatpush2.bf16.msra.mxu0 0
    %1747 = vmatprep.subr.bf16.mxu0 0
    %1748 = vmatpush2.bf16.msra.mxu0 0
    %1749 = vmatprep.subr.bf16.mxu0 0
    %1750 = vmatpush2.bf16.msra.mxu0 0
    %1751 = vmatprep.subr.bf16.mxu0 0
    %1752 = vmatpush2.bf16.msra.mxu0 0
    %1753 = vmatprep.subr.bf16.mxu0 0
    %1754 = vmatpush2.bf16.msra.mxu0 0
    %1755 = vmatprep.subr.bf16.mxu0 0
    %1756 = vmatpush2.bf16.msra.mxu0 0
    %1757 = vmatprep.subr.bf16.mxu0 0
    %1758 = vmatpush2.bf16.msra.mxu0 0
    %1759 = vmatprep.mubr.bf16.mxu0 0
    %1760 = vmatmul.mubr.bf16.gmra.mxu0 %v1725
    %v1761 = vpop.f32.mrf.mxu0
    %v1762 = vadd.f32 0.0, %v1761
    %v1763 = vpop.f32.mrf.mxu0
    %v1764 = vpop.f32.mrf.mxu0
    %v1765 = vadd.f32 0.0, %v1764
    %v1766 = vpop.f32.mrf.mxu0
    %1767 = vdwg.mxu0
    %v1769 = vsel %vm1159, %v1723, 0
    %1771 = vmatprep.subr.bf16.mxu0 0
    %1772 = vmatpush1.bf16.msra.mxu0 0
    %1773 = vmatprep.subr.bf16.mxu0 0
    %1774 = vmatpush1.bf16.msra.mxu0 0
    %1775 = vmatprep.subr.bf16.mxu0 0
    %1776 = vmatpush1.bf16.msra.mxu0 0
    %1777 = vmatprep.subr.bf16.mxu0 0
    %1778 = vmatpush1.bf16.msra.mxu0 0
    %1779 = vmatprep.subr.bf16.mxu0 0
    %1780 = vmatpush1.bf16.msra.mxu0 0
    %1781 = vmatprep.subr.bf16.mxu0 0
    %1782 = vmatpush1.bf16.msra.mxu0 0
    %1783 = vmatprep.subr.bf16.mxu0 0
    %1784 = vmatpush1.bf16.msra.mxu0 0
    %1785 = vmatprep.subr.bf16.mxu0 0
    %1786 = vmatpush1.bf16.msra.mxu0 %v1063
    %1787 = vmatprep.subr.bf16.mxu0 0
    %1788 = vmatpush2.bf16.msra.mxu0 0
    %1789 = vmatprep.subr.bf16.mxu0 0
    %1790 = vmatpush2.bf16.msra.mxu0 0
    %1791 = vmatprep.subr.bf16.mxu0 0
    %1792 = vmatpush2.bf16.msra.mxu0 0
    %1793 = vmatprep.subr.bf16.mxu0 0
    %1794 = vmatpush2.bf16.msra.mxu0 0
    %1795 = vmatprep.subr.bf16.mxu0 0
    %1796 = vmatpush2.bf16.msra.mxu0 0
    %1797 = vmatprep.subr.bf16.mxu0 0
    %1798 = vmatpush2.bf16.msra.mxu0 0
    %1799 = vmatprep.subr.bf16.mxu0 0
    %1800 = vmatpush2.bf16.msra.mxu0 0
    %1801 = vmatprep.subr.bf16.mxu0 0
    %1802 = vmatpush2.bf16.msra.mxu0 0
    %1803 = vmatprep.mubr.bf16.mxu0 0
    %1804 = vmatmul.mubr.bf16.gmra.mxu0 %v1769
    %v1805 = vpop.f32.mrf.mxu0
    %v1806 = vadd.f32 0.0, %v1805
    %v1807 = vpop.f32.mrf.mxu0
    %v1808 = vpop.f32.mrf.mxu0
    %v1809 = vadd.f32 0.0, %v1808
    %v1810 = vpop.f32.mrf.mxu0
    %1811 = vdwg.mxu0
    %v1812 = vrcp.pop %v1712
    %v1813 = vrcp.pop %v1715
    %v1814 = vrcp.pop %v1718
    %v1815 = vrcp.pop %v1721
    %v1816 = vmul.f32 %v1762, %v1812
    %v1817 = vmul.f32 %v1765, %v1813
    %v1818 = vmul.f32 %v1806, %v1814
    %v1819 = vmul.f32 %v1809, %v1815
    %v1820 = vpack.c.bf16 %v1817, %v1816
    %v1821 = vpack.c.bf16 %v1819, %v1818
    %v1824 = vunpack.c.l.b16 %v1820
    %v1825 = vunpack.c.h.b16 %v1820
    %v1826 = vunpack.c.l.b16 %v1821
    %v1827 = vunpack.c.h.b16 %v1821
    %v1828 = vpack.c.b16 %v1824, %v1824
    %v1829 = vpack.c.b16 %v1825, %v1825
    %v1830 = vpack.c.b16 %v1826, %v1826
    %v1831 = vpack.c.b16 %v1827, %v1827
    %1836 = vst.msk [vmem:[#allocation2 + $0x4] sm:$0xf] %vm1310, %v1828
    %1837 = vst.msk [vmem:[#allocation2 + $0xc] sm:$0xf] %vm1310, %v1829
    %1838 = vst.msk [vmem:[#allocation2 + $0x14] sm:$0xf] %vm1310, %v1830
    %1839 = vst.msk [vmem:[#allocation2 + $0x1c] sm:$0xf] %vm1310, %v1831
    %1841 = vrot.lane.b32.xlu0 %v1053, 64
    %v1842 = vpop.permute.xlu0 %1841
    %1844 = vrot.lane.b32.xlu0 %v1057, 64
    %v1845 = vpop.permute.xlu0 %1844
    %v1847 = vsel %vm1064, %v1842, 0
    %v1850 = vsel %vm1064, %v1845, 0
    %1852 = vmatprep.subr.bf16.mxu0 0
    %1853 = vmatpush1.bf16.xpose.msra.mxu0 0
    %1854 = vmatprep.subr.bf16.mxu0 0
    %1855 = vmatpush1.bf16.xpose.msra.mxu0 0
    %1856 = vmatprep.subr.bf16.mxu0 0
    %1857 = vmatpush1.bf16.xpose.msra.mxu0 0
    %1858 = vmatprep.subr.bf16.mxu0 0
    %1859 = vmatpush1.bf16.xpose.msra.mxu0 0
    %1860 = vmatprep.subr.bf16.mxu0 0
    %1861 = vmatpush1.bf16.xpose.msra.mxu0 0
    %1862 = vmatprep.subr.bf16.mxu0 0
    %1863 = vmatpush1.bf16.xpose.msra.mxu0 0
    %1864 = vmatprep.subr.bf16.mxu0 0
    %1865 = vmatpush1.bf16.xpose.msra.mxu0 0
    %1866 = vmatprep.subr.bf16.mxu0 0
    %1867 = vmatpush1.bf16.xpose.msra.mxu0 %v1850
    %1868 = vmatprep.subr.bf16.mxu0 0
    %1869 = vmatpush2.bf16.xpose.msra.mxu0 0
    %1870 = vmatprep.subr.bf16.mxu0 0
    %1871 = vmatpush2.bf16.xpose.msra.mxu0 0
    %1872 = vmatprep.subr.bf16.mxu0 0
    %1873 = vmatpush2.bf16.xpose.msra.mxu0 0
    %1874 = vmatprep.subr.bf16.mxu0 0
    %1875 = vmatpush2.bf16.xpose.msra.mxu0 0
    %1876 = vmatprep.subr.bf16.mxu0 0
    %1877 = vmatpush2.bf16.xpose.msra.mxu0 0
    %1878 = vmatprep.subr.bf16.mxu0 0
    %1879 = vmatpush2.bf16.xpose.msra.mxu0 0
    %1880 = vmatprep.subr.bf16.mxu0 0
    %1881 = vmatpush2.bf16.xpose.msra.mxu0 0
    %1882 = vmatprep.subr.bf16.mxu0 0
    %1883 = vmatpush2.bf16.xpose.msra.mxu0 0
    %1884 = vmatprep.mubr.bf16.mxu0 0
    %1885 = vmatmul.mubr.bf16.gmra.mxu0 %v1847
    %v1886 = vpop.f32.mrf.mxu0
    %v1887 = vadd.f32 0.0, %v1886
    %v1888 = vpop.f32.mrf.mxu0
    %v1889 = vpop.f32.mrf.mxu0
    %v1890 = vadd.f32 0.0, %v1889
    %v1891 = vpop.f32.mrf.mxu0
    %1892 = vdwg.mxu0
    %1894 = vrot.lane.b32.xlu0 %v1055, 64
    %v1895 = vpop.permute.xlu0 %1894
    %1897 = vrot.lane.b32.xlu0 %v1059, 64
    %v1898 = vpop.permute.xlu0 %1897
    %v1900 = vsel %vm1064, %v1895, 0
    %v1903 = vsel %vm1064, %v1898, 0
    %1905 = vmatprep.subr.bf16.mxu0 0
    %1906 = vmatpush1.bf16.xpose.msra.mxu0 0
    %1907 = vmatprep.subr.bf16.mxu0 0
    %1908 = vmatpush1.bf16.xpose.msra.mxu0 0
    %1909 = vmatprep.subr.bf16.mxu0 0
    %1910 = vmatpush1.bf16.xpose.msra.mxu0 0
    %1911 = vmatprep.subr.bf16.mxu0 0
    %1912 = vmatpush1.bf16.xpose.msra.mxu0 0
    %1913 = vmatprep.subr.bf16.mxu0 0
    %1914 = vmatpush1.bf16.xpose.msra.mxu0 0
    %1915 = vmatprep.subr.bf16.mxu0 0
    %1916 = vmatpush1.bf16.xpose.msra.mxu0 0
    %1917 = vmatprep.subr.bf16.mxu0 0
    %1918 = vmatpush1.bf16.xpose.msra.mxu0 0
    %1919 = vmatprep.subr.bf16.mxu0 0
    %1920 = vmatpush1.bf16.xpose.msra.mxu0 %v1903
    %1921 = vmatprep.subr.bf16.mxu0 0
    %1922 = vmatpush2.bf16.xpose.msra.mxu0 0
    %1923 = vmatprep.subr.bf16.mxu0 0
    %1924 = vmatpush2.bf16.xpose.msra.mxu0 0
    %1925 = vmatprep.subr.bf16.mxu0 0
    %1926 = vmatpush2.bf16.xpose.msra.mxu0 0
    %1927 = vmatprep.subr.bf16.mxu0 0
    %1928 = vmatpush2.bf16.xpose.msra.mxu0 0
    %1929 = vmatprep.subr.bf16.mxu0 0
    %1930 = vmatpush2.bf16.xpose.msra.mxu0 0
    %1931 = vmatprep.subr.bf16.mxu0 0
    %1932 = vmatpush2.bf16.xpose.msra.mxu0 0
    %1933 = vmatprep.subr.bf16.mxu0 0
    %1934 = vmatpush2.bf16.xpose.msra.mxu0 0
    %1935 = vmatprep.subr.bf16.mxu0 0
    %1936 = vmatpush2.bf16.xpose.msra.mxu0 0
    %1937 = vmatprep.mubr.bf16.mxu0 0
    %1938 = vmatmul.mubr.bf16.gmra.mxu0 %v1900
    %v1939 = vpop.f32.mrf.mxu0
    %v1940 = vadd.f32 0.0, %v1939
    %v1941 = vpop.f32.mrf.mxu0
    %v1942 = vpop.f32.mrf.mxu0
    %v1943 = vadd.f32 0.0, %v1942
    %v1944 = vpop.f32.mrf.mxu0
    %1945 = vdwg.mxu0
    %v1946 = vsel %vm1159, %v1887, -inf
    %1947 = vmax.xlane.f32.xlu0 %v1946
    %v1948 = vpop.xlane.xlu0 %1947
    %v1949 = vsel %vm1159, %v1890, -inf
    %1950 = vmax.xlane.f32.xlu0 %v1949
    %v1951 = vpop.xlane.xlu0 %1950
    %v1952 = vsel %vm1159, %v1940, -inf
    %1953 = vmax.xlane.f32.xlu0 %v1952
    %v1954 = vpop.xlane.xlu0 %1953
    %v1955 = vsel %vm1159, %v1943, -inf
    %1956 = vmax.xlane.f32.xlu0 %v1955
    %v1957 = vpop.xlane.xlu0 %1956
    %v1958 = vsub.f32 %v1887, %v1948
    %v1959 = vsub.f32 %v1890, %v1951
    %v1960 = vsub.f32 %v1940, %v1954
    %v1961 = vsub.f32 %v1943, %v1957
    %v1962 = vmul.f32 %v1958, 1.442695
    %v1963 = vpow.pop %v1962
    %v1964 = vmul.f32 %v1959, 1.442695
    %v1965 = vpow.pop %v1964
    %v1966 = vmul.f32 %v1960, 1.442695
    %v1967 = vpow.pop %v1966
    %v1968 = vmul.f32 %v1961, 1.442695
    %v1969 = vpow.pop %v1968
    %v1970 = vsel %vm1159, %v1963, 0.0
    %1971 = vadd.xlane.f32.xlu0 %v1970
    %v1972 = vpop.xlane.xlu0 %1971
    %v1973 = vsel %vm1159, %v1965, 0.0
    %1974 = vadd.xlane.f32.xlu0 %v1973
    %v1975 = vpop.xlane.xlu0 %1974
    %v1976 = vsel %vm1159, %v1967, 0.0
    %1977 = vadd.xlane.f32.xlu0 %v1976
    %v1978 = vpop.xlane.xlu0 %1977
    %v1979 = vsel %vm1159, %v1969, 0.0
    %1980 = vadd.xlane.f32.xlu0 %v1979
    %v1981 = vpop.xlane.xlu0 %1980
    %v1982 = vpack.c.bf16 %v1965, %v1963
    %v1983 = vpack.c.bf16 %v1969, %v1967
    %1985 = vrot.lane.b32.xlu0 %v1061, 64
    %v1986 = vpop.permute.xlu0 %1985
    %v1989 = vsel %vm1159, %v1982, 0
    %1991 = vmatprep.subr.bf16.mxu0 0
    %1992 = vmatpush1.bf16.msra.mxu0 0
    %1993 = vmatprep.subr.bf16.mxu0 0
    %1994 = vmatpush1.bf16.msra.mxu0 0
    %1995 = vmatprep.subr.bf16.mxu0 0
    %1996 = vmatpush1.bf16.msra.mxu0 0
    %1997 = vmatprep.subr.bf16.mxu0 0
    %1998 = vmatpush1.bf16.msra.mxu0 0
    %1999 = vmatprep.subr.bf16.mxu0 0
    %2000 = vmatpush1.bf16.msra.mxu0 0
    %2001 = vmatprep.subr.bf16.mxu0 0
    %2002 = vmatpush1.bf16.msra.mxu0 0
    %2003 = vmatprep.subr.bf16.mxu0 0
    %2004 = vmatpush1.bf16.msra.mxu0 0
    %2005 = vmatprep.subr.bf16.mxu0 0
    %2006 = vmatpush1.bf16.msra.mxu0 %v1986
    %2007 = vmatprep.subr.bf16.mxu0 0
    %2008 = vmatpush2.bf16.msra.mxu0 0
    %2009 = vmatprep.subr.bf16.mxu0 0
    %2010 = vmatpush2.bf16.msra.mxu0 0
    %2011 = vmatprep.subr.bf16.mxu0 0
    %2012 = vmatpush2.bf16.msra.mxu0 0
    %2013 = vmatprep.subr.bf16.mxu0 0
    %2014 = vmatpush2.bf16.msra.mxu0 0
    %2015 = vmatprep.subr.bf16.mxu0 0
    %2016 = vmatpush2.bf16.msra.mxu0 0
    %2017 = vmatprep.subr.bf16.mxu0 0
    %2018 = vmatpush2.bf16.msra.mxu0 0
    %2019 = vmatprep.subr.bf16.mxu0 0
    %2020 = vmatpush2.bf16.msra.mxu0 0
    %2021 = vmatprep.subr.bf16.mxu0 0
    %2022 = vmatpush2.bf16.msra.mxu0 0
    %2023 = vmatprep.mubr.bf16.mxu0 0
    %2024 = vmatmul.mubr.bf16.gmra.mxu0 %v1989
    %v2025 = vpop.f32.mrf.mxu0
    %v2026 = vadd.f32 0.0, %v2025
    %v2027 = vpop.f32.mrf.mxu0
    %v2028 = vpop.f32.mrf.mxu0
    %v2029 = vadd.f32 0.0, %v2028
    %v2030 = vpop.f32.mrf.mxu0
    %2031 = vdwg.mxu0
    %2033 = vrot.lane.b32.xlu0 %v1063, 64
    %v2034 = vpop.permute.xlu0 %2033
    %v2037 = vsel %vm1159, %v1983, 0
    %2039 = vmatprep.subr.bf16.mxu0 0
    %2040 = vmatpush1.bf16.msra.mxu0 0
    %2041 = vmatprep.subr.bf16.mxu0 0
    %2042 = vmatpush1.bf16.msra.mxu0 0
    %2043 = vmatprep.subr.bf16.mxu0 0
    %2044 = vmatpush1.bf16.msra.mxu0 0
    %2045 = vmatprep.subr.bf16.mxu0 0
    %2046 = vmatpush1.bf16.msra.mxu0 0
    %2047 = vmatprep.subr.bf16.mxu0 0
    %2048 = vmatpush1.bf16.msra.mxu0 0
    %2049 = vmatprep.subr.bf16.mxu0 0
    %2050 = vmatpush1.bf16.msra.mxu0 0
    %2051 = vmatprep.subr.bf16.mxu0 0
    %2052 = vmatpush1.bf16.msra.mxu0 0
    %2053 = vmatprep.subr.bf16.mxu0 0
    %2054 = vmatpush1.bf16.msra.mxu0 %v2034
    %2055 = vmatprep.subr.bf16.mxu0 0
    %2056 = vmatpush2.bf16.msra.mxu0 0
    %2057 = vmatprep.subr.bf16.mxu0 0
    %2058 = vmatpush2.bf16.msra.mxu0 0
    %2059 = vmatprep.subr.bf16.mxu0 0
    %2060 = vmatpush2.bf16.msra.mxu0 0
    %2061 = vmatprep.subr.bf16.mxu0 0
    %2062 = vmatpush2.bf16.msra.mxu0 0
    %2063 = vmatprep.subr.bf16.mxu0 0
    %2064 = vmatpush2.bf16.msra.mxu0 0
    %2065 = vmatprep.subr.bf16.mxu0 0
    %2066 = vmatpush2.bf16.msra.mxu0 0
    %2067 = vmatprep.subr.bf16.mxu0 0
    %2068 = vmatpush2.bf16.msra.mxu0 0
    %2069 = vmatprep.subr.bf16.mxu0 0
    %2070 = vmatpush2.bf16.msra.mxu0 0
    %2071 = vmatprep.mubr.bf16.mxu0 0
    %2072 = vmatmul.mubr.bf16.gmra.mxu0 %v2037
    %v2073 = vpop.f32.mrf.mxu0
    %v2074 = vadd.f32 0.0, %v2073
    %v2075 = vpop.f32.mrf.mxu0
    %v2076 = vpop.f32.mrf.mxu0
    %v2077 = vadd.f32 0.0, %v2076
    %v2078 = vpop.f32.mrf.mxu0
    %2079 = vdwg.mxu0
    %v2080 = vrcp.pop %v1972
    %v2081 = vrcp.pop %v1975
    %v2082 = vrcp.pop %v1978
    %v2083 = vrcp.pop %v1981
    %v2084 = vmul.f32 %v2026, %v2080
    %v2085 = vmul.f32 %v2029, %v2081
    %v2086 = vmul.f32 %v2074, %v2082
    %v2087 = vmul.f32 %v2077, %v2083
    %v2088 = vpack.c.bf16 %v2085, %v2084
    %v2089 = vpack.c.bf16 %v2087, %v2086
    %v2092 = vunpack.c.l.b16 %v2088
    %v2093 = vunpack.c.h.b16 %v2088
    %v2094 = vunpack.c.l.b16 %v2089
    %v2095 = vunpack.c.h.b16 %v2089
    %v2096 = vpack.c.b16 %v2092, %v2092
    %v2097 = vpack.c.b16 %v2093, %v2093
    %v2098 = vpack.c.b16 %v2094, %v2094
    %v2099 = vpack.c.b16 %v2095, %v2095
    %2100 = vrot.lane.b32.xlu0 %v2096, 64
    %v2101 = vpop.permute.xlu0 %2100
    %2102 = vrot.lane.b32.xlu0 %v2097, 64
    %v2103 = vpop.permute.xlu0 %2102
    %2104 = vrot.lane.b32.xlu0 %v2098, 64
    %v2105 = vpop.permute.xlu0 %2104
    %2106 = vrot.lane.b32.xlu0 %v2099, 64
    %v2107 = vpop.permute.xlu0 %2106
    %2112 = vst.msk [vmem:[#allocation2 + $0x4] sm:$0xf] %vm1587, %v2101
    %2113 = vst.msk [vmem:[#allocation2 + $0xc] sm:$0xf] %vm1587, %v2103
    %2114 = vst.msk [vmem:[#allocation2 + $0x14] sm:$0xf] %vm1587, %v2105
    %2115 = vst.msk [vmem:[#allocation2 + $0x1c] sm:$0xf] %vm1587, %v2107
    %v2116 = vld [vmem:[#allocation2] sm:$0xff]
    %v2117 = vld [vmem:[#allocation2 + $0x8] sm:$0xff]
    %v2118 = vld [vmem:[#allocation2 + $0x10] sm:$0xff]
    %v2119 = vld [vmem:[#allocation2 + $0x18] sm:$0xff]
    %v2120 = vld [vmem:[#allocation11] sm:$0xff]
    %v2121 = vld [vmem:[#allocation11 + $0x8] sm:$0xff]
    %v2122 = vld [vmem:[#allocation11 + $0x10] sm:$0xff]
    %v2123 = vld [vmem:[#allocation11 + $0x18] sm:$0xff]
    %v2124 = vld [vmem:[#allocation11 + $0x20] sm:$0xff]
    %v2125 = vld [vmem:[#allocation11 + $0x28] sm:$0xff]
    %v2126 = vld [vmem:[#allocation11 + $0x30] sm:$0xff]
    %v2127 = vld [vmem:[#allocation11 + $0x38] sm:$0xff]
    %v2128 = vld [vmem:[#allocation11 + $0x40] sm:$0xff]
    %v2129 = vld [vmem:[#allocation11 + $0x48] sm:$0xff]
    %v2130 = vld [vmem:[#allocation11 + $0x50] sm:$0xff]
    %v2131 = vld [vmem:[#allocation11 + $0x58] sm:$0xff]
    %v2132 = vld [vmem:[#allocation11 + $0x60] sm:$0xff]
    %v2133 = vld [vmem:[#allocation11 + $0x68] sm:$0xff]
    %v2134 = vld [vmem:[#allocation11 + $0x70] sm:$0xff]
    %v2135 = vld [vmem:[#allocation11 + $0x78] sm:$0xff]
    %v2136 = vld [vmem:[#allocation11 + $0x80] sm:$0xff]
    %v2137 = vld [vmem:[#allocation11 + $0x88] sm:$0xff]
    %v2138 = vld [vmem:[#allocation11 + $0x90] sm:$0xff]
    %v2139 = vld [vmem:[#allocation11 + $0x98] sm:$0xff]
    %v2140 = vld [vmem:[#allocation11 + $0xa0] sm:$0xff]
    %v2141 = vld [vmem:[#allocation11 + $0xa8] sm:$0xff]
    %v2142 = vld [vmem:[#allocation11 + $0xb0] sm:$0xff]
    %v2143 = vld [vmem:[#allocation11 + $0xb8] sm:$0xff]
    %v2144 = vld [vmem:[#allocation11 + $0xc0] sm:$0xff]
    %v2145 = vld [vmem:[#allocation11 + $0xc8] sm:$0xff]
    %v2146 = vld [vmem:[#allocation11 + $0xd0] sm:$0xff]
    %v2147 = vld [vmem:[#allocation11 + $0xd8] sm:$0xff]
    %v2148 = vld [vmem:[#allocation11 + $0xe0] sm:$0xff]
    %v2149 = vld [vmem:[#allocation11 + $0xe8] sm:$0xff]
    %v2150 = vld [vmem:[#allocation11 + $0xf0] sm:$0xff]
    %v2151 = vld [vmem:[#allocation11 + $0xf8] sm:$0xff]
    %v2152 = vld [vmem:[%s6] sm:$0x3]
    %v2154 = vlaneseq
    %v2155 = vshrl.u32 %v2154, 7
    %v2156 = vsub.s32 0, %v2155
    %v2157 = vrot.slane %v2152, %v2156
    %v2158 = vlaneseq
    %v2159 = vshrl.u32 %v2158, 7
    %v2160 = vsub.s32 1, %v2159
    %v2161 = vrot.slane %v2152, %v2160
    %v2168 = vunpack.c.l.b16 %v2116
    %v2169 = vunpack.c.h.b16 %v2116
    %v2170 = vunpack.c.l.b16 %v2117
    %v2171 = vunpack.c.h.b16 %v2117
    %v2172 = vunpack.c.l.b16 %v2118
    %v2173 = vunpack.c.h.b16 %v2118
    %v2174 = vunpack.c.l.b16 %v2119
    %v2175 = vunpack.c.h.b16 %v2119
    %v2176 = vpack.c.b16 %v2170, %v2168
    %v2177 = vpack.c.b16 %v2171, %v2169
    %v2178 = vpack.c.b16 %v2174, %v2172
    %v2179 = vpack.c.b16 %v2175, %v2173
    %v2216 = vunpack.c.l.b16 %v2120
    %v2217 = vunpack.c.h.b16 %v2120
    %v2218 = vunpack.c.l.b16 %v2121
    %v2219 = vunpack.c.h.b16 %v2121
    %v2220 = vunpack.c.l.b16 %v2122
    %v2221 = vunpack.c.h.b16 %v2122
    %v2222 = vunpack.c.l.b16 %v2123
    %v2223 = vunpack.c.h.b16 %v2123
    %v2224 = vunpack.c.l.b16 %v2124
    %v2225 = vunpack.c.h.b16 %v2124
    %v2226 = vunpack.c.l.b16 %v2125
    %v2227 = vunpack.c.h.b16 %v2125
    %v2228 = vunpack.c.l.b16 %v2126
    %v2229 = vunpack.c.h.b16 %v2126
    %v2230 = vunpack.c.l.b16 %v2127
    %v2231 = vunpack.c.h.b16 %v2127
    %v2232 = vunpack.c.l.b16 %v2128
    %v2233 = vunpack.c.h.b16 %v2128
    %v2234 = vunpack.c.l.b16 %v2129
    %v2235 = vunpack.c.h.b16 %v2129
    %v2236 = vunpack.c.l.b16 %v2130
    %v2237 = vunpack.c.h.b16 %v2130
    %v2238 = vunpack.c.l.b16 %v2131
    %v2239 = vunpack.c.h.b16 %v2131
    %v2240 = vunpack.c.l.b16 %v2132
    %v2241 = vunpack.c.h.b16 %v2132
    %v2242 = vunpack.c.l.b16 %v2133
    %v2243 = vunpack.c.h.b16 %v2133
    %v2244 = vunpack.c.l.b16 %v2134
    %v2245 = vunpack.c.h.b16 %v2134
    %v2246 = vunpack.c.l.b16 %v2135
    %v2247 = vunpack.c.h.b16 %v2135
    %v2248 = vunpack.c.l.b16 %v2136
    %v2249 = vunpack.c.h.b16 %v2136
    %v2250 = vunpack.c.l.b16 %v2137
    %v2251 = vunpack.c.h.b16 %v2137
    %v2252 = vunpack.c.l.b16 %v2138
    %v2253 = vunpack.c.h.b16 %v2138
    %v2254 = vunpack.c.l.b16 %v2139
    %v2255 = vunpack.c.h.b16 %v2139
    %v2256 = vunpack.c.l.b16 %v2140
    %v2257 = vunpack.c.h.b16 %v2140
    %v2258 = vunpack.c.l.b16 %v2141
    %v2259 = vunpack.c.h.b16 %v2141
    %v2260 = vunpack.c.l.b16 %v2142
    %v2261 = vunpack.c.h.b16 %v2142
    %v2262 = vunpack.c.l.b16 %v2143
    %v2263 = vunpack.c.h.b16 %v2143
    %v2264 = vunpack.c.l.b16 %v2144
    %v2265 = vunpack.c.h.b16 %v2144
    %v2266 = vunpack.c.l.b16 %v2145
    %v2267 = vunpack.c.h.b16 %v2145
    %v2268 = vunpack.c.l.b16 %v2146
    %v2269 = vunpack.c.h.b16 %v2146
    %v2270 = vunpack.c.l.b16 %v2147
    %v2271 = vunpack.c.h.b16 %v2147
    %v2272 = vunpack.c.l.b16 %v2148
    %v2273 = vunpack.c.h.b16 %v2148
    %v2274 = vunpack.c.l.b16 %v2149
    %v2275 = vunpack.c.h.b16 %v2149
    %v2276 = vunpack.c.l.b16 %v2150
    %v2277 = vunpack.c.h.b16 %v2150
    %v2278 = vunpack.c.l.b16 %v2151
    %v2279 = vunpack.c.h.b16 %v2151
    %v2280 = vpack.c.b16 %v2218, %v2216
    %v2281 = vpack.c.b16 %v2219, %v2217
    %v2282 = vpack.c.b16 %v2222, %v2220
    %v2283 = vpack.c.b16 %v2223, %v2221
    %v2284 = vpack.c.b16 %v2226, %v2224
    %v2285 = vpack.c.b16 %v2227, %v2225
    %v2286 = vpack.c.b16 %v2230, %v2228
    %v2287 = vpack.c.b16 %v2231, %v2229
    %v2288 = vpack.c.b16 %v2234, %v2232
    %v2289 = vpack.c.b16 %v2235, %v2233
    %v2290 = vpack.c.b16 %v2238, %v2236
    %v2291 = vpack.c.b16 %v2239, %v2237
    %v2292 = vpack.c.b16 %v2242, %v2240
    %v2293 = vpack.c.b16 %v2243, %v2241
    %v2294 = vpack.c.b16 %v2246, %v2244
    %v2295 = vpack.c.b16 %v2247, %v2245
    %v2296 = vpack.c.b16 %v2250, %v2248
    %v2297 = vpack.c.b16 %v2251, %v2249
    %v2298 = vpack.c.b16 %v2254, %v2252
    %v2299 = vpack.c.b16 %v2255, %v2253
    %v2300 = vpack.c.b16 %v2258, %v2256
    %v2301 = vpack.c.b16 %v2259, %v2257
    %v2302 = vpack.c.b16 %v2262, %v2260
    %v2303 = vpack.c.b16 %v2263, %v2261
    %v2304 = vpack.c.b16 %v2266, %v2264
    %v2305 = vpack.c.b16 %v2267, %v2265
    %v2306 = vpack.c.b16 %v2270, %v2268
    %v2307 = vpack.c.b16 %v2271, %v2269
    %v2308 = vpack.c.b16 %v2274, %v2272
    %v2309 = vpack.c.b16 %v2275, %v2273
    %v2310 = vpack.c.b16 %v2278, %v2276
    %v2311 = vpack.c.b16 %v2279, %v2277
    %2344 = vmatprep.subr.bf16.mxu0 %v2295
    %2345 = vmatpush1.bf16.msra.mxu0 %v2294
    %2346 = vmatprep.subr.bf16.mxu0 %v2293
    %2347 = vmatpush1.bf16.msra.mxu0 %v2292
    %2348 = vmatprep.subr.bf16.mxu0 %v2291
    %2349 = vmatpush1.bf16.msra.mxu0 %v2290
    %2350 = vmatprep.subr.bf16.mxu0 %v2289
    %2351 = vmatpush1.bf16.msra.mxu0 %v2288
    %2352 = vmatprep.subr.bf16.mxu0 %v2287
    %2353 = vmatpush1.bf16.msra.mxu0 %v2286
    %2354 = vmatprep.subr.bf16.mxu0 %v2285
    %2355 = vmatpush1.bf16.msra.mxu0 %v2284
    %2356 = vmatprep.subr.bf16.mxu0 %v2283
    %2357 = vmatpush1.bf16.msra.mxu0 %v2282
    %2358 = vmatprep.subr.bf16.mxu0 %v2281
    %2359 = vmatpush1.bf16.msra.mxu0 %v2280
    %2360 = vmatprep.subr.bf16.mxu0 %v2311
    %2361 = vmatpush2.bf16.msra.mxu0 %v2310
    %2362 = vmatprep.subr.bf16.mxu0 %v2309
    %2363 = vmatpush2.bf16.msra.mxu0 %v2308
    %2364 = vmatprep.subr.bf16.mxu0 %v2307
    %2365 = vmatpush2.bf16.msra.mxu0 %v2306
    %2366 = vmatprep.subr.bf16.mxu0 %v2305
    %2367 = vmatpush2.bf16.msra.mxu0 %v2304
    %2368 = vmatprep.subr.bf16.mxu0 %v2303
    %2369 = vmatpush2.bf16.msra.mxu0 %v2302
    %2370 = vmatprep.subr.bf16.mxu0 %v2301
    %2371 = vmatpush2.bf16.msra.mxu0 %v2300
    %2372 = vmatprep.subr.bf16.mxu0 %v2299
    %2373 = vmatpush2.bf16.msra.mxu0 %v2298
    %2374 = vmatprep.subr.bf16.mxu0 %v2297
    %2375 = vmatpush2.bf16.msra.mxu0 %v2296
    %2376 = vmatprep.mubr.bf16.mxu0 %v2177
    %2377 = vmatmul.mubr.bf16.gmra.mxu0 %v2176
    %v2378 = vpop.f32.mrf.mxu0
    %v2379 = vadd.f32 %v2157, %v2378
    %v2380 = vpop.f32.mrf.mxu0
    %v2381 = vadd.f32 %v2161, %v2380
    %v2382 = vpop.f32.mrf.mxu0
    %v2383 = vadd.f32 %v2157, %v2382
    %v2384 = vpop.f32.mrf.mxu0
    %v2385 = vadd.f32 %v2161, %v2384
    %2386 = vmatprep.mubr.bf16.mxu0 %v2179
    %2387 = vmatmul.mubr.bf16.gmra.mxu0 %v2178
    %v2388 = vpop.f32.mrf.mxu0
    %v2389 = vadd.f32 %v2157, %v2388
    %v2390 = vpop.f32.mrf.mxu0
    %v2391 = vadd.f32 %v2161, %v2390
    %v2392 = vpop.f32.mrf.mxu0
    %v2393 = vadd.f32 %v2157, %v2392
    %v2394 = vpop.f32.mrf.mxu0
    %v2395 = vadd.f32 %v2161, %v2394
    %2396 = vdwg.mxu0
    %v2397 = vadd.f32 %v160, %v2379
    %v2398 = vadd.f32 %v161, %v2381
    %v2399 = vadd.f32 %v162, %v2383
    %v2400 = vadd.f32 %v163, %v2385
    %v2401 = vadd.f32 %v164, %v2389
    %v2402 = vadd.f32 %v165, %v2391
    %v2403 = vadd.f32 %v166, %v2393
    %v2404 = vadd.f32 %v167, %v2395
    %v2405 = vld [vmem:[#allocation12] sm:$0x3]
    %v2406 = vld [vmem:[#allocation14] sm:$0x3]
    %v2407 = vadd.f32 %v2397, %v2398
    %2408 = vadd.xlane.f32.xlu0 %v2407
    %v2409 = vpop.xlane.xlu0 %2408
    %v2410 = vadd.f32 %v2399, %v2400
    %2411 = vadd.xlane.f32.xlu0 %v2410
    %v2412 = vpop.xlane.xlu0 %2411
    %v2413 = vadd.f32 %v2401, %v2402
    %2414 = vadd.xlane.f32.xlu0 %v2413
    %v2415 = vpop.xlane.xlu0 %2414
    %v2416 = vadd.f32 %v2403, %v2404
    %2417 = vadd.xlane.f32.xlu0 %v2416
    %v2418 = vpop.xlane.xlu0 %2417
    %v2419 = vmul.f32 %v2409, %v182
    %v2420 = vmul.f32 %v2412, %v182
    %v2421 = vmul.f32 %v2415, %v182
    %v2422 = vmul.f32 %v2418, %v182
    %v2423 = vsub.f32 %v2397, %v2419
    %v2424 = vsub.f32 %v2398, %v2419
    %v2425 = vsub.f32 %v2399, %v2420
    %v2426 = vsub.f32 %v2400, %v2420
    %v2427 = vsub.f32 %v2401, %v2421
    %v2428 = vsub.f32 %v2402, %v2421
    %v2429 = vsub.f32 %v2403, %v2422
    %v2430 = vsub.f32 %v2404, %v2422
    %v2431 = vmul.f32 %v2423, %v2423
    %v2432 = vmul.f32 %v2424, %v2424
    %v2433 = vmul.f32 %v2425, %v2425
    %v2434 = vmul.f32 %v2426, %v2426
    %v2435 = vmul.f32 %v2427, %v2427
    %v2436 = vmul.f32 %v2428, %v2428
    %v2437 = vmul.f32 %v2429, %v2429
    %v2438 = vmul.f32 %v2430, %v2430
    %v2439 = vadd.f32 %v2431, %v2432
    %2440 = vadd.xlane.f32.xlu0 %v2439
    %v2441 = vpop.xlane.xlu0 %2440
    %v2442 = vadd.f32 %v2433, %v2434
    %2443 = vadd.xlane.f32.xlu0 %v2442
    %v2444 = vpop.xlane.xlu0 %2443
    %v2445 = vadd.f32 %v2435, %v2436
    %2446 = vadd.xlane.f32.xlu0 %v2445
    %v2447 = vpop.xlane.xlu0 %2446
    %v2448 = vadd.f32 %v2437, %v2438
    %2449 = vadd.xlane.f32.xlu0 %v2448
    %v2450 = vpop.xlane.xlu0 %2449
    %v2451 = vmul.f32 %v2441, %v182
    %v2452 = vmul.f32 %v2444, %v182
    %v2453 = vmul.f32 %v2447, %v182
    %v2454 = vmul.f32 %v2450, %v182
    %v2455 = vadd.f32 %v2451, 1e-05
    %v2456 = vadd.f32 %v2452, 1e-05
    %v2457 = vadd.f32 %v2453, 1e-05
    %v2458 = vadd.f32 %v2454, 1e-05
    %v2459 = vrsqrt.pop %v2455
    %v2460 = vrsqrt.pop %v2456
    %v2461 = vrsqrt.pop %v2457
    %v2462 = vrsqrt.pop %v2458
    %v2463 = vmul.f32 %v2423, %v2459
    %v2464 = vmul.f32 %v2424, %v2459
    %v2465 = vmul.f32 %v2425, %v2460
    %v2466 = vmul.f32 %v2426, %v2460
    %v2467 = vmul.f32 %v2427, %v2461
    %v2468 = vmul.f32 %v2428, %v2461
    %v2469 = vmul.f32 %v2429, %v2462
    %v2470 = vmul.f32 %v2430, %v2462
    %v2472 = vlaneseq
    %v2473 = vshrl.u32 %v2472, 7
    %v2474 = vsub.s32 0, %v2473
    %v2475 = vrot.slane %v2405, %v2474
    %v2476 = vlaneseq
    %v2477 = vshrl.u32 %v2476, 7
    %v2478 = vsub.s32 1, %v2477
    %v2479 = vrot.slane %v2405, %v2478
    %v2482 = vmul.f32 %v2463, %v2475
    %v2483 = vmul.f32 %v2464, %v2479
    %v2484 = vmul.f32 %v2465, %v2475
    %v2485 = vmul.f32 %v2466, %v2479
    %v2486 = vmul.f32 %v2467, %v2475
    %v2487 = vmul.f32 %v2468, %v2479
    %v2488 = vmul.f32 %v2469, %v2475
    %v2489 = vmul.f32 %v2470, %v2479
    %v2491 = vlaneseq
    %v2492 = vshrl.u32 %v2491, 7
    %v2493 = vsub.s32 0, %v2492
    %v2494 = vrot.slane %v2406, %v2493
    %v2495 = vlaneseq
    %v2496 = vshrl.u32 %v2495, 7
    %v2497 = vsub.s32 1, %v2496
    %v2498 = vrot.slane %v2406, %v2497
    %v2501 = vadd.f32 %v2482, %v2494
    %v2502 = vadd.f32 %v2483, %v2498
    %v2503 = vadd.f32 %v2484, %v2494
    %v2504 = vadd.f32 %v2485, %v2498
    %v2505 = vadd.f32 %v2486, %v2494
    %v2506 = vadd.f32 %v2487, %v2498
    %v2507 = vadd.f32 %v2488, %v2494
    %v2508 = vadd.f32 %v2489, %v2498
    %v2509 = vpack.c.bf16 %v2503, %v2501
    %v2510 = vpack.c.bf16 %v2504, %v2502
    %v2511 = vpack.c.bf16 %v2507, %v2505
    %v2512 = vpack.c.bf16 %v2508, %v2506
    %v2513 = vld [vmem:[#allocation15] sm:$0xff]
    %v2514 = vld [vmem:[#allocation15 + $0x8] sm:$0xff]
    %v2515 = vld [vmem:[#allocation15 + $0x10] sm:$0xff]
    %v2516 = vld [vmem:[#allocation15 + $0x18] sm:$0xff]
    %v2517 = vld [vmem:[#allocation15 + $0x20] sm:$0xff]
    %v2518 = vld [vmem:[#allocation15 + $0x28] sm:$0xff]
    %v2519 = vld [vmem:[#allocation15 + $0x30] sm:$0xff]
    %v2520 = vld [vmem:[#allocation15 + $0x38] sm:$0xff]
    %v2521 = vld [vmem:[#allocation15 + $0x40] sm:$0xff]
    %v2522 = vld [vmem:[#allocation15 + $0x48] sm:$0xff]
    %v2523 = vld [vmem:[#allocation15 + $0x50] sm:$0xff]
    %v2524 = vld [vmem:[#allocation15 + $0x58] sm:$0xff]
    %v2525 = vld [vmem:[#allocation15 + $0x60] sm:$0xff]
    %v2526 = vld [vmem:[#allocation15 + $0x68] sm:$0xff]
    %v2527 = vld [vmem:[#allocation15 + $0x70] sm:$0xff]
    %v2528 = vld [vmem:[#allocation15 + $0x78] sm:$0xff]
    %v2529 = vld [vmem:[#allocation15 + $0x80] sm:$0xff]
    %v2530 = vld [vmem:[#allocation15 + $0x88] sm:$0xff]
    %v2531 = vld [vmem:[#allocation15 + $0x90] sm:$0xff]
    %v2532 = vld [vmem:[#allocation15 + $0x98] sm:$0xff]
    %v2533 = vld [vmem:[#allocation15 + $0xa0] sm:$0xff]
    %v2534 = vld [vmem:[#allocation15 + $0xa8] sm:$0xff]
    %v2535 = vld [vmem:[#allocation15 + $0xb0] sm:$0xff]
    %v2536 = vld [vmem:[#allocation15 + $0xb8] sm:$0xff]
    %v2537 = vld [vmem:[#allocation15 + $0xc0] sm:$0xff]
    %v2538 = vld [vmem:[#allocation15 + $0xc8] sm:$0xff]
    %v2539 = vld [vmem:[#allocation15 + $0xd0] sm:$0xff]
    %v2540 = vld [vmem:[#allocation15 + $0xd8] sm:$0xff]
    %v2541 = vld [vmem:[#allocation15 + $0xe0] sm:$0xff]
    %v2542 = vld [vmem:[#allocation15 + $0xe8] sm:$0xff]
    %v2543 = vld [vmem:[#allocation15 + $0xf0] sm:$0xff]
    %v2544 = vld [vmem:[#allocation15 + $0xf8] sm:$0xff]
    %v2545 = vld [vmem:[#allocation15 + $0x100] sm:$0xff]
    %v2546 = vld [vmem:[#allocation15 + $0x108] sm:$0xff]
    %v2547 = vld [vmem:[#allocation15 + $0x110] sm:$0xff]
    %v2548 = vld [vmem:[#allocation15 + $0x118] sm:$0xff]
    %v2549 = vld [vmem:[#allocation15 + $0x120] sm:$0xff]
    %v2550 = vld [vmem:[#allocation15 + $0x128] sm:$0xff]
    %v2551 = vld [vmem:[#allocation15 + $0x130] sm:$0xff]
    %v2552 = vld [vmem:[#allocation15 + $0x138] sm:$0xff]
    %v2553 = vld [vmem:[#allocation15 + $0x140] sm:$0xff]
    %v2554 = vld [vmem:[#allocation15 + $0x148] sm:$0xff]
    %v2555 = vld [vmem:[#allocation15 + $0x150] sm:$0xff]
    %v2556 = vld [vmem:[#allocation15 + $0x158] sm:$0xff]
    %v2557 = vld [vmem:[#allocation15 + $0x160] sm:$0xff]
    %v2558 = vld [vmem:[#allocation15 + $0x168] sm:$0xff]
    %v2559 = vld [vmem:[#allocation15 + $0x170] sm:$0xff]
    %v2560 = vld [vmem:[#allocation15 + $0x178] sm:$0xff]
    %v2561 = vld [vmem:[#allocation15 + $0x180] sm:$0xff]
    %v2562 = vld [vmem:[#allocation15 + $0x188] sm:$0xff]
    %v2563 = vld [vmem:[#allocation15 + $0x190] sm:$0xff]
    %v2564 = vld [vmem:[#allocation15 + $0x198] sm:$0xff]
    %v2565 = vld [vmem:[#allocation15 + $0x1a0] sm:$0xff]
    %v2566 = vld [vmem:[#allocation15 + $0x1a8] sm:$0xff]
    %v2567 = vld [vmem:[#allocation15 + $0x1b0] sm:$0xff]
    %v2568 = vld [vmem:[#allocation15 + $0x1b8] sm:$0xff]
    %v2569 = vld [vmem:[#allocation15 + $0x1c0] sm:$0xff]
    %v2570 = vld [vmem:[#allocation15 + $0x1c8] sm:$0xff]
    %v2571 = vld [vmem:[#allocation15 + $0x1d0] sm:$0xff]
    %v2572 = vld [vmem:[#allocation15 + $0x1d8] sm:$0xff]
    %v2573 = vld [vmem:[#allocation15 + $0x1e0] sm:$0xff]
    %v2574 = vld [vmem:[#allocation15 + $0x1e8] sm:$0xff]
    %v2575 = vld [vmem:[#allocation15 + $0x1f0] sm:$0xff]
    %v2576 = vld [vmem:[#allocation15 + $0x1f8] sm:$0xff]
    %v2577 = vld [vmem:[#allocation15 + $0x200] sm:$0xff]
    %v2578 = vld [vmem:[#allocation15 + $0x208] sm:$0xff]
    %v2579 = vld [vmem:[#allocation15 + $0x210] sm:$0xff]
    %v2580 = vld [vmem:[#allocation15 + $0x218] sm:$0xff]
    %v2581 = vld [vmem:[#allocation15 + $0x220] sm:$0xff]
    %v2582 = vld [vmem:[#allocation15 + $0x228] sm:$0xff]
    %v2583 = vld [vmem:[#allocation15 + $0x230] sm:$0xff]
    %v2584 = vld [vmem:[#allocation15 + $0x238] sm:$0xff]
    %v2585 = vld [vmem:[#allocation15 + $0x240] sm:$0xff]
    %v2586 = vld [vmem:[#allocation15 + $0x248] sm:$0xff]
    %v2587 = vld [vmem:[#allocation15 + $0x250] sm:$0xff]
    %v2588 = vld [vmem:[#allocation15 + $0x258] sm:$0xff]
    %v2589 = vld [vmem:[#allocation15 + $0x260] sm:$0xff]
    %v2590 = vld [vmem:[#allocation15 + $0x268] sm:$0xff]
    %v2591 = vld [vmem:[#allocation15 + $0x270] sm:$0xff]
    %v2592 = vld [vmem:[#allocation15 + $0x278] sm:$0xff]
    %v2593 = vld [vmem:[#allocation15 + $0x280] sm:$0xff]
    %v2594 = vld [vmem:[#allocation15 + $0x288] sm:$0xff]
    %v2595 = vld [vmem:[#allocation15 + $0x290] sm:$0xff]
    %v2596 = vld [vmem:[#allocation15 + $0x298] sm:$0xff]
    %v2597 = vld [vmem:[#allocation15 + $0x2a0] sm:$0xff]
    %v2598 = vld [vmem:[#allocation15 + $0x2a8] sm:$0xff]
    %v2599 = vld [vmem:[#allocation15 + $0x2b0] sm:$0xff]
    %v2600 = vld [vmem:[#allocation15 + $0x2b8] sm:$0xff]
    %v2601 = vld [vmem:[#allocation15 + $0x2c0] sm:$0xff]
    %v2602 = vld [vmem:[#allocation15 + $0x2c8] sm:$0xff]
    %v2603 = vld [vmem:[#allocation15 + $0x2d0] sm:$0xff]
    %v2604 = vld [vmem:[#allocation15 + $0x2d8] sm:$0xff]
    %v2605 = vld [vmem:[#allocation15 + $0x2e0] sm:$0xff]
    %v2606 = vld [vmem:[#allocation15 + $0x2e8] sm:$0xff]
    %v2607 = vld [vmem:[#allocation15 + $0x2f0] sm:$0xff]
    %v2608 = vld [vmem:[#allocation15 + $0x2f8] sm:$0xff]
    %v2609 = vld [vmem:[#allocation15 + $0x300] sm:$0xff]
    %v2610 = vld [vmem:[#allocation15 + $0x308] sm:$0xff]
    %v2611 = vld [vmem:[#allocation15 + $0x310] sm:$0xff]
    %v2612 = vld [vmem:[#allocation15 + $0x318] sm:$0xff]
    %v2613 = vld [vmem:[#allocation15 + $0x320] sm:$0xff]
    %v2614 = vld [vmem:[#allocation15 + $0x328] sm:$0xff]
    %v2615 = vld [vmem:[#allocation15 + $0x330] sm:$0xff]
    %v2616 = vld [vmem:[#allocation15 + $0x338] sm:$0xff]
    %v2617 = vld [vmem:[#allocation15 + $0x340] sm:$0xff]
    %v2618 = vld [vmem:[#allocation15 + $0x348] sm:$0xff]
    %v2619 = vld [vmem:[#allocation15 + $0x350] sm:$0xff]
    %v2620 = vld [vmem:[#allocation15 + $0x358] sm:$0xff]
    %v2621 = vld [vmem:[#allocation15 + $0x360] sm:$0xff]
    %v2622 = vld [vmem:[#allocation15 + $0x368] sm:$0xff]
    %v2623 = vld [vmem:[#allocation15 + $0x370] sm:$0xff]
    %v2624 = vld [vmem:[#allocation15 + $0x378] sm:$0xff]
    %v2625 = vld [vmem:[#allocation15 + $0x380] sm:$0xff]
    %v2626 = vld [vmem:[#allocation15 + $0x388] sm:$0xff]
    %v2627 = vld [vmem:[#allocation15 + $0x390] sm:$0xff]
    %v2628 = vld [vmem:[#allocation15 + $0x398] sm:$0xff]
    %v2629 = vld [vmem:[#allocation15 + $0x3a0] sm:$0xff]
    %v2630 = vld [vmem:[#allocation15 + $0x3a8] sm:$0xff]
    %v2631 = vld [vmem:[#allocation15 + $0x3b0] sm:$0xff]
    %v2632 = vld [vmem:[#allocation15 + $0x3b8] sm:$0xff]
    %v2633 = vld [vmem:[#allocation15 + $0x3c0] sm:$0xff]
    %v2634 = vld [vmem:[#allocation15 + $0x3c8] sm:$0xff]
    %v2635 = vld [vmem:[#allocation15 + $0x3d0] sm:$0xff]
    %v2636 = vld [vmem:[#allocation15 + $0x3d8] sm:$0xff]
    %v2637 = vld [vmem:[#allocation15 + $0x3e0] sm:$0xff]
    %v2638 = vld [vmem:[#allocation15 + $0x3e8] sm:$0xff]
    %v2639 = vld [vmem:[#allocation15 + $0x3f0] sm:$0xff]
    %v2640 = vld [vmem:[#allocation15 + $0x3f8] sm:$0xff]
    %v2641 = vld [vmem:[%s10] sm:$0xff]
    %v2643 = vlaneseq
    %v2644 = vshrl.u32 %v2643, 7
    %v2645 = vsub.s32 0, %v2644
    %v2646 = vrot.slane %v2641, %v2645
    %v2647 = vlaneseq
    %v2648 = vshrl.u32 %v2647, 7
    %v2649 = vsub.s32 1, %v2648
    %v2650 = vrot.slane %v2641, %v2649
    %v2651 = vlaneseq
    %v2652 = vshrl.u32 %v2651, 7
    %v2653 = vsub.s32 2, %v2652
    %v2654 = vrot.slane %v2641, %v2653
    %v2655 = vlaneseq
    %v2656 = vshrl.u32 %v2655, 7
    %v2657 = vsub.s32 3, %v2656
    %v2658 = vrot.slane %v2641, %v2657
    %v2659 = vlaneseq
    %v2660 = vshrl.u32 %v2659, 7
    %v2661 = vsub.s32 4, %v2660
    %v2662 = vrot.slane %v2641, %v2661
    %v2663 = vlaneseq
    %v2664 = vshrl.u32 %v2663, 7
    %v2665 = vsub.s32 5, %v2664
    %v2666 = vrot.slane %v2641, %v2665
    %v2667 = vlaneseq
    %v2668 = vshrl.u32 %v2667, 7
    %v2669 = vsub.s32 6, %v2668
    %v2670 = vrot.slane %v2641, %v2669
    %v2671 = vlaneseq
    %v2672 = vshrl.u32 %v2671, 7
    %v2673 = vsub.s32 7, %v2672
    %v2674 = vrot.slane %v2641, %v2673
    %v2811 = vunpack.c.l.b16 %v2513
    %v2812 = vunpack.c.h.b16 %v2513
    %v2813 = vunpack.c.l.b16 %v2514
    %v2814 = vunpack.c.h.b16 %v2514
    %v2815 = vunpack.c.l.b16 %v2515
    %v2816 = vunpack.c.h.b16 %v2515
    %v2817 = vunpack.c.l.b16 %v2516
    %v2818 = vunpack.c.h.b16 %v2516
    %v2819 = vunpack.c.l.b16 %v2517
    %v2820 = vunpack.c.h.b16 %v2517
    %v2821 = vunpack.c.l.b16 %v2518
    %v2822 = vunpack.c.h.b16 %v2518
    %v2823 = vunpack.c.l.b16 %v2519
    %v2824 = vunpack.c.h.b16 %v2519
    %v2825 = vunpack.c.l.b16 %v2520
    %v2826 = vunpack.c.h.b16 %v2520
    %v2827 = vunpack.c.l.b16 %v2521
    %v2828 = vunpack.c.h.b16 %v2521
    %v2829 = vunpack.c.l.b16 %v2522
    %v2830 = vunpack.c.h.b16 %v2522
    %v2831 = vunpack.c.l.b16 %v2523
    %v2832 = vunpack.c.h.b16 %v2523
    %v2833 = vunpack.c.l.b16 %v2524
    %v2834 = vunpack.c.h.b16 %v2524
    %v2835 = vunpack.c.l.b16 %v2525
    %v2836 = vunpack.c.h.b16 %v2525
    %v2837 = vunpack.c.l.b16 %v2526
    %v2838 = vunpack.c.h.b16 %v2526
    %v2839 = vunpack.c.l.b16 %v2527
    %v2840 = vunpack.c.h.b16 %v2527
    %v2841 = vunpack.c.l.b16 %v2528
    %v2842 = vunpack.c.h.b16 %v2528
    %v2843 = vunpack.c.l.b16 %v2529
    %v2844 = vunpack.c.h.b16 %v2529
    %v2845 = vunpack.c.l.b16 %v2530
    %v2846 = vunpack.c.h.b16 %v2530
    %v2847 = vunpack.c.l.b16 %v2531
    %v2848 = vunpack.c.h.b16 %v2531
    %v2849 = vunpack.c.l.b16 %v2532
    %v2850 = vunpack.c.h.b16 %v2532
    %v2851 = vunpack.c.l.b16 %v2533
    %v2852 = vunpack.c.h.b16 %v2533
    %v2853 = vunpack.c.l.b16 %v2534
    %v2854 = vunpack.c.h.b16 %v2534
    %v2855 = vunpack.c.l.b16 %v2535
    %v2856 = vunpack.c.h.b16 %v2535
    %v2857 = vunpack.c.l.b16 %v2536
    %v2858 = vunpack.c.h.b16 %v2536
    %v2859 = vunpack.c.l.b16 %v2537
    %v2860 = vunpack.c.h.b16 %v2537
    %v2861 = vunpack.c.l.b16 %v2538
    %v2862 = vunpack.c.h.b16 %v2538
    %v2863 = vunpack.c.l.b16 %v2539
    %v2864 = vunpack.c.h.b16 %v2539
    %v2865 = vunpack.c.l.b16 %v2540
    %v2866 = vunpack.c.h.b16 %v2540
    %v2867 = vunpack.c.l.b16 %v2541
    %v2868 = vunpack.c.h.b16 %v2541
    %v2869 = vunpack.c.l.b16 %v2542
    %v2870 = vunpack.c.h.b16 %v2542
    %v2871 = vunpack.c.l.b16 %v2543
    %v2872 = vunpack.c.h.b16 %v2543
    %v2873 = vunpack.c.l.b16 %v2544
    %v2874 = vunpack.c.h.b16 %v2544
    %v2875 = vunpack.c.l.b16 %v2545
    %v2876 = vunpack.c.h.b16 %v2545
    %v2877 = vunpack.c.l.b16 %v2546
    %v2878 = vunpack.c.h.b16 %v2546
    %v2879 = vunpack.c.l.b16 %v2547
    %v2880 = vunpack.c.h.b16 %v2547
    %v2881 = vunpack.c.l.b16 %v2548
    %v2882 = vunpack.c.h.b16 %v2548
    %v2883 = vunpack.c.l.b16 %v2549
    %v2884 = vunpack.c.h.b16 %v2549
    %v2885 = vunpack.c.l.b16 %v2550
    %v2886 = vunpack.c.h.b16 %v2550
    %v2887 = vunpack.c.l.b16 %v2551
    %v2888 = vunpack.c.h.b16 %v2551
    %v2889 = vunpack.c.l.b16 %v2552
    %v2890 = vunpack.c.h.b16 %v2552
    %v2891 = vunpack.c.l.b16 %v2553
    %v2892 = vunpack.c.h.b16 %v2553
    %v2893 = vunpack.c.l.b16 %v2554
    %v2894 = vunpack.c.h.b16 %v2554
    %v2895 = vunpack.c.l.b16 %v2555
    %v2896 = vunpack.c.h.b16 %v2555
    %v2897 = vunpack.c.l.b16 %v2556
    %v2898 = vunpack.c.h.b16 %v2556
    %v2899 = vunpack.c.l.b16 %v2557
    %v2900 = vunpack.c.h.b16 %v2557
    %v2901 = vunpack.c.l.b16 %v2558
    %v2902 = vunpack.c.h.b16 %v2558
    %v2903 = vunpack.c.l.b16 %v2559
    %v2904 = vunpack.c.h.b16 %v2559
    %v2905 = vunpack.c.l.b16 %v2560
    %v2906 = vunpack.c.h.b16 %v2560
    %v2907 = vunpack.c.l.b16 %v2561
    %v2908 = vunpack.c.h.b16 %v2561
    %v2909 = vunpack.c.l.b16 %v2562
    %v2910 = vunpack.c.h.b16 %v2562
    %v2911 = vunpack.c.l.b16 %v2563
    %v2912 = vunpack.c.h.b16 %v2563
    %v2913 = vunpack.c.l.b16 %v2564
    %v2914 = vunpack.c.h.b16 %v2564
    %v2915 = vunpack.c.l.b16 %v2565
    %v2916 = vunpack.c.h.b16 %v2565
    %v2917 = vunpack.c.l.b16 %v2566
    %v2918 = vunpack.c.h.b16 %v2566
    %v2919 = vunpack.c.l.b16 %v2567
    %v2920 = vunpack.c.h.b16 %v2567
    %v2921 = vunpack.c.l.b16 %v2568
    %v2922 = vunpack.c.h.b16 %v2568
    %v2923 = vunpack.c.l.b16 %v2569
    %v2924 = vunpack.c.h.b16 %v2569
    %v2925 = vunpack.c.l.b16 %v2570
    %v2926 = vunpack.c.h.b16 %v2570
    %v2927 = vunpack.c.l.b16 %v2571
    %v2928 = vunpack.c.h.b16 %v2571
    %v2929 = vunpack.c.l.b16 %v2572
    %v2930 = vunpack.c.h.b16 %v2572
    %v2931 = vunpack.c.l.b16 %v2573
    %v2932 = vunpack.c.h.b16 %v2573
    %v2933 = vunpack.c.l.b16 %v2574
    %v2934 = vunpack.c.h.b16 %v2574
    %v2935 = vunpack.c.l.b16 %v2575
    %v2936 = vunpack.c.h.b16 %v2575
    %v2937 = vunpack.c.l.b16 %v2576
    %v2938 = vunpack.c.h.b16 %v2576
    %v2939 = vunpack.c.l.b16 %v2577
    %v2940 = vunpack.c.h.b16 %v2577
    %v2941 = vunpack.c.l.b16 %v2578
    %v2942 = vunpack.c.h.b16 %v2578
    %v2943 = vunpack.c.l.b16 %v2579
    %v2944 = vunpack.c.h.b16 %v2579
    %v2945 = vunpack.c.l.b16 %v2580
    %v2946 = vunpack.c.h.b16 %v2580
    %v2947 = vunpack.c.l.b16 %v2581
    %v2948 = vunpack.c.h.b16 %v2581
    %v2949 = vunpack.c.l.b16 %v2582
    %v2950 = vunpack.c.h.b16 %v2582
    %v2951 = vunpack.c.l.b16 %v2583
    %v2952 = vunpack.c.h.b16 %v2583
    %v2953 = vunpack.c.l.b16 %v2584
    %v2954 = vunpack.c.h.b16 %v2584
    %v2955 = vunpack.c.l.b16 %v2585
    %v2956 = vunpack.c.h.b16 %v2585
    %v2957 = vunpack.c.l.b16 %v2586
    %v2958 = vunpack.c.h.b16 %v2586
    %v2959 = vunpack.c.l.b16 %v2587
    %v2960 = vunpack.c.h.b16 %v2587
    %v2961 = vunpack.c.l.b16 %v2588
    %v2962 = vunpack.c.h.b16 %v2588
    %v2963 = vunpack.c.l.b16 %v2589
    %v2964 = vunpack.c.h.b16 %v2589
    %v2965 = vunpack.c.l.b16 %v2590
    %v2966 = vunpack.c.h.b16 %v2590
    %v2967 = vunpack.c.l.b16 %v2591
    %v2968 = vunpack.c.h.b16 %v2591
    %v2969 = vunpack.c.l.b16 %v2592
    %v2970 = vunpack.c.h.b16 %v2592
    %v2971 = vunpack.c.l.b16 %v2593
    %v2972 = vunpack.c.h.b16 %v2593
    %v2973 = vunpack.c.l.b16 %v2594
    %v2974 = vunpack.c.h.b16 %v2594
    %v2975 = vunpack.c.l.b16 %v2595
    %v2976 = vunpack.c.h.b16 %v2595
    %v2977 = vunpack.c.l.b16 %v2596
    %v2978 = vunpack.c.h.b16 %v2596
    %v2979 = vunpack.c.l.b16 %v2597
    %v2980 = vunpack.c.h.b16 %v2597
    %v2981 = vunpack.c.l.b16 %v2598
    %v2982 = vunpack.c.h.b16 %v2598
    %v2983 = vunpack.c.l.b16 %v2599
    %v2984 = vunpack.c.h.b16 %v2599
    %v2985 = vunpack.c.l.b16 %v2600
    %v2986 = vunpack.c.h.b16 %v2600
    %v2987 = vunpack.c.l.b16 %v2601
    %v2988 = vunpack.c.h.b16 %v2601
    %v2989 = vunpack.c.l.b16 %v2602
    %v2990 = vunpack.c.h.b16 %v2602
    %v2991 = vunpack.c.l.b16 %v2603
    %v2992 = vunpack.c.h.b16 %v2603
    %v2993 = vunpack.c.l.b16 %v2604
    %v2994 = vunpack.c.h.b16 %v2604
    %v2995 = vunpack.c.l.b16 %v2605
    %v2996 = vunpack.c.h.b16 %v2605
    %v2997 = vunpack.c.l.b16 %v2606
    %v2998 = vunpack.c.h.b16 %v2606
    %v2999 = vunpack.c.l.b16 %v2607
    %v3000 = vunpack.c.h.b16 %v2607
    %v3001 = vunpack.c.l.b16 %v2608
    %v3002 = vunpack.c.h.b16 %v2608
    %v3003 = vunpack.c.l.b16 %v2609
    %v3004 = vunpack.c.h.b16 %v2609
    %v3005 = vunpack.c.l.b16 %v2610
    %v3006 = vunpack.c.h.b16 %v2610
    %v3007 = vunpack.c.l.b16 %v2611
    %v3008 = vunpack.c.h.b16 %v2611
    %v3009 = vunpack.c.l.b16 %v2612
    %v3010 = vunpack.c.h.b16 %v2612
    %v3011 = vunpack.c.l.b16 %v2613
    %v3012 = vunpack.c.h.b16 %v2613
    %v3013 = vunpack.c.l.b16 %v2614
    %v3014 = vunpack.c.h.b16 %v2614
    %v3015 = vunpack.c.l.b16 %v2615
    %v3016 = vunpack.c.h.b16 %v2615
    %v3017 = vunpack.c.l.b16 %v2616
    %v3018 = vunpack.c.h.b16 %v2616
    %v3019 = vunpack.c.l.b16 %v2617
    %v3020 = vunpack.c.h.b16 %v2617
    %v3021 = vunpack.c.l.b16 %v2618
    %v3022 = vunpack.c.h.b16 %v2618
    %v3023 = vunpack.c.l.b16 %v2619
    %v3024 = vunpack.c.h.b16 %v2619
    %v3025 = vunpack.c.l.b16 %v2620
    %v3026 = vunpack.c.h.b16 %v2620
    %v3027 = vunpack.c.l.b16 %v2621
    %v3028 = vunpack.c.h.b16 %v2621
    %v3029 = vunpack.c.l.b16 %v2622
    %v3030 = vunpack.c.h.b16 %v2622
    %v3031 = vunpack.c.l.b16 %v2623
    %v3032 = vunpack.c.h.b16 %v2623
    %v3033 = vunpack.c.l.b16 %v2624
    %v3034 = vunpack.c.h.b16 %v2624
    %v3035 = vunpack.c.l.b16 %v2625
    %v3036 = vunpack.c.h.b16 %v2625
    %v3037 = vunpack.c.l.b16 %v2626
    %v3038 = vunpack.c.h.b16 %v2626
    %v3039 = vunpack.c.l.b16 %v2627
    %v3040 = vunpack.c.h.b16 %v2627
    %v3041 = vunpack.c.l.b16 %v2628
    %v3042 = vunpack.c.h.b16 %v2628
    %v3043 = vunpack.c.l.b16 %v2629
    %v3044 = vunpack.c.h.b16 %v2629
    %v3045 = vunpack.c.l.b16 %v2630
    %v3046 = vunpack.c.h.b16 %v2630
    %v3047 = vunpack.c.l.b16 %v2631
    %v3048 = vunpack.c.h.b16 %v2631
    %v3049 = vunpack.c.l.b16 %v2632
    %v3050 = vunpack.c.h.b16 %v2632
    %v3051 = vunpack.c.l.b16 %v2633
    %v3052 = vunpack.c.h.b16 %v2633
    %v3053 = vunpack.c.l.b16 %v2634
    %v3054 = vunpack.c.h.b16 %v2634
    %v3055 = vunpack.c.l.b16 %v2635
    %v3056 = vunpack.c.h.b16 %v2635
    %v3057 = vunpack.c.l.b16 %v2636
    %v3058 = vunpack.c.h.b16 %v2636
    %v3059 = vunpack.c.l.b16 %v2637
    %v3060 = vunpack.c.h.b16 %v2637
    %v3061 = vunpack.c.l.b16 %v2638
    %v3062 = vunpack.c.h.b16 %v2638
    %v3063 = vunpack.c.l.b16 %v2639
    %v3064 = vunpack.c.h.b16 %v2639
    %v3065 = vunpack.c.l.b16 %v2640
    %v3066 = vunpack.c.h.b16 %v2640
    %v3067 = vpack.c.b16 %v2819, %v2811
    %v3068 = vpack.c.b16 %v2820, %v2812
    %v3069 = vpack.c.b16 %v2821, %v2813
    %v3070 = vpack.c.b16 %v2822, %v2814
    %v3071 = vpack.c.b16 %v2823, %v2815
    %v3072 = vpack.c.b16 %v2824, %v2816
    %v3073 = vpack.c.b16 %v2825, %v2817
    %v3074 = vpack.c.b16 %v2826, %v2818
    %v3075 = vpack.c.b16 %v2835, %v2827
    %v3076 = vpack.c.b16 %v2836, %v2828
    %v3077 = vpack.c.b16 %v2837, %v2829
    %v3078 = vpack.c.b16 %v2838, %v2830
    %v3079 = vpack.c.b16 %v2839, %v2831
    %v3080 = vpack.c.b16 %v2840, %v2832
    %v3081 = vpack.c.b16 %v2841, %v2833
    %v3082 = vpack.c.b16 %v2842, %v2834
    %v3083 = vpack.c.b16 %v2851, %v2843
    %v3084 = vpack.c.b16 %v2852, %v2844
    %v3085 = vpack.c.b16 %v2853, %v2845
    %v3086 = vpack.c.b16 %v2854, %v2846
    %v3087 = vpack.c.b16 %v2855, %v2847
    %v3088 = vpack.c.b16 %v2856, %v2848
    %v3089 = vpack.c.b16 %v2857, %v2849
    %v3090 = vpack.c.b16 %v2858, %v2850
    %v3091 = vpack.c.b16 %v2867, %v2859
    %v3092 = vpack.c.b16 %v2868, %v2860
    %v3093 = vpack.c.b16 %v2869, %v2861
    %v3094 = vpack.c.b16 %v2870, %v2862
    %v3095 = vpack.c.b16 %v2871, %v2863
    %v3096 = vpack.c.b16 %v2872, %v2864
    %v3097 = vpack.c.b16 %v2873, %v2865
    %v3098 = vpack.c.b16 %v2874, %v2866
    %v3099 = vpack.c.b16 %v2883, %v2875
    %v3100 = vpack.c.b16 %v2884, %v2876
    %v3101 = vpack.c.b16 %v2885, %v2877
    %v3102 = vpack.c.b16 %v2886, %v2878
    %v3103 = vpack.c.b16 %v2887, %v2879
    %v3104 = vpack.c.b16 %v2888, %v2880
    %v3105 = vpack.c.b16 %v2889, %v2881
    %v3106 = vpack.c.b16 %v2890, %v2882
    %v3107 = vpack.c.b16 %v2899, %v2891
    %v3108 = vpack.c.b16 %v2900, %v2892
    %v3109 = vpack.c.b16 %v2901, %v2893
    %v3110 = vpack.c.b16 %v2902, %v2894
    %v3111 = vpack.c.b16 %v2903, %v2895
    %v3112 = vpack.c.b16 %v2904, %v2896
    %v3113 = vpack.c.b16 %v2905, %v2897
    %v3114 = vpack.c.b16 %v2906, %v2898
    %v3115 = vpack.c.b16 %v2915, %v2907
    %v3116 = vpack.c.b16 %v2916, %v2908
    %v3117 = vpack.c.b16 %v2917, %v2909
    %v3118 = vpack.c.b16 %v2918, %v2910
    %v3119 = vpack.c.b16 %v2919, %v2911
    %v3120 = vpack.c.b16 %v2920, %v2912
    %v3121 = vpack.c.b16 %v2921, %v2913
    %v3122 = vpack.c.b16 %v2922, %v2914
    %v3123 = vpack.c.b16 %v2931, %v2923
    %v3124 = vpack.c.b16 %v2932, %v2924
    %v3125 = vpack.c.b16 %v2933, %v2925
    %v3126 = vpack.c.b16 %v2934, %v2926
    %v3127 = vpack.c.b16 %v2935, %v2927
    %v3128 = vpack.c.b16 %v2936, %v2928
    %v3129 = vpack.c.b16 %v2937, %v2929
    %v3130 = vpack.c.b16 %v2938, %v2930
    %v3131 = vpack.c.b16 %v2947, %v2939
    %v3132 = vpack.c.b16 %v2948, %v2940
    %v3133 = vpack.c.b16 %v2949, %v2941
    %v3134 = vpack.c.b16 %v2950, %v2942
    %v3135 = vpack.c.b16 %v2951, %v2943
    %v3136 = vpack.c.b16 %v2952, %v2944
    %v3137 = vpack.c.b16 %v2953, %v2945
    %v3138 = vpack.c.b16 %v2954, %v2946
    %v3139 = vpack.c.b16 %v2963, %v2955
    %v3140 = vpack.c.b16 %v2964, %v2956
    %v3141 = vpack.c.b16 %v2965, %v2957
    %v3142 = vpack.c.b16 %v2966, %v2958
    %v3143 = vpack.c.b16 %v2967, %v2959
    %v3144 = vpack.c.b16 %v2968, %v2960
    %v3145 = vpack.c.b16 %v2969, %v2961
    %v3146 = vpack.c.b16 %v2970, %v2962
    %v3147 = vpack.c.b16 %v2979, %v2971
    %v3148 = vpack.c.b16 %v2980, %v2972
    %v3149 = vpack.c.b16 %v2981, %v2973
    %v3150 = vpack.c.b16 %v2982, %v2974
    %v3151 = vpack.c.b16 %v2983, %v2975
    %v3152 = vpack.c.b16 %v2984, %v2976
    %v3153 = vpack.c.b16 %v2985, %v2977
    %v3154 = vpack.c.b16 %v2986, %v2978
    %v3155 = vpack.c.b16 %v2995, %v2987
    %v3156 = vpack.c.b16 %v2996, %v2988
    %v3157 = vpack.c.b16 %v2997, %v2989
    %v3158 = vpack.c.b16 %v2998, %v2990
    %v3159 = vpack.c.b16 %v2999, %v2991
    %v3160 = vpack.c.b16 %v3000, %v2992
    %v3161 = vpack.c.b16 %v3001, %v2993
    %v3162 = vpack.c.b16 %v3002, %v2994
    %v3163 = vpack.c.b16 %v3011, %v3003
    %v3164 = vpack.c.b16 %v3012, %v3004
    %v3165 = vpack.c.b16 %v3013, %v3005
    %v3166 = vpack.c.b16 %v3014, %v3006
    %v3167 = vpack.c.b16 %v3015, %v3007
    %v3168 = vpack.c.b16 %v3016, %v3008
    %v3169 = vpack.c.b16 %v3017, %v3009
    %v3170 = vpack.c.b16 %v3018, %v3010
    %v3171 = vpack.c.b16 %v3027, %v3019
    %v3172 = vpack.c.b16 %v3028, %v3020
    %v3173 = vpack.c.b16 %v3029, %v3021
    %v3174 = vpack.c.b16 %v3030, %v3022
    %v3175 = vpack.c.b16 %v3031, %v3023
    %v3176 = vpack.c.b16 %v3032, %v3024
    %v3177 = vpack.c.b16 %v3033, %v3025
    %v3178 = vpack.c.b16 %v3034, %v3026
    %v3179 = vpack.c.b16 %v3043, %v3035
    %v3180 = vpack.c.b16 %v3044, %v3036
    %v3181 = vpack.c.b16 %v3045, %v3037
    %v3182 = vpack.c.b16 %v3046, %v3038
    %v3183 = vpack.c.b16 %v3047, %v3039
    %v3184 = vpack.c.b16 %v3048, %v3040
    %v3185 = vpack.c.b16 %v3049, %v3041
    %v3186 = vpack.c.b16 %v3050, %v3042
    %v3187 = vpack.c.b16 %v3059, %v3051
    %v3188 = vpack.c.b16 %v3060, %v3052
    %v3189 = vpack.c.b16 %v3061, %v3053
    %v3190 = vpack.c.b16 %v3062, %v3054
    %v3191 = vpack.c.b16 %v3063, %v3055
    %v3192 = vpack.c.b16 %v3064, %v3056
    %v3193 = vpack.c.b16 %v3065, %v3057
    %v3194 = vpack.c.b16 %v3066, %v3058
    %3323 = vmatprep.subr.bf16.mxu0 %v3124
    %3324 = vmatpush1.bf16.msra.mxu0 %v3123
    %3325 = vmatprep.subr.bf16.mxu0 %v3116
    %3326 = vmatpush1.bf16.msra.mxu0 %v3115
    %3327 = vmatprep.subr.bf16.mxu0 %v3108
    %3328 = vmatpush1.bf16.msra.mxu0 %v3107
    %3329 = vmatprep.subr.bf16.mxu0 %v3100
    %3330 = vmatpush1.bf16.msra.mxu0 %v3099
    %3331 = vmatprep.subr.bf16.mxu0 %v3092
    %3332 = vmatpush1.bf16.msra.mxu0 %v3091
    %3333 = vmatprep.subr.bf16.mxu0 %v3084
    %3334 = vmatpush1.bf16.msra.mxu0 %v3083
    %3335 = vmatprep.subr.bf16.mxu0 %v3076
    %3336 = vmatpush1.bf16.msra.mxu0 %v3075
    %3337 = vmatprep.subr.bf16.mxu0 %v3068
    %3338 = vmatpush1.bf16.msra.mxu0 %v3067
    %3339 = vmatprep.subr.bf16.mxu0 %v3188
    %3340 = vmatpush2.bf16.msra.mxu0 %v3187
    %3341 = vmatprep.subr.bf16.mxu0 %v3180
    %3342 = vmatpush2.bf16.msra.mxu0 %v3179
    %3343 = vmatprep.subr.bf16.mxu0 %v3172
    %3344 = vmatpush2.bf16.msra.mxu0 %v3171
    %3345 = vmatprep.subr.bf16.mxu0 %v3164
    %3346 = vmatpush2.bf16.msra.mxu0 %v3163
    %3347 = vmatprep.subr.bf16.mxu0 %v3156
    %3348 = vmatpush2.bf16.msra.mxu0 %v3155
    %3349 = vmatprep.subr.bf16.mxu0 %v3148
    %3350 = vmatpush2.bf16.msra.mxu0 %v3147
    %3351 = vmatprep.subr.bf16.mxu0 %v3140
    %3352 = vmatpush2.bf16.msra.mxu0 %v3139
    %3353 = vmatprep.subr.bf16.mxu0 %v3132
    %3354 = vmatpush2.bf16.msra.mxu0 %v3131
    %3355 = vmatprep.mubr.bf16.mxu0 %v2510
    %3356 = vmatmul.mubr.bf16.gmra.mxu0 %v2509
    %v3357 = vpop.f32.mrf.mxu0
    %v3358 = vadd.f32 %v2646, %v3357
    %v3359 = vpop.f32.mrf.mxu0
    %v3360 = vadd.f32 %v2650, %v3359
    %v3361 = vpop.f32.mrf.mxu0
    %v3362 = vadd.f32 %v2646, %v3361
    %v3363 = vpop.f32.mrf.mxu0
    %v3364 = vadd.f32 %v2650, %v3363
    %3365 = vmatprep.mubr.bf16.mxu0 %v2512
    %3366 = vmatmul.mubr.bf16.gmra.mxu0 %v2511
    %v3367 = vpop.f32.mrf.mxu0
    %v3368 = vadd.f32 %v2646, %v3367
    %v3369 = vpop.f32.mrf.mxu0
    %v3370 = vadd.f32 %v2650, %v3369
    %v3371 = vpop.f32.mrf.mxu0
    %v3372 = vadd.f32 %v2646, %v3371
    %v3373 = vpop.f32.mrf.mxu0
    %v3374 = vadd.f32 %v2650, %v3373
    %3375 = vdwg.mxu0
    %3376 = vmatprep.subr.bf16.mxu0 %v3126
    %3377 = vmatpush1.bf16.msra.mxu0 %v3125
    %3378 = vmatprep.subr.bf16.mxu0 %v3118
    %3379 = vmatpush1.bf16.msra.mxu0 %v3117
    %3380 = vmatprep.subr.bf16.mxu0 %v3110
    %3381 = vmatpush1.bf16.msra.mxu0 %v3109
    %3382 = vmatprep.subr.bf16.mxu0 %v3102
    %3383 = vmatpush1.bf16.msra.mxu0 %v3101
    %3384 = vmatprep.subr.bf16.mxu0 %v3094
    %3385 = vmatpush1.bf16.msra.mxu0 %v3093
    %3386 = vmatprep.subr.bf16.mxu0 %v3086
    %3387 = vmatpush1.bf16.msra.mxu0 %v3085
    %3388 = vmatprep.subr.bf16.mxu0 %v3078
    %3389 = vmatpush1.bf16.msra.mxu0 %v3077
    %3390 = vmatprep.subr.bf16.mxu0 %v3070
    %3391 = vmatpush1.bf16.msra.mxu0 %v3069
    %3392 = vmatprep.subr.bf16.mxu0 %v3190
    %3393 = vmatpush2.bf16.msra.mxu0 %v3189
    %3394 = vmatprep.subr.bf16.mxu0 %v3182
    %3395 = vmatpush2.bf16.msra.mxu0 %v3181
    %3396 = vmatprep.subr.bf16.mxu0 %v3174
    %3397 = vmatpush2.bf16.msra.mxu0 %v3173
    %3398 = vmatprep.subr.bf16.mxu0 %v3166
    %3399 = vmatpush2.bf16.msra.mxu0 %v3165
    %3400 = vmatprep.subr.bf16.mxu0 %v3158
    %3401 = vmatpush2.bf16.msra.mxu0 %v3157
    %3402 = vmatprep.subr.bf16.mxu0 %v3150
    %3403 = vmatpush2.bf16.msra.mxu0 %v3149
    %3404 = vmatprep.subr.bf16.mxu0 %v3142
    %3405 = vmatpush2.bf16.msra.mxu0 %v3141
    %3406 = vmatprep.subr.bf16.mxu0 %v3134
    %3407 = vmatpush2.bf16.msra.mxu0 %v3133
    %3408 = vmatprep.mubr.bf16.mxu0 %v2510
    %3409 = vmatmul.mubr.bf16.gmra.mxu0 %v2509
    %v3410 = vpop.f32.mrf.mxu0
    %v3411 = vadd.f32 %v2654, %v3410
    %v3412 = vpop.f32.mrf.mxu0
    %v3413 = vadd.f32 %v2658, %v3412
    %v3414 = vpop.f32.mrf.mxu0
    %v3415 = vadd.f32 %v2654, %v3414
    %v3416 = vpop.f32.mrf.mxu0
    %v3417 = vadd.f32 %v2658, %v3416
    %3418 = vmatprep.mubr.bf16.mxu0 %v2512
    %3419 = vmatmul.mubr.bf16.gmra.mxu0 %v2511
    %v3420 = vpop.f32.mrf.mxu0
    %v3421 = vadd.f32 %v2654, %v3420
    %v3422 = vpop.f32.mrf.mxu0
    %v3423 = vadd.f32 %v2658, %v3422
    %v3424 = vpop.f32.mrf.mxu0
    %v3425 = vadd.f32 %v2654, %v3424
    %v3426 = vpop.f32.mrf.mxu0
    %v3427 = vadd.f32 %v2658, %v3426
    %3428 = vdwg.mxu0
    %3429 = vmatprep.subr.bf16.mxu0 %v3128
    %3430 = vmatpush1.bf16.msra.mxu0 %v3127
    %3431 = vmatprep.subr.bf16.mxu0 %v3120
    %3432 = vmatpush1.bf16.msra.mxu0 %v3119
    %3433 = vmatprep.subr.bf16.mxu0 %v3112
    %3434 = vmatpush1.bf16.msra.mxu0 %v3111
    %3435 = vmatprep.subr.bf16.mxu0 %v3104
    %3436 = vmatpush1.bf16.msra.mxu0 %v3103
    %3437 = vmatprep.subr.bf16.mxu0 %v3096
    %3438 = vmatpush1.bf16.msra.mxu0 %v3095
    %3439 = vmatprep.subr.bf16.mxu0 %v3088
    %3440 = vmatpush1.bf16.msra.mxu0 %v3087
    %3441 = vmatprep.subr.bf16.mxu0 %v3080
    %3442 = vmatpush1.bf16.msra.mxu0 %v3079
    %3443 = vmatprep.subr.bf16.mxu0 %v3072
    %3444 = vmatpush1.bf16.msra.mxu0 %v3071
    %3445 = vmatprep.subr.bf16.mxu0 %v3192
    %3446 = vmatpush2.bf16.msra.mxu0 %v3191
    %3447 = vmatprep.subr.bf16.mxu0 %v3184
    %3448 = vmatpush2.bf16.msra.mxu0 %v3183
    %3449 = vmatprep.subr.bf16.mxu0 %v3176
    %3450 = vmatpush2.bf16.msra.mxu0 %v3175
    %3451 = vmatprep.subr.bf16.mxu0 %v3168
    %3452 = vmatpush2.bf16.msra.mxu0 %v3167
    %3453 = vmatprep.subr.bf16.mxu0 %v3160
    %3454 = vmatpush2.bf16.msra.mxu0 %v3159
    %3455 = vmatprep.subr.bf16.mxu0 %v3152
    %3456 = vmatpush2.bf16.msra.mxu0 %v3151
    %3457 = vmatprep.subr.bf16.mxu0 %v3144
    %3458 = vmatpush2.bf16.msra.mxu0 %v3143
    %3459 = vmatprep.subr.bf16.mxu0 %v3136
    %3460 = vmatpush2.bf16.msra.mxu0 %v3135
    %3461 = vmatprep.mubr.bf16.mxu0 %v2510
    %3462 = vmatmul.mubr.bf16.gmra.mxu0 %v2509
    %v3463 = vpop.f32.mrf.mxu0
    %v3464 = vadd.f32 %v2662, %v3463
    %v3465 = vpop.f32.mrf.mxu0
    %v3466 = vadd.f32 %v2666, %v3465
    %v3467 = vpop.f32.mrf.mxu0
    %v3468 = vadd.f32 %v2662, %v3467
    %v3469 = vpop.f32.mrf.mxu0
    %v3470 = vadd.f32 %v2666, %v3469
    %3471 = vmatprep.mubr.bf16.mxu0 %v2512
    %3472 = vmatmul.mubr.bf16.gmra.mxu0 %v2511
    %v3473 = vpop.f32.mrf.mxu0
    %v3474 = vadd.f32 %v2662, %v3473
    %v3475 = vpop.f32.mrf.mxu0
    %v3476 = vadd.f32 %v2666, %v3475
    %v3477 = vpop.f32.mrf.mxu0
    %v3478 = vadd.f32 %v2662, %v3477
    %v3479 = vpop.f32.mrf.mxu0
    %v3480 = vadd.f32 %v2666, %v3479
    %3481 = vdwg.mxu0
    %3482 = vmatprep.subr.bf16.mxu0 %v3130
    %3483 = vmatpush1.bf16.msra.mxu0 %v3129
    %3484 = vmatprep.subr.bf16.mxu0 %v3122
    %3485 = vmatpush1.bf16.msra.mxu0 %v3121
    %3486 = vmatprep.subr.bf16.mxu0 %v3114
    %3487 = vmatpush1.bf16.msra.mxu0 %v3113
    %3488 = vmatprep.subr.bf16.mxu0 %v3106
    %3489 = vmatpush1.bf16.msra.mxu0 %v3105
    %3490 = vmatprep.subr.bf16.mxu0 %v3098
    %3491 = vmatpush1.bf16.msra.mxu0 %v3097
    %3492 = vmatprep.subr.bf16.mxu0 %v3090
    %3493 = vmatpush1.bf16.msra.mxu0 %v3089
    %3494 = vmatprep.subr.bf16.mxu0 %v3082
    %3495 = vmatpush1.bf16.msra.mxu0 %v3081
    %3496 = vmatprep.subr.bf16.mxu0 %v3074
    %3497 = vmatpush1.bf16.msra.mxu0 %v3073
    %3498 = vmatprep.subr.bf16.mxu0 %v3194
    %3499 = vmatpush2.bf16.msra.mxu0 %v3193
    %3500 = vmatprep.subr.bf16.mxu0 %v3186
    %3501 = vmatpush2.bf16.msra.mxu0 %v3185
    %3502 = vmatprep.subr.bf16.mxu0 %v3178
    %3503 = vmatpush2.bf16.msra.mxu0 %v3177
    %3504 = vmatprep.subr.bf16.mxu0 %v3170
    %3505 = vmatpush2.bf16.msra.mxu0 %v3169
    %3506 = vmatprep.subr.bf16.mxu0 %v3162
    %3507 = vmatpush2.bf16.msra.mxu0 %v3161
    %3508 = vmatprep.subr.bf16.mxu0 %v3154
    %3509 = vmatpush2.bf16.msra.mxu0 %v3153
    %3510 = vmatprep.subr.bf16.mxu0 %v3146
    %3511 = vmatpush2.bf16.msra.mxu0 %v3145
    %3512 = vmatprep.subr.bf16.mxu0 %v3138
    %3513 = vmatpush2.bf16.msra.mxu0 %v3137
    %3514 = vmatprep.mubr.bf16.mxu0 %v2510
    %3515 = vmatmul.mubr.bf16.gmra.mxu0 %v2509
    %v3516 = vpop.f32.mrf.mxu0
    %v3517 = vadd.f32 %v2670, %v3516
    %v3518 = vpop.f32.mrf.mxu0
    %v3519 = vadd.f32 %v2674, %v3518
    %v3520 = vpop.f32.mrf.mxu0
    %v3521 = vadd.f32 %v2670, %v3520
    %v3522 = vpop.f32.mrf.mxu0
    %v3523 = vadd.f32 %v2674, %v3522
    %3524 = vmatprep.mubr.bf16.mxu0 %v2512
    %3525 = vmatmul.mubr.bf16.gmra.mxu0 %v2511
    %v3526 = vpop.f32.mrf.mxu0
    %v3527 = vadd.f32 %v2670, %v3526
    %v3528 = vpop.f32.mrf.mxu0
    %v3529 = vadd.f32 %v2674, %v3528
    %v3530 = vpop.f32.mrf.mxu0
    %v3531 = vadd.f32 %v2670, %v3530
    %v3532 = vpop.f32.mrf.mxu0
    %v3533 = vadd.f32 %v2674, %v3532
    %3534 = vdwg.mxu0
    %v3535 = vmul.f32 %v3358, 0.5
    %v3536 = vmul.f32 %v3360, 0.5
    %v3537 = vmul.f32 %v3411, 0.5
    %v3538 = vmul.f32 %v3413, 0.5
    %v3539 = vmul.f32 %v3464, 0.5
    %v3540 = vmul.f32 %v3466, 0.5
    %v3541 = vmul.f32 %v3517, 0.5
    %v3542 = vmul.f32 %v3519, 0.5
    %v3543 = vmul.f32 %v3362, 0.5
    %v3544 = vmul.f32 %v3364, 0.5
    %v3545 = vmul.f32 %v3415, 0.5
    %v3546 = vmul.f32 %v3417, 0.5
    %v3547 = vmul.f32 %v3468, 0.5
    %v3548 = vmul.f32 %v3470, 0.5
    %v3549 = vmul.f32 %v3521, 0.5
    %v3550 = vmul.f32 %v3523, 0.5
    %v3551 = vmul.f32 %v3368, 0.5
    %v3552 = vmul.f32 %v3370, 0.5
    %v3553 = vmul.f32 %v3421, 0.5
    %v3554 = vmul.f32 %v3423, 0.5
    %v3555 = vmul.f32 %v3474, 0.5
    %v3556 = vmul.f32 %v3476, 0.5
    %v3557 = vmul.f32 %v3527, 0.5
    %v3558 = vmul.f32 %v3529, 0.5
    %v3559 = vmul.f32 %v3372, 0.5
    %v3560 = vmul.f32 %v3374, 0.5
    %v3561 = vmul.f32 %v3425, 0.5
    %v3562 = vmul.f32 %v3427, 0.5
    %v3563 = vmul.f32 %v3478, 0.5
    %v3564 = vmul.f32 %v3480, 0.5
    %v3565 = vmul.f32 %v3531, 0.5
    %v3566 = vmul.f32 %v3533, 0.5
    %v3567 = vmul.f32 %v3358, 0.70710677
    %v3568 = vmul.f32 %v3360, 0.70710677
    %v3569 = vmul.f32 %v3411, 0.70710677
    %v3570 = vmul.f32 %v3413, 0.70710677
    %v3571 = vmul.f32 %v3464, 0.70710677
    %v3572 = vmul.f32 %v3466, 0.70710677
    %v3573 = vmul.f32 %v3517, 0.70710677
    %v3574 = vmul.f32 %v3519, 0.70710677
    %v3575 = vmul.f32 %v3362, 0.70710677
    %v3576 = vmul.f32 %v3364, 0.70710677
    %v3577 = vmul.f32 %v3415, 0.70710677
    %v3578 = vmul.f32 %v3417, 0.70710677
    %v3579 = vmul.f32 %v3468, 0.70710677
    %v3580 = vmul.f32 %v3470, 0.70710677
    %v3581 = vmul.f32 %v3521, 0.70710677
    %v3582 = vmul.f32 %v3523, 0.70710677
    %v3583 = vmul.f32 %v3368, 0.70710677
    %v3584 = vmul.f32 %v3370, 0.70710677
    %v3585 = vmul.f32 %v3421, 0.70710677
    %v3586 = vmul.f32 %v3423, 0.70710677
    %v3587 = vmul.f32 %v3474, 0.70710677
    %v3588 = vmul.f32 %v3476, 0.70710677
    %v3589 = vmul.f32 %v3527, 0.70710677
    %v3590 = vmul.f32 %v3529, 0.70710677
    %v3591 = vmul.f32 %v3372, 0.70710677
    %v3592 = vmul.f32 %v3374, 0.70710677
    %v3593 = vmul.f32 %v3425, 0.70710677
    %v3594 = vmul.f32 %v3427, 0.70710677
    %v3595 = vmul.f32 %v3478, 0.70710677
    %v3596 = vmul.f32 %v3480, 0.70710677
    %v3597 = vmul.f32 %v3531, 0.70710677
    %v3598 = vmul.f32 %v3533, 0.70710677
    %v3599 = verf.f32.pop %v3567
    %v3600 = verf.f32.pop %v3568
    %v3601 = verf.f32.pop %v3569
    %v3602 = verf.f32.pop %v3570
    %v3603 = verf.f32.pop %v3571
    %v3604 = verf.f32.pop %v3572
    %v3605 = verf.f32.pop %v3573
    %v3606 = verf.f32.pop %v3574
    %v3607 = verf.f32.pop %v3575
    %v3608 = verf.f32.pop %v3576
    %v3609 = verf.f32.pop %v3577
    %v3610 = verf.f32.pop %v3578
    %v3611 = verf.f32.pop %v3579
    %v3612 = verf.f32.pop %v3580
    %v3613 = verf.f32.pop %v3581
    %v3614 = verf.f32.pop %v3582
    %v3615 = verf.f32.pop %v3583
    %v3616 = verf.f32.pop %v3584
    %v3617 = verf.f32.pop %v3585
    %v3618 = verf.f32.pop %v3586
    %v3619 = verf.f32.pop %v3587
    %v3620 = verf.f32.pop %v3588
    %v3621 = verf.f32.pop %v3589
    %v3622 = verf.f32.pop %v3590
    %v3623 = verf.f32.pop %v3591
    %v3624 = verf.f32.pop %v3592
    %v3625 = verf.f32.pop %v3593
    %v3626 = verf.f32.pop %v3594
    %v3627 = verf.f32.pop %v3595
    %v3628 = verf.f32.pop %v3596
    %v3629 = verf.f32.pop %v3597
    %v3630 = verf.f32.pop %v3598
    %v3631 = vadd.f32 %v3599, 1.0
    %v3632 = vadd.f32 %v3600, 1.0
    %v3633 = vadd.f32 %v3601, 1.0
    %v3634 = vadd.f32 %v3602, 1.0
    %v3635 = vadd.f32 %v3603, 1.0
    %v3636 = vadd.f32 %v3604, 1.0
    %v3637 = vadd.f32 %v3605, 1.0
    %v3638 = vadd.f32 %v3606, 1.0
    %v3639 = vadd.f32 %v3607, 1.0
    %v3640 = vadd.f32 %v3608, 1.0
    %v3641 = vadd.f32 %v3609, 1.0
    %v3642 = vadd.f32 %v3610, 1.0
    %v3643 = vadd.f32 %v3611, 1.0
    %v3644 = vadd.f32 %v3612, 1.0
    %v3645 = vadd.f32 %v3613, 1.0
    %v3646 = vadd.f32 %v3614, 1.0
    %v3647 = vadd.f32 %v3615, 1.0
    %v3648 = vadd.f32 %v3616, 1.0
    %v3649 = vadd.f32 %v3617, 1.0
    %v3650 = vadd.f32 %v3618, 1.0
    %v3651 = vadd.f32 %v3619, 1.0
    %v3652 = vadd.f32 %v3620, 1.0
    %v3653 = vadd.f32 %v3621, 1.0
    %v3654 = vadd.f32 %v3622, 1.0
    %v3655 = vadd.f32 %v3623, 1.0
    %v3656 = vadd.f32 %v3624, 1.0
    %v3657 = vadd.f32 %v3625, 1.0
    %v3658 = vadd.f32 %v3626, 1.0
    %v3659 = vadd.f32 %v3627, 1.0
    %v3660 = vadd.f32 %v3628, 1.0
    %v3661 = vadd.f32 %v3629, 1.0
    %v3662 = vadd.f32 %v3630, 1.0
    %v3663 = vmul.f32 %v3535, %v3631
    %v3664 = vmul.f32 %v3536, %v3632
    %v3665 = vmul.f32 %v3537, %v3633
    %v3666 = vmul.f32 %v3538, %v3634
    %v3667 = vmul.f32 %v3539, %v3635
    %v3668 = vmul.f32 %v3540, %v3636
    %v3669 = vmul.f32 %v3541, %v3637
    %v3670 = vmul.f32 %v3542, %v3638
    %v3671 = vmul.f32 %v3543, %v3639
    %v3672 = vmul.f32 %v3544, %v3640
    %v3673 = vmul.f32 %v3545, %v3641
    %v3674 = vmul.f32 %v3546, %v3642
    %v3675 = vmul.f32 %v3547, %v3643
    %v3676 = vmul.f32 %v3548, %v3644
    %v3677 = vmul.f32 %v3549, %v3645
    %v3678 = vmul.f32 %v3550, %v3646
    %v3679 = vmul.f32 %v3551, %v3647
    %v3680 = vmul.f32 %v3552, %v3648
    %v3681 = vmul.f32 %v3553, %v3649
    %v3682 = vmul.f32 %v3554, %v3650
    %v3683 = vmul.f32 %v3555, %v3651
    %v3684 = vmul.f32 %v3556, %v3652
    %v3685 = vmul.f32 %v3557, %v3653
    %v3686 = vmul.f32 %v3558, %v3654
    %v3687 = vmul.f32 %v3559, %v3655
    %v3688 = vmul.f32 %v3560, %v3656
    %v3689 = vmul.f32 %v3561, %v3657
    %v3690 = vmul.f32 %v3562, %v3658
    %v3691 = vmul.f32 %v3563, %v3659
    %v3692 = vmul.f32 %v3564, %v3660
    %v3693 = vmul.f32 %v3565, %v3661
    %v3694 = vmul.f32 %v3566, %v3662
    %v3695 = vpack.c.bf16 %v3671, %v3663
    %v3696 = vpack.c.bf16 %v3672, %v3664
    %v3697 = vpack.c.bf16 %v3673, %v3665
    %v3698 = vpack.c.bf16 %v3674, %v3666
    %v3699 = vpack.c.bf16 %v3675, %v3667
    %v3700 = vpack.c.bf16 %v3676, %v3668
    %v3701 = vpack.c.bf16 %v3677, %v3669
    %v3702 = vpack.c.bf16 %v3678, %v3670
    %v3703 = vpack.c.bf16 %v3687, %v3679
    %v3704 = vpack.c.bf16 %v3688, %v3680
    %v3705 = vpack.c.bf16 %v3689, %v3681
    %v3706 = vpack.c.bf16 %v3690, %v3682
    %v3707 = vpack.c.bf16 %v3691, %v3683
    %v3708 = vpack.c.bf16 %v3692, %v3684
    %v3709 = vpack.c.bf16 %v3693, %v3685
    %v3710 = vpack.c.bf16 %v3694, %v3686
    %v3711 = vld [vmem:[#allocation17] sm:$0xff]
    %v3712 = vld [vmem:[#allocation17 + $0x8] sm:$0xff]
    %v3713 = vld [vmem:[#allocation17 + $0x10] sm:$0xff]
    %v3714 = vld [vmem:[#allocation17 + $0x18] sm:$0xff]
    %v3715 = vld [vmem:[#allocation17 + $0x20] sm:$0xff]
    %v3716 = vld [vmem:[#allocation17 + $0x28] sm:$0xff]
    %v3717 = vld [vmem:[#allocation17 + $0x30] sm:$0xff]
    %v3718 = vld [vmem:[#allocation17 + $0x38] sm:$0xff]
    %v3719 = vld [vmem:[#allocation17 + $0x40] sm:$0xff]
    %v3720 = vld [vmem:[#allocation17 + $0x48] sm:$0xff]
    %v3721 = vld [vmem:[#allocation17 + $0x50] sm:$0xff]
    %v3722 = vld [vmem:[#allocation17 + $0x58] sm:$0xff]
    %v3723 = vld [vmem:[#allocation17 + $0x60] sm:$0xff]
    %v3724 = vld [vmem:[#allocation17 + $0x68] sm:$0xff]
    %v3725 = vld [vmem:[#allocation17 + $0x70] sm:$0xff]
    %v3726 = vld [vmem:[#allocation17 + $0x78] sm:$0xff]
    %v3727 = vld [vmem:[#allocation17 + $0x80] sm:$0xff]
    %v3728 = vld [vmem:[#allocation17 + $0x88] sm:$0xff]
    %v3729 = vld [vmem:[#allocation17 + $0x90] sm:$0xff]
    %v3730 = vld [vmem:[#allocation17 + $0x98] sm:$0xff]
    %v3731 = vld [vmem:[#allocation17 + $0xa0] sm:$0xff]
    %v3732 = vld [vmem:[#allocation17 + $0xa8] sm:$0xff]
    %v3733 = vld [vmem:[#allocation17 + $0xb0] sm:$0xff]
    %v3734 = vld [vmem:[#allocation17 + $0xb8] sm:$0xff]
    %v3735 = vld [vmem:[#allocation17 + $0xc0] sm:$0xff]
    %v3736 = vld [vmem:[#allocation17 + $0xc8] sm:$0xff]
    %v3737 = vld [vmem:[#allocation17 + $0xd0] sm:$0xff]
    %v3738 = vld [vmem:[#allocation17 + $0xd8] sm:$0xff]
    %v3739 = vld [vmem:[#allocation17 + $0xe0] sm:$0xff]
    %v3740 = vld [vmem:[#allocation17 + $0xe8] sm:$0xff]
    %v3741 = vld [vmem:[#allocation17 + $0xf0] sm:$0xff]
    %v3742 = vld [vmem:[#allocation17 + $0xf8] sm:$0xff]
    %v3743 = vld [vmem:[#allocation17 + $0x100] sm:$0xff]
    %v3744 = vld [vmem:[#allocation17 + $0x108] sm:$0xff]
    %v3745 = vld [vmem:[#allocation17 + $0x110] sm:$0xff]
    %v3746 = vld [vmem:[#allocation17 + $0x118] sm:$0xff]
    %v3747 = vld [vmem:[#allocation17 + $0x120] sm:$0xff]
    %v3748 = vld [vmem:[#allocation17 + $0x128] sm:$0xff]
    %v3749 = vld [vmem:[#allocation17 + $0x130] sm:$0xff]
    %v3750 = vld [vmem:[#allocation17 + $0x138] sm:$0xff]
    %v3751 = vld [vmem:[#allocation17 + $0x140] sm:$0xff]
    %v3752 = vld [vmem:[#allocation17 + $0x148] sm:$0xff]
    %v3753 = vld [vmem:[#allocation17 + $0x150] sm:$0xff]
    %v3754 = vld [vmem:[#allocation17 + $0x158] sm:$0xff]
    %v3755 = vld [vmem:[#allocation17 + $0x160] sm:$0xff]
    %v3756 = vld [vmem:[#allocation17 + $0x168] sm:$0xff]
    %v3757 = vld [vmem:[#allocation17 + $0x170] sm:$0xff]
    %v3758 = vld [vmem:[#allocation17 + $0x178] sm:$0xff]
    %v3759 = vld [vmem:[#allocation17 + $0x180] sm:$0xff]
    %v3760 = vld [vmem:[#allocation17 + $0x188] sm:$0xff]
    %v3761 = vld [vmem:[#allocation17 + $0x190] sm:$0xff]
    %v3762 = vld [vmem:[#allocation17 + $0x198] sm:$0xff]
    %v3763 = vld [vmem:[#allocation17 + $0x1a0] sm:$0xff]
    %v3764 = vld [vmem:[#allocation17 + $0x1a8] sm:$0xff]
    %v3765 = vld [vmem:[#allocation17 + $0x1b0] sm:$0xff]
    %v3766 = vld [vmem:[#allocation17 + $0x1b8] sm:$0xff]
    %v3767 = vld [vmem:[#allocation17 + $0x1c0] sm:$0xff]
    %v3768 = vld [vmem:[#allocation17 + $0x1c8] sm:$0xff]
    %v3769 = vld [vmem:[#allocation17 + $0x1d0] sm:$0xff]
    %v3770 = vld [vmem:[#allocation17 + $0x1d8] sm:$0xff]
    %v3771 = vld [vmem:[#allocation17 + $0x1e0] sm:$0xff]
    %v3772 = vld [vmem:[#allocation17 + $0x1e8] sm:$0xff]
    %v3773 = vld [vmem:[#allocation17 + $0x1f0] sm:$0xff]
    %v3774 = vld [vmem:[#allocation17 + $0x1f8] sm:$0xff]
    %v3775 = vld [vmem:[#allocation17 + $0x200] sm:$0xff]
    %v3776 = vld [vmem:[#allocation17 + $0x208] sm:$0xff]
    %v3777 = vld [vmem:[#allocation17 + $0x210] sm:$0xff]
    %v3778 = vld [vmem:[#allocation17 + $0x218] sm:$0xff]
    %v3779 = vld [vmem:[#allocation17 + $0x220] sm:$0xff]
    %v3780 = vld [vmem:[#allocation17 + $0x228] sm:$0xff]
    %v3781 = vld [vmem:[#allocation17 + $0x230] sm:$0xff]
    %v3782 = vld [vmem:[#allocation17 + $0x238] sm:$0xff]
    %v3783 = vld [vmem:[#allocation17 + $0x240] sm:$0xff]
    %v3784 = vld [vmem:[#allocation17 + $0x248] sm:$0xff]
    %v3785 = vld [vmem:[#allocation17 + $0x250] sm:$0xff]
    %v3786 = vld [vmem:[#allocation17 + $0x258] sm:$0xff]
    %v3787 = vld [vmem:[#allocation17 + $0x260] sm:$0xff]
    %v3788 = vld [vmem:[#allocation17 + $0x268] sm:$0xff]
    %v3789 = vld [vmem:[#allocation17 + $0x270] sm:$0xff]
    %v3790 = vld [vmem:[#allocation17 + $0x278] sm:$0xff]
    %v3791 = vld [vmem:[#allocation17 + $0x280] sm:$0xff]
    %v3792 = vld [vmem:[#allocation17 + $0x288] sm:$0xff]
    %v3793 = vld [vmem:[#allocation17 + $0x290] sm:$0xff]
    %v3794 = vld [vmem:[#allocation17 + $0x298] sm:$0xff]
    %v3795 = vld [vmem:[#allocation17 + $0x2a0] sm:$0xff]
    %v3796 = vld [vmem:[#allocation17 + $0x2a8] sm:$0xff]
    %v3797 = vld [vmem:[#allocation17 + $0x2b0] sm:$0xff]
    %v3798 = vld [vmem:[#allocation17 + $0x2b8] sm:$0xff]
    %v3799 = vld [vmem:[#allocation17 + $0x2c0] sm:$0xff]
    %v3800 = vld [vmem:[#allocation17 + $0x2c8] sm:$0xff]
    %v3801 = vld [vmem:[#allocation17 + $0x2d0] sm:$0xff]
    %v3802 = vld [vmem:[#allocation17 + $0x2d8] sm:$0xff]
    %v3803 = vld [vmem:[#allocation17 + $0x2e0] sm:$0xff]
    %v3804 = vld [vmem:[#allocation17 + $0x2e8] sm:$0xff]
    %v3805 = vld [vmem:[#allocation17 + $0x2f0] sm:$0xff]
    %v3806 = vld [vmem:[#allocation17 + $0x2f8] sm:$0xff]
    %v3807 = vld [vmem:[#allocation17 + $0x300] sm:$0xff]
    %v3808 = vld [vmem:[#allocation17 + $0x308] sm:$0xff]
    %v3809 = vld [vmem:[#allocation17 + $0x310] sm:$0xff]
    %v3810 = vld [vmem:[#allocation17 + $0x318] sm:$0xff]
    %v3811 = vld [vmem:[#allocation17 + $0x320] sm:$0xff]
    %v3812 = vld [vmem:[#allocation17 + $0x328] sm:$0xff]
    %v3813 = vld [vmem:[#allocation17 + $0x330] sm:$0xff]
    %v3814 = vld [vmem:[#allocation17 + $0x338] sm:$0xff]
    %v3815 = vld [vmem:[#allocation17 + $0x340] sm:$0xff]
    %v3816 = vld [vmem:[#allocation17 + $0x348] sm:$0xff]
    %v3817 = vld [vmem:[#allocation17 + $0x350] sm:$0xff]
    %v3818 = vld [vmem:[#allocation17 + $0x358] sm:$0xff]
    %v3819 = vld [vmem:[#allocation17 + $0x360] sm:$0xff]
    %v3820 = vld [vmem:[#allocation17 + $0x368] sm:$0xff]
    %v3821 = vld [vmem:[#allocation17 + $0x370] sm:$0xff]
    %v3822 = vld [vmem:[#allocation17 + $0x378] sm:$0xff]
    %v3823 = vld [vmem:[#allocation17 + $0x380] sm:$0xff]
    %v3824 = vld [vmem:[#allocation17 + $0x388] sm:$0xff]
    %v3825 = vld [vmem:[#allocation17 + $0x390] sm:$0xff]
    %v3826 = vld [vmem:[#allocation17 + $0x398] sm:$0xff]
    %v3827 = vld [vmem:[#allocation17 + $0x3a0] sm:$0xff]
    %v3828 = vld [vmem:[#allocation17 + $0x3a8] sm:$0xff]
    %v3829 = vld [vmem:[#allocation17 + $0x3b0] sm:$0xff]
    %v3830 = vld [vmem:[#allocation17 + $0x3b8] sm:$0xff]
    %v3831 = vld [vmem:[#allocation17 + $0x3c0] sm:$0xff]
    %v3832 = vld [vmem:[#allocation17 + $0x3c8] sm:$0xff]
    %v3833 = vld [vmem:[#allocation17 + $0x3d0] sm:$0xff]
    %v3834 = vld [vmem:[#allocation17 + $0x3d8] sm:$0xff]
    %v3835 = vld [vmem:[#allocation17 + $0x3e0] sm:$0xff]
    %v3836 = vld [vmem:[#allocation17 + $0x3e8] sm:$0xff]
    %v3837 = vld [vmem:[#allocation17 + $0x3f0] sm:$0xff]
    %v3838 = vld [vmem:[#allocation17 + $0x3f8] sm:$0xff]
    %v3839 = vld [vmem:[%s12] sm:$0x3]
    %v3841 = vlaneseq
    %v3842 = vshrl.u32 %v3841, 7
    %v3843 = vsub.s32 0, %v3842
    %v3844 = vrot.slane %v3839, %v3843
    %v3845 = vlaneseq
    %v3846 = vshrl.u32 %v3845, 7
    %v3847 = vsub.s32 1, %v3846
    %v3848 = vrot.slane %v3839, %v3847
    %v3979 = vunpack.c.l.b16 %v3711
    %v3980 = vunpack.c.h.b16 %v3711
    %v3981 = vunpack.c.l.b16 %v3712
    %v3982 = vunpack.c.h.b16 %v3712
    %v3983 = vunpack.c.l.b16 %v3713
    %v3984 = vunpack.c.h.b16 %v3713
    %v3985 = vunpack.c.l.b16 %v3714
    %v3986 = vunpack.c.h.b16 %v3714
    %v3987 = vunpack.c.l.b16 %v3715
    %v3988 = vunpack.c.h.b16 %v3715
    %v3989 = vunpack.c.l.b16 %v3716
    %v3990 = vunpack.c.h.b16 %v3716
    %v3991 = vunpack.c.l.b16 %v3717
    %v3992 = vunpack.c.h.b16 %v3717
    %v3993 = vunpack.c.l.b16 %v3718
    %v3994 = vunpack.c.h.b16 %v3718
    %v3995 = vunpack.c.l.b16 %v3719
    %v3996 = vunpack.c.h.b16 %v3719
    %v3997 = vunpack.c.l.b16 %v3720
    %v3998 = vunpack.c.h.b16 %v3720
    %v3999 = vunpack.c.l.b16 %v3721
    %v4000 = vunpack.c.h.b16 %v3721
    %v4001 = vunpack.c.l.b16 %v3722
    %v4002 = vunpack.c.h.b16 %v3722
    %v4003 = vunpack.c.l.b16 %v3723
    %v4004 = vunpack.c.h.b16 %v3723
    %v4005 = vunpack.c.l.b16 %v3724
    %v4006 = vunpack.c.h.b16 %v3724
    %v4007 = vunpack.c.l.b16 %v3725
    %v4008 = vunpack.c.h.b16 %v3725
    %v4009 = vunpack.c.l.b16 %v3726
    %v4010 = vunpack.c.h.b16 %v3726
    %v4011 = vunpack.c.l.b16 %v3727
    %v4012 = vunpack.c.h.b16 %v3727
    %v4013 = vunpack.c.l.b16 %v3728
    %v4014 = vunpack.c.h.b16 %v3728
    %v4015 = vunpack.c.l.b16 %v3729
    %v4016 = vunpack.c.h.b16 %v3729
    %v4017 = vunpack.c.l.b16 %v3730
    %v4018 = vunpack.c.h.b16 %v3730
    %v4019 = vunpack.c.l.b16 %v3731
    %v4020 = vunpack.c.h.b16 %v3731
    %v4021 = vunpack.c.l.b16 %v3732
    %v4022 = vunpack.c.h.b16 %v3732
    %v4023 = vunpack.c.l.b16 %v3733
    %v4024 = vunpack.c.h.b16 %v3733
    %v4025 = vunpack.c.l.b16 %v3734
    %v4026 = vunpack.c.h.b16 %v3734
    %v4027 = vunpack.c.l.b16 %v3735
    %v4028 = vunpack.c.h.b16 %v3735
    %v4029 = vunpack.c.l.b16 %v3736
    %v4030 = vunpack.c.h.b16 %v3736
    %v4031 = vunpack.c.l.b16 %v3737
    %v4032 = vunpack.c.h.b16 %v3737
    %v4033 = vunpack.c.l.b16 %v3738
    %v4034 = vunpack.c.h.b16 %v3738
    %v4035 = vunpack.c.l.b16 %v3739
    %v4036 = vunpack.c.h.b16 %v3739
    %v4037 = vunpack.c.l.b16 %v3740
    %v4038 = vunpack.c.h.b16 %v3740
    %v4039 = vunpack.c.l.b16 %v3741
    %v4040 = vunpack.c.h.b16 %v3741
    %v4041 = vunpack.c.l.b16 %v3742
    %v4042 = vunpack.c.h.b16 %v3742
    %v4043 = vunpack.c.l.b16 %v3743
    %v4044 = vunpack.c.h.b16 %v3743
    %v4045 = vunpack.c.l.b16 %v3744
    %v4046 = vunpack.c.h.b16 %v3744
    %v4047 = vunpack.c.l.b16 %v3745
    %v4048 = vunpack.c.h.b16 %v3745
    %v4049 = vunpack.c.l.b16 %v3746
    %v4050 = vunpack.c.h.b16 %v3746
    %v4051 = vunpack.c.l.b16 %v3747
    %v4052 = vunpack.c.h.b16 %v3747
    %v4053 = vunpack.c.l.b16 %v3748
    %v4054 = vunpack.c.h.b16 %v3748
    %v4055 = vunpack.c.l.b16 %v3749
    %v4056 = vunpack.c.h.b16 %v3749
    %v4057 = vunpack.c.l.b16 %v3750
    %v4058 = vunpack.c.h.b16 %v3750
    %v4059 = vunpack.c.l.b16 %v3751
    %v4060 = vunpack.c.h.b16 %v3751
    %v4061 = vunpack.c.l.b16 %v3752
    %v4062 = vunpack.c.h.b16 %v3752
    %v4063 = vunpack.c.l.b16 %v3753
    %v4064 = vunpack.c.h.b16 %v3753
    %v4065 = vunpack.c.l.b16 %v3754
    %v4066 = vunpack.c.h.b16 %v3754
    %v4067 = vunpack.c.l.b16 %v3755
    %v4068 = vunpack.c.h.b16 %v3755
    %v4069 = vunpack.c.l.b16 %v3756
    %v4070 = vunpack.c.h.b16 %v3756
    %v4071 = vunpack.c.l.b16 %v3757
    %v4072 = vunpack.c.h.b16 %v3757
    %v4073 = vunpack.c.l.b16 %v3758
    %v4074 = vunpack.c.h.b16 %v3758
    %v4075 = vunpack.c.l.b16 %v3759
    %v4076 = vunpack.c.h.b16 %v3759
    %v4077 = vunpack.c.l.b16 %v3760
    %v4078 = vunpack.c.h.b16 %v3760
    %v4079 = vunpack.c.l.b16 %v3761
    %v4080 = vunpack.c.h.b16 %v3761
    %v4081 = vunpack.c.l.b16 %v3762
    %v4082 = vunpack.c.h.b16 %v3762
    %v4083 = vunpack.c.l.b16 %v3763
    %v4084 = vunpack.c.h.b16 %v3763
    %v4085 = vunpack.c.l.b16 %v3764
    %v4086 = vunpack.c.h.b16 %v3764
    %v4087 = vunpack.c.l.b16 %v3765
    %v4088 = vunpack.c.h.b16 %v3765
    %v4089 = vunpack.c.l.b16 %v3766
    %v4090 = vunpack.c.h.b16 %v3766
    %v4091 = vunpack.c.l.b16 %v3767
    %v4092 = vunpack.c.h.b16 %v3767
    %v4093 = vunpack.c.l.b16 %v3768
    %v4094 = vunpack.c.h.b16 %v3768
    %v4095 = vunpack.c.l.b16 %v3769
    %v4096 = vunpack.c.h.b16 %v3769
    %v4097 = vunpack.c.l.b16 %v3770
    %v4098 = vunpack.c.h.b16 %v3770
    %v4099 = vunpack.c.l.b16 %v3771
    %v4100 = vunpack.c.h.b16 %v3771
    %v4101 = vunpack.c.l.b16 %v3772
    %v4102 = vunpack.c.h.b16 %v3772
    %v4103 = vunpack.c.l.b16 %v3773
    %v4104 = vunpack.c.h.b16 %v3773
    %v4105 = vunpack.c.l.b16 %v3774
    %v4106 = vunpack.c.h.b16 %v3774
    %v4107 = vunpack.c.l.b16 %v3775
    %v4108 = vunpack.c.h.b16 %v3775
    %v4109 = vunpack.c.l.b16 %v3776
    %v4110 = vunpack.c.h.b16 %v3776
    %v4111 = vunpack.c.l.b16 %v3777
    %v4112 = vunpack.c.h.b16 %v3777
    %v4113 = vunpack.c.l.b16 %v3778
    %v4114 = vunpack.c.h.b16 %v3778
    %v4115 = vunpack.c.l.b16 %v3779
    %v4116 = vunpack.c.h.b16 %v3779
    %v4117 = vunpack.c.l.b16 %v3780
    %v4118 = vunpack.c.h.b16 %v3780
    %v4119 = vunpack.c.l.b16 %v3781
    %v4120 = vunpack.c.h.b16 %v3781
    %v4121 = vunpack.c.l.b16 %v3782
    %v4122 = vunpack.c.h.b16 %v3782
    %v4123 = vunpack.c.l.b16 %v3783
    %v4124 = vunpack.c.h.b16 %v3783
    %v4125 = vunpack.c.l.b16 %v3784
    %v4126 = vunpack.c.h.b16 %v3784
    %v4127 = vunpack.c.l.b16 %v3785
    %v4128 = vunpack.c.h.b16 %v3785
    %v4129 = vunpack.c.l.b16 %v3786
    %v4130 = vunpack.c.h.b16 %v3786
    %v4131 = vunpack.c.l.b16 %v3787
    %v4132 = vunpack.c.h.b16 %v3787
    %v4133 = vunpack.c.l.b16 %v3788
    %v4134 = vunpack.c.h.b16 %v3788
    %v4135 = vunpack.c.l.b16 %v3789
    %v4136 = vunpack.c.h.b16 %v3789
    %v4137 = vunpack.c.l.b16 %v3790
    %v4138 = vunpack.c.h.b16 %v3790
    %v4139 = vunpack.c.l.b16 %v3791
    %v4140 = vunpack.c.h.b16 %v3791
    %v4141 = vunpack.c.l.b16 %v3792
    %v4142 = vunpack.c.h.b16 %v3792
    %v4143 = vunpack.c.l.b16 %v3793
    %v4144 = vunpack.c.h.b16 %v3793
    %v4145 = vunpack.c.l.b16 %v3794
    %v4146 = vunpack.c.h.b16 %v3794
    %v4147 = vunpack.c.l.b16 %v3795
    %v4148 = vunpack.c.h.b16 %v3795
    %v4149 = vunpack.c.l.b16 %v3796
    %v4150 = vunpack.c.h.b16 %v3796
    %v4151 = vunpack.c.l.b16 %v3797
    %v4152 = vunpack.c.h.b16 %v3797
    %v4153 = vunpack.c.l.b16 %v3798
    %v4154 = vunpack.c.h.b16 %v3798
    %v4155 = vunpack.c.l.b16 %v3799
    %v4156 = vunpack.c.h.b16 %v3799
    %v4157 = vunpack.c.l.b16 %v3800
    %v4158 = vunpack.c.h.b16 %v3800
    %v4159 = vunpack.c.l.b16 %v3801
    %v4160 = vunpack.c.h.b16 %v3801
    %v4161 = vunpack.c.l.b16 %v3802
    %v4162 = vunpack.c.h.b16 %v3802
    %v4163 = vunpack.c.l.b16 %v3803
    %v4164 = vunpack.c.h.b16 %v3803
    %v4165 = vunpack.c.l.b16 %v3804
    %v4166 = vunpack.c.h.b16 %v3804
    %v4167 = vunpack.c.l.b16 %v3805
    %v4168 = vunpack.c.h.b16 %v3805
    %v4169 = vunpack.c.l.b16 %v3806
    %v4170 = vunpack.c.h.b16 %v3806
    %v4171 = vunpack.c.l.b16 %v3807
    %v4172 = vunpack.c.h.b16 %v3807
    %v4173 = vunpack.c.l.b16 %v3808
    %v4174 = vunpack.c.h.b16 %v3808
    %v4175 = vunpack.c.l.b16 %v3809
    %v4176 = vunpack.c.h.b16 %v3809
    %v4177 = vunpack.c.l.b16 %v3810
    %v4178 = vunpack.c.h.b16 %v3810
    %v4179 = vunpack.c.l.b16 %v3811
    %v4180 = vunpack.c.h.b16 %v3811
    %v4181 = vunpack.c.l.b16 %v3812
    %v4182 = vunpack.c.h.b16 %v3812
    %v4183 = vunpack.c.l.b16 %v3813
    %v4184 = vunpack.c.h.b16 %v3813
    %v4185 = vunpack.c.l.b16 %v3814
    %v4186 = vunpack.c.h.b16 %v3814
    %v4187 = vunpack.c.l.b16 %v3815
    %v4188 = vunpack.c.h.b16 %v3815
    %v4189 = vunpack.c.l.b16 %v3816
    %v4190 = vunpack.c.h.b16 %v3816
    %v4191 = vunpack.c.l.b16 %v3817
    %v4192 = vunpack.c.h.b16 %v3817
    %v4193 = vunpack.c.l.b16 %v3818
    %v4194 = vunpack.c.h.b16 %v3818
    %v4195 = vunpack.c.l.b16 %v3819
    %v4196 = vunpack.c.h.b16 %v3819
    %v4197 = vunpack.c.l.b16 %v3820
    %v4198 = vunpack.c.h.b16 %v3820
    %v4199 = vunpack.c.l.b16 %v3821
    %v4200 = vunpack.c.h.b16 %v3821
    %v4201 = vunpack.c.l.b16 %v3822
    %v4202 = vunpack.c.h.b16 %v3822
    %v4203 = vunpack.c.l.b16 %v3823
    %v4204 = vunpack.c.h.b16 %v3823
    %v4205 = vunpack.c.l.b16 %v3824
    %v4206 = vunpack.c.h.b16 %v3824
    %v4207 = vunpack.c.l.b16 %v3825
    %v4208 = vunpack.c.h.b16 %v3825
    %v4209 = vunpack.c.l.b16 %v3826
    %v4210 = vunpack.c.h.b16 %v3826
    %v4211 = vunpack.c.l.b16 %v3827
    %v4212 = vunpack.c.h.b16 %v3827
    %v4213 = vunpack.c.l.b16 %v3828
    %v4214 = vunpack.c.h.b16 %v3828
    %v4215 = vunpack.c.l.b16 %v3829
    %v4216 = vunpack.c.h.b16 %v3829
    %v4217 = vunpack.c.l.b16 %v3830
    %v4218 = vunpack.c.h.b16 %v3830
    %v4219 = vunpack.c.l.b16 %v3831
    %v4220 = vunpack.c.h.b16 %v3831
    %v4221 = vunpack.c.l.b16 %v3832
    %v4222 = vunpack.c.h.b16 %v3832
    %v4223 = vunpack.c.l.b16 %v3833
    %v4224 = vunpack.c.h.b16 %v3833
    %v4225 = vunpack.c.l.b16 %v3834
    %v4226 = vunpack.c.h.b16 %v3834
    %v4227 = vunpack.c.l.b16 %v3835
    %v4228 = vunpack.c.h.b16 %v3835
    %v4229 = vunpack.c.l.b16 %v3836
    %v4230 = vunpack.c.h.b16 %v3836
    %v4231 = vunpack.c.l.b16 %v3837
    %v4232 = vunpack.c.h.b16 %v3837
    %v4233 = vunpack.c.l.b16 %v3838
    %v4234 = vunpack.c.h.b16 %v3838
    %v4235 = vpack.c.b16 %v3981, %v3979
    %v4236 = vpack.c.b16 %v3982, %v3980
    %v4237 = vpack.c.b16 %v3985, %v3983
    %v4238 = vpack.c.b16 %v3986, %v3984
    %v4239 = vpack.c.b16 %v3989, %v3987
    %v4240 = vpack.c.b16 %v3990, %v3988
    %v4241 = vpack.c.b16 %v3993, %v3991
    %v4242 = vpack.c.b16 %v3994, %v3992
    %v4243 = vpack.c.b16 %v3997, %v3995
    %v4244 = vpack.c.b16 %v3998, %v3996
    %v4245 = vpack.c.b16 %v4001, %v3999
    %v4246 = vpack.c.b16 %v4002, %v4000
    %v4247 = vpack.c.b16 %v4005, %v4003
    %v4248 = vpack.c.b16 %v4006, %v4004
    %v4249 = vpack.c.b16 %v4009, %v4007
    %v4250 = vpack.c.b16 %v4010, %v4008
    %v4251 = vpack.c.b16 %v4013, %v4011
    %v4252 = vpack.c.b16 %v4014, %v4012
    %v4253 = vpack.c.b16 %v4017, %v4015
    %v4254 = vpack.c.b16 %v4018, %v4016
    %v4255 = vpack.c.b16 %v4021, %v4019
    %v4256 = vpack.c.b16 %v4022, %v4020
    %v4257 = vpack.c.b16 %v4025, %v4023
    %v4258 = vpack.c.b16 %v4026, %v4024
    %v4259 = vpack.c.b16 %v4029, %v4027
    %v4260 = vpack.c.b16 %v4030, %v4028
    %v4261 = vpack.c.b16 %v4033, %v4031
    %v4262 = vpack.c.b16 %v4034, %v4032
    %v4263 = vpack.c.b16 %v4037, %v4035
    %v4264 = vpack.c.b16 %v4038, %v4036
    %v4265 = vpack.c.b16 %v4041, %v4039
    %v4266 = vpack.c.b16 %v4042, %v4040
    %v4267 = vpack.c.b16 %v4045, %v4043
    %v4268 = vpack.c.b16 %v4046, %v4044
    %v4269 = vpack.c.b16 %v4049, %v4047
    %v4270 = vpack.c.b16 %v4050, %v4048
    %v4271 = vpack.c.b16 %v4053, %v4051
    %v4272 = vpack.c.b16 %v4054, %v4052
    %v4273 = vpack.c.b16 %v4057, %v4055
    %v4274 = vpack.c.b16 %v4058, %v4056
    %v4275 = vpack.c.b16 %v4061, %v4059
    %v4276 = vpack.c.b16 %v4062, %v4060
    %v4277 = vpack.c.b16 %v4065, %v4063
    %v4278 = vpack.c.b16 %v4066, %v4064
    %v4279 = vpack.c.b16 %v4069, %v4067
    %v4280 = vpack.c.b16 %v4070, %v4068
    %v4281 = vpack.c.b16 %v4073, %v4071
    %v4282 = vpack.c.b16 %v4074, %v4072
    %v4283 = vpack.c.b16 %v4077, %v4075
    %v4284 = vpack.c.b16 %v4078, %v4076
    %v4285 = vpack.c.b16 %v4081, %v4079
    %v4286 = vpack.c.b16 %v4082, %v4080
    %v4287 = vpack.c.b16 %v4085, %v4083
    %v4288 = vpack.c.b16 %v4086, %v4084
    %v4289 = vpack.c.b16 %v4089, %v4087
    %v4290 = vpack.c.b16 %v4090, %v4088
    %v4291 = vpack.c.b16 %v4093, %v4091
    %v4292 = vpack.c.b16 %v4094, %v4092
    %v4293 = vpack.c.b16 %v4097, %v4095
    %v4294 = vpack.c.b16 %v4098, %v4096
    %v4295 = vpack.c.b16 %v4101, %v4099
    %v4296 = vpack.c.b16 %v4102, %v4100
    %v4297 = vpack.c.b16 %v4105, %v4103
    %v4298 = vpack.c.b16 %v4106, %v4104
    %v4299 = vpack.c.b16 %v4109, %v4107
    %v4300 = vpack.c.b16 %v4110, %v4108
    %v4301 = vpack.c.b16 %v4113, %v4111
    %v4302 = vpack.c.b16 %v4114, %v4112
    %v4303 = vpack.c.b16 %v4117, %v4115
    %v4304 = vpack.c.b16 %v4118, %v4116
    %v4305 = vpack.c.b16 %v4121, %v4119
    %v4306 = vpack.c.b16 %v4122, %v4120
    %v4307 = vpack.c.b16 %v4125, %v4123
    %v4308 = vpack.c.b16 %v4126, %v4124
    %v4309 = vpack.c.b16 %v4129, %v4127
    %v4310 = vpack.c.b16 %v4130, %v4128
    %v4311 = vpack.c.b16 %v4133, %v4131
    %v4312 = vpack.c.b16 %v4134, %v4132
    %v4313 = vpack.c.b16 %v4137, %v4135
    %v4314 = vpack.c.b16 %v4138, %v4136
    %v4315 = vpack.c.b16 %v4141, %v4139
    %v4316 = vpack.c.b16 %v4142, %v4140
    %v4317 = vpack.c.b16 %v4145, %v4143
    %v4318 = vpack.c.b16 %v4146, %v4144
    %v4319 = vpack.c.b16 %v4149, %v4147
    %v4320 = vpack.c.b16 %v4150, %v4148
    %v4321 = vpack.c.b16 %v4153, %v4151
    %v4322 = vpack.c.b16 %v4154, %v4152
    %v4323 = vpack.c.b16 %v4157, %v4155
    %v4324 = vpack.c.b16 %v4158, %v4156
    %v4325 = vpack.c.b16 %v4161, %v4159
    %v4326 = vpack.c.b16 %v4162, %v4160
    %v4327 = vpack.c.b16 %v4165, %v4163
    %v4328 = vpack.c.b16 %v4166, %v4164
    %v4329 = vpack.c.b16 %v4169, %v4167
    %v4330 = vpack.c.b16 %v4170, %v4168
    %v4331 = vpack.c.b16 %v4173, %v4171
    %v4332 = vpack.c.b16 %v4174, %v4172
    %v4333 = vpack.c.b16 %v4177, %v4175
    %v4334 = vpack.c.b16 %v4178, %v4176
    %v4335 = vpack.c.b16 %v4181, %v4179
    %v4336 = vpack.c.b16 %v4182, %v4180
    %v4337 = vpack.c.b16 %v4185, %v4183
    %v4338 = vpack.c.b16 %v4186, %v4184
    %v4339 = vpack.c.b16 %v4189, %v4187
    %v4340 = vpack.c.b16 %v4190, %v4188
    %v4341 = vpack.c.b16 %v4193, %v4191
    %v4342 = vpack.c.b16 %v4194, %v4192
    %v4343 = vpack.c.b16 %v4197, %v4195
    %v4344 = vpack.c.b16 %v4198, %v4196
    %v4345 = vpack.c.b16 %v4201, %v4199
    %v4346 = vpack.c.b16 %v4202, %v4200
    %v4347 = vpack.c.b16 %v4205, %v4203
    %v4348 = vpack.c.b16 %v4206, %v4204
    %v4349 = vpack.c.b16 %v4209, %v4207
    %v4350 = vpack.c.b16 %v4210, %v4208
    %v4351 = vpack.c.b16 %v4213, %v4211
    %v4352 = vpack.c.b16 %v4214, %v4212
    %v4353 = vpack.c.b16 %v4217, %v4215
    %v4354 = vpack.c.b16 %v4218, %v4216
    %v4355 = vpack.c.b16 %v4221, %v4219
    %v4356 = vpack.c.b16 %v4222, %v4220
    %v4357 = vpack.c.b16 %v4225, %v4223
    %v4358 = vpack.c.b16 %v4226, %v4224
    %v4359 = vpack.c.b16 %v4229, %v4227
    %v4360 = vpack.c.b16 %v4230, %v4228
    %v4361 = vpack.c.b16 %v4233, %v4231
    %v4362 = vpack.c.b16 %v4234, %v4232
    %4491 = vmatprep.subr.bf16.mxu0 %v4250
    %4492 = vmatpush1.bf16.msra.mxu0 %v4249
    %4493 = vmatprep.subr.bf16.mxu0 %v4248
    %4494 = vmatpush1.bf16.msra.mxu0 %v4247
    %4495 = vmatprep.subr.bf16.mxu0 %v4246
    %4496 = vmatpush1.bf16.msra.mxu0 %v4245
    %4497 = vmatprep.subr.bf16.mxu0 %v4244
    %4498 = vmatpush1.bf16.msra.mxu0 %v4243
    %4499 = vmatprep.subr.bf16.mxu0 %v4242
    %4500 = vmatpush1.bf16.msra.mxu0 %v4241
    %4501 = vmatprep.subr.bf16.mxu0 %v4240
    %4502 = vmatpush1.bf16.msra.mxu0 %v4239
    %4503 = vmatprep.subr.bf16.mxu0 %v4238
    %4504 = vmatpush1.bf16.msra.mxu0 %v4237
    %4505 = vmatprep.subr.bf16.mxu0 %v4236
    %4506 = vmatpush1.bf16.msra.mxu0 %v4235
    %4507 = vmatprep.subr.bf16.mxu0 %v4266
    %4508 = vmatpush2.bf16.msra.mxu0 %v4265
    %4509 = vmatprep.subr.bf16.mxu0 %v4264
    %4510 = vmatpush2.bf16.msra.mxu0 %v4263
    %4511 = vmatprep.subr.bf16.mxu0 %v4262
    %4512 = vmatpush2.bf16.msra.mxu0 %v4261
    %4513 = vmatprep.subr.bf16.mxu0 %v4260
    %4514 = vmatpush2.bf16.msra.mxu0 %v4259
    %4515 = vmatprep.subr.bf16.mxu0 %v4258
    %4516 = vmatpush2.bf16.msra.mxu0 %v4257
    %4517 = vmatprep.subr.bf16.mxu0 %v4256
    %4518 = vmatpush2.bf16.msra.mxu0 %v4255
    %4519 = vmatprep.subr.bf16.mxu0 %v4254
    %4520 = vmatpush2.bf16.msra.mxu0 %v4253
    %4521 = vmatprep.subr.bf16.mxu0 %v4252
    %4522 = vmatpush2.bf16.msra.mxu0 %v4251
    %4523 = vmatprep.mubr.bf16.mxu0 %v3696
    %4524 = vmatmul.mubr.bf16.gmra.mxu0 %v3695
    %v4525 = vpop.f32.mrf.mxu0
    %v4526 = vadd.f32 %v3844, %v4525
    %v4527 = vpop.f32.mrf.mxu0
    %v4528 = vadd.f32 %v3848, %v4527
    %v4529 = vpop.f32.mrf.mxu0
    %v4530 = vadd.f32 %v3844, %v4529
    %v4531 = vpop.f32.mrf.mxu0
    %v4532 = vadd.f32 %v3848, %v4531
    %4533 = vmatprep.mubr.bf16.mxu0 %v3704
    %4534 = vmatmul.mubr.bf16.gmra.mxu0 %v3703
    %v4535 = vpop.f32.mrf.mxu0
    %v4536 = vadd.f32 %v3844, %v4535
    %v4537 = vpop.f32.mrf.mxu0
    %v4538 = vadd.f32 %v3848, %v4537
    %v4539 = vpop.f32.mrf.mxu0
    %v4540 = vadd.f32 %v3844, %v4539
    %v4541 = vpop.f32.mrf.mxu0
    %v4542 = vadd.f32 %v3848, %v4541
    %4543 = vdwg.mxu0
    %4544 = vmatprep.subr.bf16.mxu0 %v4282
    %4545 = vmatpush1.bf16.msra.mxu0 %v4281
    %4546 = vmatprep.subr.bf16.mxu0 %v4280
    %4547 = vmatpush1.bf16.msra.mxu0 %v4279
    %4548 = vmatprep.subr.bf16.mxu0 %v4278
    %4549 = vmatpush1.bf16.msra.mxu0 %v4277
    %4550 = vmatprep.subr.bf16.mxu0 %v4276
    %4551 = vmatpush1.bf16.msra.mxu0 %v4275
    %4552 = vmatprep.subr.bf16.mxu0 %v4274
    %4553 = vmatpush1.bf16.msra.mxu0 %v4273
    %4554 = vmatprep.subr.bf16.mxu0 %v4272
    %4555 = vmatpush1.bf16.msra.mxu0 %v4271
    %4556 = vmatprep.subr.bf16.mxu0 %v4270
    %4557 = vmatpush1.bf16.msra.mxu0 %v4269
    %4558 = vmatprep.subr.bf16.mxu0 %v4268
    %4559 = vmatpush1.bf16.msra.mxu0 %v4267
    %4560 = vmatprep.subr.bf16.mxu0 %v4298
    %4561 = vmatpush2.bf16.msra.mxu0 %v4297
    %4562 = vmatprep.subr.bf16.mxu0 %v4296
    %4563 = vmatpush2.bf16.msra.mxu0 %v4295
    %4564 = vmatprep.subr.bf16.mxu0 %v4294
    %4565 = vmatpush2.bf16.msra.mxu0 %v4293
    %4566 = vmatprep.subr.bf16.mxu0 %v4292
    %4567 = vmatpush2.bf16.msra.mxu0 %v4291
    %4568 = vmatprep.subr.bf16.mxu0 %v4290
    %4569 = vmatpush2.bf16.msra.mxu0 %v4289
    %4570 = vmatprep.subr.bf16.mxu0 %v4288
    %4571 = vmatpush2.bf16.msra.mxu0 %v4287
    %4572 = vmatprep.subr.bf16.mxu0 %v4286
    %4573 = vmatpush2.bf16.msra.mxu0 %v4285
    %4574 = vmatprep.subr.bf16.mxu0 %v4284
    %4575 = vmatpush2.bf16.msra.mxu0 %v4283
    %4576 = vmatprep.mubr.bf16.mxu0 %v3698
    %4577 = vmatmul.mubr.bf16.gmra.mxu0 %v3697
    %v4578 = vpop.f32.mrf.mxu0
    %v4579 = vadd.f32 %v4526, %v4578
    %v4580 = vpop.f32.mrf.mxu0
    %v4581 = vadd.f32 %v4528, %v4580
    %v4582 = vpop.f32.mrf.mxu0
    %v4583 = vadd.f32 %v4530, %v4582
    %v4584 = vpop.f32.mrf.mxu0
    %v4585 = vadd.f32 %v4532, %v4584
    %4586 = vmatprep.mubr.bf16.mxu0 %v3706
    %4587 = vmatmul.mubr.bf16.gmra.mxu0 %v3705
    %v4588 = vpop.f32.mrf.mxu0
    %v4589 = vadd.f32 %v4536, %v4588
    %v4590 = vpop.f32.mrf.mxu0
    %v4591 = vadd.f32 %v4538, %v4590
    %v4592 = vpop.f32.mrf.mxu0
    %v4593 = vadd.f32 %v4540, %v4592
    %v4594 = vpop.f32.mrf.mxu0
    %v4595 = vadd.f32 %v4542, %v4594
    %4596 = vdwg.mxu0
    %4597 = vmatprep.subr.bf16.mxu0 %v4314
    %4598 = vmatpush1.bf16.msra.mxu0 %v4313
    %4599 = vmatprep.subr.bf16.mxu0 %v4312
    %4600 = vmatpush1.bf16.msra.mxu0 %v4311
    %4601 = vmatprep.subr.bf16.mxu0 %v4310
    %4602 = vmatpush1.bf16.msra.mxu0 %v4309
    %4603 = vmatprep.subr.bf16.mxu0 %v4308
    %4604 = vmatpush1.bf16.msra.mxu0 %v4307
    %4605 = vmatprep.subr.bf16.mxu0 %v4306
    %4606 = vmatpush1.bf16.msra.mxu0 %v4305
    %4607 = vmatprep.subr.bf16.mxu0 %v4304
    %4608 = vmatpush1.bf16.msra.mxu0 %v4303
    %4609 = vmatprep.subr.bf16.mxu0 %v4302
    %4610 = vmatpush1.bf16.msra.mxu0 %v4301
    %4611 = vmatprep.subr.bf16.mxu0 %v4300
    %4612 = vmatpush1.bf16.msra.mxu0 %v4299
    %4613 = vmatprep.subr.bf16.mxu0 %v4330
    %4614 = vmatpush2.bf16.msra.mxu0 %v4329
    %4615 = vmatprep.subr.bf16.mxu0 %v4328
    %4616 = vmatpush2.bf16.msra.mxu0 %v4327
    %4617 = vmatprep.subr.bf16.mxu0 %v4326
    %4618 = vmatpush2.bf16.msra.mxu0 %v4325
    %4619 = vmatprep.subr.bf16.mxu0 %v4324
    %4620 = vmatpush2.bf16.msra.mxu0 %v4323
    %4621 = vmatprep.subr.bf16.mxu0 %v4322
    %4622 = vmatpush2.bf16.msra.mxu0 %v4321
    %4623 = vmatprep.subr.bf16.mxu0 %v4320
    %4624 = vmatpush2.bf16.msra.mxu0 %v4319
    %4625 = vmatprep.subr.bf16.mxu0 %v4318
    %4626 = vmatpush2.bf16.msra.mxu0 %v4317
    %4627 = vmatprep.subr.bf16.mxu0 %v4316
    %4628 = vmatpush2.bf16.msra.mxu0 %v4315
    %4629 = vmatprep.mubr.bf16.mxu0 %v3700
    %4630 = vmatmul.mubr.bf16.gmra.mxu0 %v3699
    %v4631 = vpop.f32.mrf.mxu0
    %v4632 = vadd.f32 %v4579, %v4631
    %v4633 = vpop.f32.mrf.mxu0
    %v4634 = vadd.f32 %v4581, %v4633
    %v4635 = vpop.f32.mrf.mxu0
    %v4636 = vadd.f32 %v4583, %v4635
    %v4637 = vpop.f32.mrf.mxu0
    %v4638 = vadd.f32 %v4585, %v4637
    %4639 = vmatprep.mubr.bf16.mxu0 %v3708
    %4640 = vmatmul.mubr.bf16.gmra.mxu0 %v3707
    %v4641 = vpop.f32.mrf.mxu0
    %v4642 = vadd.f32 %v4589, %v4641
    %v4643 = vpop.f32.mrf.mxu0
    %v4644 = vadd.f32 %v4591, %v4643
    %v4645 = vpop.f32.mrf.mxu0
    %v4646 = vadd.f32 %v4593, %v4645
    %v4647 = vpop.f32.mrf.mxu0
    %v4648 = vadd.f32 %v4595, %v4647
    %4649 = vdwg.mxu0
    %4650 = vmatprep.subr.bf16.mxu0 %v4346
    %4651 = vmatpush1.bf16.msra.mxu0 %v4345
    %4652 = vmatprep.subr.bf16.mxu0 %v4344
    %4653 = vmatpush1.bf16.msra.mxu0 %v4343
    %4654 = vmatprep.subr.bf16.mxu0 %v4342
    %4655 = vmatpush1.bf16.msra.mxu0 %v4341
    %4656 = vmatprep.subr.bf16.mxu0 %v4340
    %4657 = vmatpush1.bf16.msra.mxu0 %v4339
    %4658 = vmatprep.subr.bf16.mxu0 %v4338
    %4659 = vmatpush1.bf16.msra.mxu0 %v4337
    %4660 = vmatprep.subr.bf16.mxu0 %v4336
    %4661 = vmatpush1.bf16.msra.mxu0 %v4335
    %4662 = vmatprep.subr.bf16.mxu0 %v4334
    %4663 = vmatpush1.bf16.msra.mxu0 %v4333
    %4664 = vmatprep.subr.bf16.mxu0 %v4332
    %4665 = vmatpush1.bf16.msra.mxu0 %v4331
    %4666 = vmatprep.subr.bf16.mxu0 %v4362
    %4667 = vmatpush2.bf16.msra.mxu0 %v4361
    %4668 = vmatprep.subr.bf16.mxu0 %v4360
    %4669 = vmatpush2.bf16.msra.mxu0 %v4359
    %4670 = vmatprep.subr.bf16.mxu0 %v4358
    %4671 = vmatpush2.bf16.msra.mxu0 %v4357
    %4672 = vmatprep.subr.bf16.mxu0 %v4356
    %4673 = vmatpush2.bf16.msra.mxu0 %v4355
    %4674 = vmatprep.subr.bf16.mxu0 %v4354
    %4675 = vmatpush2.bf16.msra.mxu0 %v4353
    %4676 = vmatprep.subr.bf16.mxu0 %v4352
    %4677 = vmatpush2.bf16.msra.mxu0 %v4351
    %4678 = vmatprep.subr.bf16.mxu0 %v4350
    %4679 = vmatpush2.bf16.msra.mxu0 %v4349
    %4680 = vmatprep.subr.bf16.mxu0 %v4348
    %4681 = vmatpush2.bf16.msra.mxu0 %v4347
    %4682 = vmatprep.mubr.bf16.mxu0 %v3702
    %4683 = vmatmul.mubr.bf16.gmra.mxu0 %v3701
    %v4684 = vpop.f32.mrf.mxu0
    %v4685 = vadd.f32 %v4632, %v4684
    %v4686 = vpop.f32.mrf.mxu0
    %v4687 = vadd.f32 %v4634, %v4686
    %v4688 = vpop.f32.mrf.mxu0
    %v4689 = vadd.f32 %v4636, %v4688
    %v4690 = vpop.f32.mrf.mxu0
    %v4691 = vadd.f32 %v4638, %v4690
    %4692 = vmatprep.mubr.bf16.mxu0 %v3710
    %4693 = vmatmul.mubr.bf16.gmra.mxu0 %v3709
    %v4694 = vpop.f32.mrf.mxu0
    %v4695 = vadd.f32 %v4642, %v4694
    %v4696 = vpop.f32.mrf.mxu0
    %v4697 = vadd.f32 %v4644, %v4696
    %v4698 = vpop.f32.mrf.mxu0
    %v4699 = vadd.f32 %v4646, %v4698
    %v4700 = vpop.f32.mrf.mxu0
    %v4701 = vadd.f32 %v4648, %v4700
    %4702 = vdwg.mxu0
    %v4703 = vadd.f32 %v2397, %v4685
    %v4704 = vadd.f32 %v2398, %v4687
    %v4705 = vadd.f32 %v2399, %v4689
    %v4706 = vadd.f32 %v2400, %v4691
    %v4707 = vadd.f32 %v2401, %v4695
    %v4708 = vadd.f32 %v2402, %v4697
    %v4709 = vadd.f32 %v2403, %v4699
    %v4710 = vadd.f32 %v2404, %v4701
    %4711 = vst [vmem:[#allocation18] sm:$0xff] %v4703
    %4712 = vst [vmem:[#allocation18 + $0x8] sm:$0xff] %v4704
    %4713 = vst [vmem:[#allocation18 + $0x10] sm:$0xff] %v4705
    %4714 = vst [vmem:[#allocation18 + $0x18] sm:$0xff] %v4706
    %4715 = vst [vmem:[#allocation18 + $0x20] sm:$0xff] %v4707
    %4716 = vst [vmem:[#allocation18 + $0x28] sm:$0xff] %v4708
    %4717 = vst [vmem:[#allocation18 + $0x30] sm:$0xff] %v4709
    %4718 = vst [vmem:[#allocation18 + $0x38] sm:$0xff] %v4710
    // Predicated region
    $region90: #{tpu_custom_call.1} parent=1 // pred_check
      _
    $region91: #{tpu_custom_call.1} parent=1 // pred_check_branch
      %4720 = sbr.rel (0) target = $region93
    $region92: #{tpu_custom_call.1} parent=1 // pred_region
      %s4722 = ssub.s32 1024, 1024
      %4723 = vsyncadd [#allocation5], %s4722
      %s4724 = sshll.u32 [#allocation18], 4
      %s4725 = int_to_ptr.vmem [resolvable:$true] %s4724
      %4730 = dma.vmem_to_hbm [thread:$0]  %s4725, 1024, %s13, [#allocation5], 256, 256, 16
    $region93: #{tpu_custom_call.1} parent=1 // pred_fallthru
      _
    // Predicated region
    $region94: #{tpu_custom_call.1} parent=1 // pred_check
      _
    $region95: #{tpu_custom_call.1} parent=1 // pred_check_branch
      %4732 = sbr.rel (0) target = $region97
    $region96: #{tpu_custom_call.1} parent=1 // pred_region
      %4733 = dma.done [#allocation5], 1024
    $region97: #{tpu_custom_call.1} parent=1 // pred_fallthru
      _
    %4734 = vsyncpa [#allocation4], 1
    %4735 = vsyncpa [#allocation7], 1
    %4736 = vsyncpa [#allocation10], 1
    %4737 = vsyncpa [#allocation13], 1
    %4738 = vsyncpa [#allocation16], 1
    %4739 = vsyncpa [#allocation5], 1

</llo_original>
